<compile_context>
chip_gen: v7x
topology: tpu7x:2x2x1
jax: 0.10.0
libtpu: 0.0.40
codegen_flags: <defaults>
</compile_context>

<pallas_src>
import functools

import jax
import jax.numpy as jnp
from jax import lax
from jax.experimental import pallas as pl
from jax.experimental.pallas import tpu as pltpu


# ----------------------------------------------------------------------------
# Small helpers (all static / trace-time).
# ----------------------------------------------------------------------------
def _reorder_gate_rows(a):
    """PyTorch gate order [i, f, g, o] -> [i, f, o, g] along axis 0 (size 4H)."""
    H = a.shape[0] // 4
    return jnp.concatenate([a[:2 * H], a[3 * H:], a[2 * H:3 * H]], axis=0)


def _tpu_vmem_capacity():
    try:
        return int(pltpu.get_tpu_info().vmem_capacity_bytes)
    except Exception:
        return 64 * 1024 * 1024     # conservative (v7x per-TensorCore)


def _chunk_vmem_bytes(rows, d0, hid):
    """Rough VMEM bytes for one chunk (double-buffered x/y blocks + scratch)."""
    x = 2 * rows * d0 * 4
    y = 2 * rows * hid * 4
    gates = rows * 4 * hid * 4
    act = rows * hid * 4
    return x + y + gates + act


def _pick_chunk(seq, batch, d0, hid, budget_bytes, max_rows=4096):
    """Largest divisor of seq whose chunk fits the VMEM budget (aligned)."""
    fallback = seq
    for c in range(seq, 0, -1):
        if seq % c:
            continue
        rows = c * batch
        if not (rows % 8 == 0 or c == seq):       # sublane-aligned block
            continue
        fallback = c
        if rows <= max_rows and _chunk_vmem_bytes(rows, d0, hid) <= budget_bytes:
            return c
    return fallback


def _pick_group(chunk, batch):
    """Smallest timestep group whose grouped store is sublane-aligned."""
    for g in range(1, chunk + 1):
        if chunk % g == 0 and (g * batch) % 8 == 0:
            return g
    return 1


# ----------------------------------------------------------------------------
# Fused multi-layer LSTM kernel.  One grid step = one time chunk; all layers
# are processed inside the step with the inter-layer activation in VMEM.
# Gate order (already reordered in the wrapper): [i, f, o, g].
# ----------------------------------------------------------------------------
def fused_encoder_kernel(*refs, n_layers, chunk, batch, hid, group):
    H = hid
    grows = group * batch
    n_groups = chunk // group

    # ---- parse positional refs -------------------------------------------
    idx = 0
    x_ref = refs[idx]; idx += 1                                  # (rows, D0) f32
    wih_refs = refs[idx:idx + n_layers]; idx += n_layers         # (D_in, 4H) bf16
    whh_refs = refs[idx:idx + n_layers]; idx += n_layers         # (H, 4H)   bf16
    b_refs = refs[idx:idx + n_layers]; idx += n_layers           # (1, 4H)   f32
    y_ref, hn_ref, cn_ref = refs[idx:idx + 3]; idx += 3
    gates_sc, act_sc = refs[idx:idx + 2]                         # VMEM scratch

    # hn_ref / cn_ref: (n_layers, B, H), resident across the chunk axis —
    # they double as the cross-chunk h/c carry storage.
    @pl.when(pl.program_id(0) == 0)
    def _init():
        hn_ref[...] = jnp.zeros_like(hn_ref)
        cn_ref[...] = jnp.zeros_like(cn_ref)

    for l in range(n_layers):
        src = x_ref if l == 0 else act_sc
        dst = y_ref if l == n_layers - 1 else act_sc

        # Hoisted input projection: ONE big MXU matmul for the whole chunk.
        gates_sc[...] = (
            jnp.dot(src[...].astype(jnp.bfloat16), wih_refs[l][...],
                    preferred_element_type=jnp.float32)
            + b_refs[l][...])

        whh = whh_refs[l][...]                      # (H, 4H) bf16, vreg-resident
        h0 = hn_ref[l]                              # (B, H) f32 cross-chunk carry
        c0 = cn_ref[l]

        def body(g, carry, dst=dst, whh=whh):
            h, c = carry                                        # register-resident
            row = pl.multiple_of(g * grows, grows)
            gates_grp = gates_sc[pl.ds(row, grows), :]          # aligned load
            outs = []
            for k in range(group):                              # static unroll
                gts = (gates_grp[k * batch:(k + 1) * batch, :]
                       + jnp.dot(h.astype(jnp.bfloat16), whh,
                                 preferred_element_type=jnp.float32))
                sig = jax.nn.sigmoid(gts[:, :3 * H])            # [i | f | o] slab
                g_g = jnp.tanh(gts[:, 3 * H:])                  # g
                c = sig[:, H:2 * H] * c + sig[:, :H] * g_g      # f*c + i*g  (fp32)
                h = sig[:, 2 * H:3 * H] * jnp.tanh(c)           # o*tanh(c)
                outs.append(h)
            # One aligned (group*B, H) store per group instead of per-step
            # masked 2-sublane stores.
            dst[pl.ds(row, grows), :] = jnp.concatenate(outs, axis=0)
            return (h, c)

        h_f, c_f = lax.fori_loop(0, n_groups, body, (h0, c0),
                                 unroll=True if n_groups <= 8 else 2)
        hn_ref[l] = h_f
        cn_ref[l] = c_f


def encoder_pallas(x_flat, wih_list, whh_list, bias_list, *,
                   seq, batch, hid, chunk, group, vmem_limit):
    """x_flat: (S*B, D0) time-major -> (y (S*B,H), h_n, c_n)."""
    n_layers = len(whh_list)
    H = hid
    rows = chunk * batch
    n_chunks = seq // chunk
    D0 = x_flat.shape[1]

    kernel = functools.partial(fused_encoder_kernel, n_layers=n_layers,
                               chunk=chunk, batch=batch, hid=H, group=group)

    in_specs = [pl.BlockSpec((rows, D0), lambda c: (c, 0))]
    in_specs += [pl.BlockSpec(w.shape, lambda c: (0, 0)) for w in wih_list]
    in_specs += [pl.BlockSpec(w.shape, lambda c: (0, 0)) for w in whh_list]
    in_specs += [pl.BlockSpec(b.shape, lambda c: (0, 0)) for b in bias_list]

    out_shape = (
        jax.ShapeDtypeStruct((seq * batch, H), jnp.float32),
        jax.ShapeDtypeStruct((n_layers, batch, H), jnp.float32),
        jax.ShapeDtypeStruct((n_layers, batch, H), jnp.float32),
    )
    out_specs = (
        pl.BlockSpec((rows, H), lambda c: (c, 0)),
        pl.BlockSpec((n_layers, batch, H), lambda c: (0, 0, 0)),
        pl.BlockSpec((n_layers, batch, H), lambda c: (0, 0, 0)),
    )
    scratch_shapes = [
        pltpu.VMEM((rows, 4 * H), jnp.float32),   # hoisted gate projections
        pltpu.VMEM((rows, H), jnp.float32),       # inter-layer activation chunk
    ]

    return pl.pallas_call(
        kernel,
        out_shape=out_shape,
        grid=(n_chunks,),
        in_specs=in_specs,
        out_specs=out_specs,
        scratch_shapes=scratch_shapes,
        compiler_params=pltpu.CompilerParams(
            # Recurrence carries h/c across chunks -> sequential axis.
            dimension_semantics=("arbitrary",),
            vmem_limit_bytes=vmem_limit),
    )(x_flat, *wih_list, *whh_list, *bias_list)


# ----------------------------------------------------------------------------
# Full Encoder forward.
# ----------------------------------------------------------------------------
def encoder_forward(src, params, n_layers):
    """src: (B, input_dim, S) fp32 -> (outputs (S,B,H), hidden, cell)."""
    B, C_in, S = src.shape
    H = params["w_hh_l0"].shape[1]
    D0 = 3 * C_in

    # ---- Fold Conv1d (linear) into the layer-0 input projection ----------
    #   W_fused[g, c*3+k] = sum_o W_ih0[g,o] * conv_w[o,c,k]
    #   b_fused           = W_ih0 @ conv_b + b_ih0 + b_hh0
    x_pad = jnp.pad(src, ((0, 0), (0, 0), (1, 1)))                       # (B,C,S+2)
    taps = jnp.stack([x_pad[:, :, k:k + S] for k in range(3)], axis=3)   # (B,C,S,3)
    x_unf = jnp.transpose(taps, (2, 0, 1, 3)).reshape(S * B, D0)
    x_unf = x_unf.astype(jnp.float32)                                    # (S*B,3C)

    w_fused = jnp.einsum("go,ock->gck", params["w_ih_l0"],
                         params["conv_w"]).reshape(4 * H, D0)
    b_fused = (params["w_ih_l0"] @ params["conv_b"]
               + params["b_ih_l0"] + params["b_hh_l0"])

    # ---- Per-layer weights, gate-reordered to [i,f,o,g] -------------------
    wih_list, whh_list, bias_list = [], [], []
    for l in range(n_layers):
        if l == 0:
            w_ih, bias = w_fused, b_fused
        else:
            w_ih = params[f"w_ih_l{l}"]
            bias = params[f"b_ih_l{l}"] + params[f"b_hh_l{l}"]
        w_hh = params[f"w_hh_l{l}"]
        wih_list.append(_reorder_gate_rows(w_ih).T.astype(jnp.bfloat16))
        whh_list.append(_reorder_gate_rows(w_hh).T.astype(jnp.bfloat16))
        bias_list.append(
            _reorder_gate_rows(bias).reshape(1, 4 * H).astype(jnp.float32))

    # ---- Generation-aware chunk sizing and VMEM limit ----------------------
    cap = _tpu_vmem_capacity()
    budget = int(cap * 0.45)
    chunk = _pick_chunk(S, B, D0, H, budget)
    group = _pick_group(chunk, B)
    needed = _chunk_vmem_bytes(chunk * B, D0, H) + (1 << 20)
    vmem_limit = int(min(int(cap * 0.9), max(32 << 20, 2 * needed)))

    y, hidden, cell = encoder_pallas(
        x_unf, wih_list, whh_list, bias_list,
        seq=S, batch=B, hid=H, chunk=chunk, group=group,
        vmem_limit=vmem_limit)

    outputs = y.reshape(S, B, H)                   # (S, B, H)
    return outputs, hidden, cell


# ----------------------------------------------------------------------------
# Pure-JAX fp32 reference (conv + LSTM done separately, PyTorch semantics).
# ----------------------------------------------------------------------------
def encoder_reference(src, params, n_layers):
    B, C_in, S = src.shape
    w, b = params["conv_w"], params["conv_b"]
    xp = jnp.pad(src, ((0, 0), (0, 0), (1, 1)))
    feat = jnp.zeros((B, w.shape[0], S), jnp.float32)
    for k in range(3):
        feat = feat + jnp.einsum("oc,bcs->bos", w[:, :, k], xp[:, :, k:k + S])
    feat = feat + b[None, :, None]
    x = jnp.transpose(feat, (2, 0, 1))

    hiddens, cells = [], []
    for l in range(n_layers):
        w_ih, w_hh = params[f"w_ih_l{l}"], params[f"w_hh_l{l}"]
        bias = params[f"b_ih_l{l}"] + params[f"b_hh_l{l}"]
        H = w_hh.shape[1]
        h = jnp.zeros((B, H), jnp.float32)
        c = jnp.zeros((B, H), jnp.float32)
        ys = []
        for t in range(x.shape[0]):
            g = x[t] @ w_ih.T + h @ w_hh.T + bias
            i_g = jax.nn.sigmoid(g[:, 0 * H:1 * H])
            f_g = jax.nn.sigmoid(g[:, 1 * H:2 * H])
            g_g = jnp.tanh(g[:, 2 * H:3 * H])
            o_g = jax.nn.sigmoid(g[:, 3 * H:4 * H])
            c = f_g * c + i_g * g_g
            h = o_g * jnp.tanh(c)
            ys.append(h)
        x = jnp.stack(ys, axis=0)
        hiddens.append(h)
        cells.append(c)
    return x, jnp.stack(hiddens, 0), jnp.stack(cells, 0)


# ----------------------------------------------------------------------------
# Deterministic parameter init (shapes follow the PyTorch module's __init__).
# ----------------------------------------------------------------------------
def init_params(key, input_dim, hid_dim, n_layers, feature_dim=32):
    keys = jax.random.split(key, 2 + 4 * n_layers)
    params = {}
    params["conv_w"] = 0.1 * jax.random.normal(
        keys[0], (feature_dim, input_dim, 3), jnp.float32)
    params["conv_b"] = 0.1 * jax.random.normal(
        keys[1], (feature_dim,), jnp.float32)
    for l in range(n_layers):
        d_in = feature_dim if l == 0 else hid_dim
        k0, k1, k2, k3 = keys[2 + 4 * l: 6 + 4 * l]
        params[f"w_ih_l{l}"] = 0.1 * jax.random.normal(
            k0, (4 * hid_dim, d_in), jnp.float32)
        params[f"w_hh_l{l}"] = 0.1 * jax.random.normal(
            k1, (4 * hid_dim, hid_dim), jnp.float32)
        params[f"b_ih_l{l}"] = 0.1 * jax.random.normal(
            k2, (4 * hid_dim,), jnp.float32)
        params[f"b_hh_l{l}"] = 0.1 * jax.random.normal(
            k3, (4 * hid_dim,), jnp.float32)
    return params


if __name__ == "__main__":
    # Encoder(input_dim=4, hid_dim=32, n_layers=2, dropout=0.0);
    # src is (batch=2, channels=4, seq=16).
    input_dim, hid_dim, n_layers = 4, 32, 2
    B, S = 2, 16

    key = jax.random.PRNGKey(0)
    k_param, k_x = jax.random.split(key)
    params = init_params(k_param, input_dim, hid_dim, n_layers)
    src = jax.random.normal(k_x, (B, input_dim, S), jnp.float32)

    fwd = jax.jit(functools.partial(encoder_forward, n_layers=n_layers))
    outputs, hidden, cell = fwd(src, params)
    jax.block_until_ready((outputs, hidden, cell))

    # Sanity check against a pure-JAX fp32 reference.  Tolerance is relaxed
    # vs. fp32 because matmul operands go through bf16 (fp32 accumulation).
    ref_out, ref_h, ref_c = encoder_reference(src, params, n_layers)
    assert outputs.shape == (S, B, hid_dim)
    assert hidden.shape == (n_layers, B, hid_dim)
    assert cell.shape == (n_layers, B, hid_dim)
    assert jnp.allclose(outputs, ref_out, atol=2e-2, rtol=2e-2)
    assert jnp.allclose(hidden, ref_h, atol=2e-2, rtol=2e-2)
    assert jnp.allclose(cell, ref_c, atol=2e-2, rtol=2e-2)

    print("KERNEL_OK")
</pallas_src>

<mosaic_0001>
module attributes {stable_mosaic.version = 11 : i64} {
  func.func @fused_encoder_kernel(%arg0: i32, %arg1: memref<32x12xf32, #tpu.memory_space<vmem>>, %arg2: memref<12x128xbf16, #tpu.memory_space<vmem>>, %arg3: memref<32x128xbf16, #tpu.memory_space<vmem>>, %arg4: memref<32x128xbf16, #tpu.memory_space<vmem>>, %arg5: memref<32x128xbf16, #tpu.memory_space<vmem>>, %arg6: memref<1x128xf32, #tpu.memory_space<vmem>>, %arg7: memref<1x128xf32, #tpu.memory_space<vmem>>, %arg8: memref<32x32xf32, #tpu.memory_space<vmem>>, %arg9: memref<2x2x32xf32, #tpu.memory_space<vmem>>, %arg10: memref<2x2x32xf32, #tpu.memory_space<vmem>>, %arg11: memref<32x128xf32, #tpu.memory_space<vmem>>, %arg12: memref<32x32xf32, #tpu.memory_space<vmem>>) attributes {dimension_semantics = [#tpu.dimension_semantics<arbitrary>], iteration_bounds = array<i64: 1>, scalar_prefetch = 0 : i64, scratch_operands = 2 : i64, tpu.core_type = #tpu.core_type<tc>, window_params = [{transform_indices = @transform_0, window_bounds = array<i64: 32, 12>}, {pipeline_mode = #tpu.pipeline_mode<synchronous>, transform_indices = @transform_1, window_bounds = array<i64: 12, 128>}, {pipeline_mode = #tpu.pipeline_mode<synchronous>, transform_indices = @transform_2, window_bounds = array<i64: 32, 128>}, {pipeline_mode = #tpu.pipeline_mode<synchronous>, transform_indices = @transform_3, window_bounds = array<i64: 32, 128>}, {pipeline_mode = #tpu.pipeline_mode<synchronous>, transform_indices = @transform_4, window_bounds = array<i64: 32, 128>}, {pipeline_mode = #tpu.pipeline_mode<synchronous>, transform_indices = @transform_5, window_bounds = array<i64: 1, 128>}, {pipeline_mode = #tpu.pipeline_mode<synchronous>, transform_indices = @transform_6, window_bounds = array<i64: 1, 128>}, {transform_indices = @transform_7, window_bounds = array<i64: 32, 32>}, {pipeline_mode = #tpu.pipeline_mode<synchronous>, transform_indices = @transform_8, window_bounds = array<i64: 2, 2, 32>}, {pipeline_mode = #tpu.pipeline_mode<synchronous>, transform_indices = @transform_9, window_bounds = array<i64: 2, 2, 32>}]} {
    %c0_i32 = arith.constant 0 : i32
    %0 = arith.cmpi eq, %arg0, %c0_i32 : i32
    %1 = arith.extui %0 : i1 to i32
    %c0_i32_0 = arith.constant 0 : i32
    %2 = arith.cmpi ne, %1, %c0_i32_0 : i32
    scf.if %2 {
      %cst_137 = arith.constant 0.000000e+00 : f32
      %737 = vector.broadcast %cst_137 : f32 to vector<2x2x32xf32>
      %c0_138 = arith.constant 0 : index
      %c0_139 = arith.constant 0 : index
      %c0_140 = arith.constant 0 : index
      %738 = vector.load %arg9[%c0_138, %c0_139, %c0_140] : memref<2x2x32xf32, #tpu.memory_space<vmem>>, vector<2x2x32xf32>
      tpu.vector_store %arg9[%c0_138, %c0_139, %c0_140], %737 {strides = array<i32>} : memref<2x2x32xf32, #tpu.memory_space<vmem>>, vector<2x2x32xf32>,
      %cst_141 = arith.constant 0.000000e+00 : f32
      %739 = vector.broadcast %cst_141 : f32 to vector<2x2x32xf32>
      %c0_142 = arith.constant 0 : index
      %c0_143 = arith.constant 0 : index
      %c0_144 = arith.constant 0 : index
      %740 = vector.load %arg10[%c0_142, %c0_143, %c0_144] : memref<2x2x32xf32, #tpu.memory_space<vmem>>, vector<2x2x32xf32>
      tpu.vector_store %arg10[%c0_142, %c0_143, %c0_144], %739 {strides = array<i32>} : memref<2x2x32xf32, #tpu.memory_space<vmem>>, vector<2x2x32xf32>,
    } else {
    }
    %c0 = arith.constant 0 : index
    %c0_1 = arith.constant 0 : index
    %3 = vector.load %arg1[%c0, %c0_1] : memref<32x12xf32, #tpu.memory_space<vmem>>, vector<32x12xf32>
    %4 = arith.truncf %3 : vector<32x12xf32> to vector<32x12xbf16>
    %c0_2 = arith.constant 0 : index
    %c0_3 = arith.constant 0 : index
    %5 = vector.load %arg2[%c0_2, %c0_3] : memref<12x128xbf16, #tpu.memory_space<vmem>>, vector<12x128xbf16>
    %cst = arith.constant dense<0.000000e+00> : vector<32x128xf32>
    %6 = tpu.matmul %4, %5, %cst {dimension_numbers = #tpu.dot_dimension_numbers<[1], [0], [0], [1], [0, 0, 1, 1], [], []>} : vector<32x12xbf16>, vector<12x128xbf16>, vector<32x128xf32> -> vector<32x128xf32>
    %c0_4 = arith.constant 0 : index
    %c0_5 = arith.constant 0 : index
    %7 = vector.load %arg6[%c0_4, %c0_5] : memref<1x128xf32, #tpu.memory_space<vmem>>, vector<1x128xf32>
    %8 = vector.broadcast %7 : vector<1x128xf32> to vector<32x128xf32>
    %9 = arith.addf %6, %8 : vector<32x128xf32>
    %c0_6 = arith.constant 0 : index
    %c0_7 = arith.constant 0 : index
    %10 = vector.load %arg11[%c0_6, %c0_7] : memref<32x128xf32, #tpu.memory_space<vmem>>, vector<32x128xf32>
    tpu.vector_store %arg11[%c0_6, %c0_7], %9 {strides = array<i32>} : memref<32x128xf32, #tpu.memory_space<vmem>>, vector<32x128xf32>,
    %c0_8 = arith.constant 0 : index
    %c0_9 = arith.constant 0 : index
    %11 = vector.load %arg4[%c0_8, %c0_9] : memref<32x128xbf16, #tpu.memory_space<vmem>>, vector<32x128xbf16>
    %c0_10 = arith.constant 0 : index
    %c0_11 = arith.constant 0 : index
    %c0_12 = arith.constant 0 : index
    %12 = vector.load %arg9[%c0_10, %c0_11, %c0_12] : memref<2x2x32xf32, #tpu.memory_space<vmem>>, vector<1x2x32xf32>
    %13 = vector.shape_cast %12 : vector<1x2x32xf32> to vector<2x32xf32>
    %c0_13 = arith.constant 0 : index
    %c0_14 = arith.constant 0 : index
    %c0_15 = arith.constant 0 : index
    %14 = vector.load %arg10[%c0_13, %c0_14, %c0_15] : memref<2x2x32xf32, #tpu.memory_space<vmem>>, vector<1x2x32xf32>
    %15 = vector.shape_cast %14 : vector<1x2x32xf32> to vector<2x32xf32>
    %c0_i32_16 = arith.constant 0 : i32
    %c8_i32 = arith.constant 8 : i32
    %16 = arith.muli %c0_i32_16, %c8_i32 : i32
    %17 = tpu.assume_multiple %16, 8 : i32
    %18 = arith.index_cast %17 : i32 to index
    %c0_17 = arith.constant 0 : index
    %19 = vector.load %arg11[%18, %c0_17] : memref<32x128xf32, #tpu.memory_space<vmem>>, vector<8x128xf32>
    %20 = vector.extract_strided_slice %19 {offsets = [0, 0], sizes = [2, 128], strides = [1, 1]} : vector<8x128xf32> to vector<2x128xf32>
    %21 = arith.truncf %13 : vector<2x32xf32> to vector<2x32xbf16>
    %cst_18 = arith.constant dense<0.000000e+00> : vector<2x128xf32>
    %22 = tpu.matmul %21, %11, %cst_18 {dimension_numbers = #tpu.dot_dimension_numbers<[1], [0], [0], [1], [0, 0, 1, 1], [], []>} : vector<2x32xbf16>, vector<32x128xbf16>, vector<2x128xf32> -> vector<2x128xf32>
    %23 = arith.addf %20, %22 : vector<2x128xf32>
    %24 = vector.extract_strided_slice %23 {offsets = [0, 0], sizes = [2, 96], strides = [1, 1]} : vector<2x128xf32> to vector<2x96xf32>
    %25 = arith.negf %24 : vector<2x96xf32>
    %26 = math.exp %25 : vector<2x96xf32>
    %cst_19 = arith.constant 1.000000e+00 : f32
    %27 = vector.broadcast %cst_19 : f32 to vector<2x96xf32>
    %28 = arith.addf %27, %26 : vector<2x96xf32>
    %29 = arith.divf %27, %28 : vector<2x96xf32>
    %30 = vector.extract_strided_slice %23 {offsets = [0, 96], sizes = [2, 32], strides = [1, 1]} : vector<2x128xf32> to vector<2x32xf32>
    %31 = math.tanh %30 : vector<2x32xf32>
    %32 = vector.extract_strided_slice %29 {offsets = [0, 32], sizes = [2, 32], strides = [1, 1]} : vector<2x96xf32> to vector<2x32xf32>
    %33 = arith.mulf %32, %15 : vector<2x32xf32>
    %34 = vector.extract_strided_slice %29 {offsets = [0, 0], sizes = [2, 32], strides = [1, 1]} : vector<2x96xf32> to vector<2x32xf32>
    %35 = arith.mulf %34, %31 : vector<2x32xf32>
    %36 = arith.addf %33, %35 : vector<2x32xf32>
    %37 = vector.extract_strided_slice %29 {offsets = [0, 64], sizes = [2, 32], strides = [1, 1]} : vector<2x96xf32> to vector<2x32xf32>
    %38 = math.tanh %36 : vector<2x32xf32>
    %39 = arith.mulf %37, %38 : vector<2x32xf32>
    %40 = vector.extract_strided_slice %19 {offsets = [2, 0], sizes = [2, 128], strides = [1, 1]} : vector<8x128xf32> to vector<2x128xf32>
    %41 = arith.truncf %39 : vector<2x32xf32> to vector<2x32xbf16>
    %cst_20 = arith.constant dense<0.000000e+00> : vector<2x128xf32>
    %42 = tpu.matmul %41, %11, %cst_20 {dimension_numbers = #tpu.dot_dimension_numbers<[1], [0], [0], [1], [0, 0, 1, 1], [], []>} : vector<2x32xbf16>, vector<32x128xbf16>, vector<2x128xf32> -> vector<2x128xf32>
    %43 = arith.addf %40, %42 : vector<2x128xf32>
    %44 = vector.extract_strided_slice %43 {offsets = [0, 0], sizes = [2, 96], strides = [1, 1]} : vector<2x128xf32> to vector<2x96xf32>
    %45 = arith.negf %44 : vector<2x96xf32>
    %46 = math.exp %45 : vector<2x96xf32>
    %cst_21 = arith.constant 1.000000e+00 : f32
    %47 = vector.broadcast %cst_21 : f32 to vector<2x96xf32>
    %48 = arith.addf %47, %46 : vector<2x96xf32>
    %49 = arith.divf %47, %48 : vector<2x96xf32>
    %50 = vector.extract_strided_slice %43 {offsets = [0, 96], sizes = [2, 32], strides = [1, 1]} : vector<2x128xf32> to vector<2x32xf32>
    %51 = math.tanh %50 : vector<2x32xf32>
    %52 = vector.extract_strided_slice %49 {offsets = [0, 32], sizes = [2, 32], strides = [1, 1]} : vector<2x96xf32> to vector<2x32xf32>
    %53 = arith.mulf %52, %36 : vector<2x32xf32>
    %54 = vector.extract_strided_slice %49 {offsets = [0, 0], sizes = [2, 32], strides = [1, 1]} : vector<2x96xf32> to vector<2x32xf32>
    %55 = arith.mulf %54, %51 : vector<2x32xf32>
    %56 = arith.addf %53, %55 : vector<2x32xf32>
    %57 = vector.extract_strided_slice %49 {offsets = [0, 64], sizes = [2, 32], strides = [1, 1]} : vector<2x96xf32> to vector<2x32xf32>
    %58 = math.tanh %56 : vector<2x32xf32>
    %59 = arith.mulf %57, %58 : vector<2x32xf32>
    %60 = vector.extract_strided_slice %19 {offsets = [4, 0], sizes = [2, 128], strides = [1, 1]} : vector<8x128xf32> to vector<2x128xf32>
    %61 = arith.truncf %59 : vector<2x32xf32> to vector<2x32xbf16>
    %cst_22 = arith.constant dense<0.000000e+00> : vector<2x128xf32>
    %62 = tpu.matmul %61, %11, %cst_22 {dimension_numbers = #tpu.dot_dimension_numbers<[1], [0], [0], [1], [0, 0, 1, 1], [], []>} : vector<2x32xbf16>, vector<32x128xbf16>, vector<2x128xf32> -> vector<2x128xf32>
    %63 = arith.addf %60, %62 : vector<2x128xf32>
    %64 = vector.extract_strided_slice %63 {offsets = [0, 0], sizes = [2, 96], strides = [1, 1]} : vector<2x128xf32> to vector<2x96xf32>
    %65 = arith.negf %64 : vector<2x96xf32>
    %66 = math.exp %65 : vector<2x96xf32>
    %cst_23 = arith.constant 1.000000e+00 : f32
    %67 = vector.broadcast %cst_23 : f32 to vector<2x96xf32>
    %68 = arith.addf %67, %66 : vector<2x96xf32>
    %69 = arith.divf %67, %68 : vector<2x96xf32>
    %70 = vector.extract_strided_slice %63 {offsets = [0, 96], sizes = [2, 32], strides = [1, 1]} : vector<2x128xf32> to vector<2x32xf32>
    %71 = math.tanh %70 : vector<2x32xf32>
    %72 = vector.extract_strided_slice %69 {offsets = [0, 32], sizes = [2, 32], strides = [1, 1]} : vector<2x96xf32> to vector<2x32xf32>
    %73 = arith.mulf %72, %56 : vector<2x32xf32>
    %74 = vector.extract_strided_slice %69 {offsets = [0, 0], sizes = [2, 32], strides = [1, 1]} : vector<2x96xf32> to vector<2x32xf32>
    %75 = arith.mulf %74, %71 : vector<2x32xf32>
    %76 = arith.addf %73, %75 : vector<2x32xf32>
    %77 = vector.extract_strided_slice %69 {offsets = [0, 64], sizes = [2, 32], strides = [1, 1]} : vector<2x96xf32> to vector<2x32xf32>
    %78 = math.tanh %76 : vector<2x32xf32>
    %79 = arith.mulf %77, %78 : vector<2x32xf32>
    %80 = vector.extract_strided_slice %19 {offsets = [6, 0], sizes = [2, 128], strides = [1, 1]} : vector<8x128xf32> to vector<2x128xf32>
    %81 = arith.truncf %79 : vector<2x32xf32> to vector<2x32xbf16>
    %cst_24 = arith.constant dense<0.000000e+00> : vector<2x128xf32>
    %82 = tpu.matmul %81, %11, %cst_24 {dimension_numbers = #tpu.dot_dimension_numbers<[1], [0], [0], [1], [0, 0, 1, 1], [], []>} : vector<2x32xbf16>, vector<32x128xbf16>, vector<2x128xf32> -> vector<2x128xf32>
    %83 = arith.addf %80, %82 : vector<2x128xf32>
    %84 = vector.extract_strided_slice %83 {offsets = [0, 0], sizes = [2, 96], strides = [1, 1]} : vector<2x128xf32> to vector<2x96xf32>
    %85 = arith.negf %84 : vector<2x96xf32>
    %86 = math.exp %85 : vector<2x96xf32>
    %cst_25 = arith.constant 1.000000e+00 : f32
    %87 = vector.broadcast %cst_25 : f32 to vector<2x96xf32>
    %88 = arith.addf %87, %86 : vector<2x96xf32>
    %89 = arith.divf %87, %88 : vector<2x96xf32>
    %90 = vector.extract_strided_slice %83 {offsets = [0, 96], sizes = [2, 32], strides = [1, 1]} : vector<2x128xf32> to vector<2x32xf32>
    %91 = math.tanh %90 : vector<2x32xf32>
    %92 = vector.extract_strided_slice %89 {offsets = [0, 32], sizes = [2, 32], strides = [1, 1]} : vector<2x96xf32> to vector<2x32xf32>
    %93 = arith.mulf %92, %76 : vector<2x32xf32>
    %94 = vector.extract_strided_slice %89 {offsets = [0, 0], sizes = [2, 32], strides = [1, 1]} : vector<2x96xf32> to vector<2x32xf32>
    %95 = arith.mulf %94, %91 : vector<2x32xf32>
    %96 = arith.addf %93, %95 : vector<2x32xf32>
    %97 = vector.extract_strided_slice %89 {offsets = [0, 64], sizes = [2, 32], strides = [1, 1]} : vector<2x96xf32> to vector<2x32xf32>
    %98 = math.tanh %96 : vector<2x32xf32>
    %99 = arith.mulf %97, %98 : vector<2x32xf32>
    %100 = tpu.concatenate %39, %59, %79, %99 in 0 : vector<2x32xf32>, vector<2x32xf32>, vector<2x32xf32>, vector<2x32xf32> -> vector<8x32xf32>
    %101 = arith.index_cast %17 : i32 to index
    %c0_26 = arith.constant 0 : index
    %102 = vector.load %arg12[%101, %c0_26] : memref<32x32xf32, #tpu.memory_space<vmem>>, vector<8x32xf32>
    tpu.vector_store %arg12[%101, %c0_26], %100 {strides = array<i32>} : memref<32x32xf32, #tpu.memory_space<vmem>>, vector<8x32xf32>,
    %c1_i32 = arith.constant 1 : i32
    %c8_i32_27 = arith.constant 8 : i32
    %103 = arith.muli %c1_i32, %c8_i32_27 : i32
    %104 = tpu.assume_multiple %103, 8 : i32
    %105 = arith.index_cast %104 : i32 to index
    %c0_28 = arith.constant 0 : index
    %106 = vector.load %arg11[%105, %c0_28] : memref<32x128xf32, #tpu.memory_space<vmem>>, vector<8x128xf32>
    %107 = vector.extract_strided_slice %106 {offsets = [0, 0], sizes = [2, 128], strides = [1, 1]} : vector<8x128xf32> to vector<2x128xf32>
    %108 = arith.truncf %99 : vector<2x32xf32> to vector<2x32xbf16>
    %cst_29 = arith.constant dense<0.000000e+00> : vector<2x128xf32>
    %109 = tpu.matmul %108, %11, %cst_29 {dimension_numbers = #tpu.dot_dimension_numbers<[1], [0], [0], [1], [0, 0, 1, 1], [], []>} : vector<2x32xbf16>, vector<32x128xbf16>, vector<2x128xf32> -> vector<2x128xf32>
    %110 = arith.addf %107, %109 : vector<2x128xf32>
    %111 = vector.extract_strided_slice %110 {offsets = [0, 0], sizes = [2, 96], strides = [1, 1]} : vector<2x128xf32> to vector<2x96xf32>
    %112 = arith.negf %111 : vector<2x96xf32>
    %113 = math.exp %112 : vector<2x96xf32>
    %cst_30 = arith.constant 1.000000e+00 : f32
    %114 = vector.broadcast %cst_30 : f32 to vector<2x96xf32>
    %115 = arith.addf %114, %113 : vector<2x96xf32>
    %116 = arith.divf %114, %115 : vector<2x96xf32>
    %117 = vector.extract_strided_slice %110 {offsets = [0, 96], sizes = [2, 32], strides = [1, 1]} : vector<2x128xf32> to vector<2x32xf32>
    %118 = math.tanh %117 : vector<2x32xf32>
    %119 = vector.extract_strided_slice %116 {offsets = [0, 32], sizes = [2, 32], strides = [1, 1]} : vector<2x96xf32> to vector<2x32xf32>
    %120 = arith.mulf %119, %96 : vector<2x32xf32>
    %121 = vector.extract_strided_slice %116 {offsets = [0, 0], sizes = [2, 32], strides = [1, 1]} : vector<2x96xf32> to vector<2x32xf32>
    %122 = arith.mulf %121, %118 : vector<2x32xf32>
    %123 = arith.addf %120, %122 : vector<2x32xf32>
    %124 = vector.extract_strided_slice %116 {offsets = [0, 64], sizes = [2, 32], strides = [1, 1]} : vector<2x96xf32> to vector<2x32xf32>
    %125 = math.tanh %123 : vector<2x32xf32>
    %126 = arith.mulf %124, %125 : vector<2x32xf32>
    %127 = vector.extract_strided_slice %106 {offsets = [2, 0], sizes = [2, 128], strides = [1, 1]} : vector<8x128xf32> to vector<2x128xf32>
    %128 = arith.truncf %126 : vector<2x32xf32> to vector<2x32xbf16>
    %cst_31 = arith.constant dense<0.000000e+00> : vector<2x128xf32>
    %129 = tpu.matmul %128, %11, %cst_31 {dimension_numbers = #tpu.dot_dimension_numbers<[1], [0], [0], [1], [0, 0, 1, 1], [], []>} : vector<2x32xbf16>, vector<32x128xbf16>, vector<2x128xf32> -> vector<2x128xf32>
    %130 = arith.addf %127, %129 : vector<2x128xf32>
    %131 = vector.extract_strided_slice %130 {offsets = [0, 0], sizes = [2, 96], strides = [1, 1]} : vector<2x128xf32> to vector<2x96xf32>
    %132 = arith.negf %131 : vector<2x96xf32>
    %133 = math.exp %132 : vector<2x96xf32>
    %cst_32 = arith.constant 1.000000e+00 : f32
    %134 = vector.broadcast %cst_32 : f32 to vector<2x96xf32>
    %135 = arith.addf %134, %133 : vector<2x96xf32>
    %136 = arith.divf %134, %135 : vector<2x96xf32>
    %137 = vector.extract_strided_slice %130 {offsets = [0, 96], sizes = [2, 32], strides = [1, 1]} : vector<2x128xf32> to vector<2x32xf32>
    %138 = math.tanh %137 : vector<2x32xf32>
    %139 = vector.extract_strided_slice %136 {offsets = [0, 32], sizes = [2, 32], strides = [1, 1]} : vector<2x96xf32> to vector<2x32xf32>
    %140 = arith.mulf %139, %123 : vector<2x32xf32>
    %141 = vector.extract_strided_slice %136 {offsets = [0, 0], sizes = [2, 32], strides = [1, 1]} : vector<2x96xf32> to vector<2x32xf32>
    %142 = arith.mulf %141, %138 : vector<2x32xf32>
    %143 = arith.addf %140, %142 : vector<2x32xf32>
    %144 = vector.extract_strided_slice %136 {offsets = [0, 64], sizes = [2, 32], strides = [1, 1]} : vector<2x96xf32> to vector<2x32xf32>
    %145 = math.tanh %143 : vector<2x32xf32>
    %146 = arith.mulf %144, %145 : vector<2x32xf32>
    %147 = vector.extract_strided_slice %106 {offsets = [4, 0], sizes = [2, 128], strides = [1, 1]} : vector<8x128xf32> to vector<2x128xf32>
    %148 = arith.truncf %146 : vector<2x32xf32> to vector<2x32xbf16>
    %cst_33 = arith.constant dense<0.000000e+00> : vector<2x128xf32>
    %149 = tpu.matmul %148, %11, %cst_33 {dimension_numbers = #tpu.dot_dimension_numbers<[1], [0], [0], [1], [0, 0, 1, 1], [], []>} : vector<2x32xbf16>, vector<32x128xbf16>, vector<2x128xf32> -> vector<2x128xf32>
    %150 = arith.addf %147, %149 : vector<2x128xf32>
    %151 = vector.extract_strided_slice %150 {offsets = [0, 0], sizes = [2, 96], strides = [1, 1]} : vector<2x128xf32> to vector<2x96xf32>
    %152 = arith.negf %151 : vector<2x96xf32>
    %153 = math.exp %152 : vector<2x96xf32>
    %cst_34 = arith.constant 1.000000e+00 : f32
    %154 = vector.broadcast %cst_34 : f32 to vector<2x96xf32>
    %155 = arith.addf %154, %153 : vector<2x96xf32>
    %156 = arith.divf %154, %155 : vector<2x96xf32>
    %157 = vector.extract_strided_slice %150 {offsets = [0, 96], sizes = [2, 32], strides = [1, 1]} : vector<2x128xf32> to vector<2x32xf32>
    %158 = math.tanh %157 : vector<2x32xf32>
    %159 = vector.extract_strided_slice %156 {offsets = [0, 32], sizes = [2, 32], strides = [1, 1]} : vector<2x96xf32> to vector<2x32xf32>
    %160 = arith.mulf %159, %143 : vector<2x32xf32>
    %161 = vector.extract_strided_slice %156 {offsets = [0, 0], sizes = [2, 32], strides = [1, 1]} : vector<2x96xf32> to vector<2x32xf32>
    %162 = arith.mulf %161, %158 : vector<2x32xf32>
    %163 = arith.addf %160, %162 : vector<2x32xf32>
    %164 = vector.extract_strided_slice %156 {offsets = [0, 64], sizes = [2, 32], strides = [1, 1]} : vector<2x96xf32> to vector<2x32xf32>
    %165 = math.tanh %163 : vector<2x32xf32>
    %166 = arith.mulf %164, %165 : vector<2x32xf32>
    %167 = vector.extract_strided_slice %106 {offsets = [6, 0], sizes = [2, 128], strides = [1, 1]} : vector<8x128xf32> to vector<2x128xf32>
    %168 = arith.truncf %166 : vector<2x32xf32> to vector<2x32xbf16>
    %cst_35 = arith.constant dense<0.000000e+00> : vector<2x128xf32>
    %169 = tpu.matmul %168, %11, %cst_35 {dimension_numbers = #tpu.dot_dimension_numbers<[1], [0], [0], [1], [0, 0, 1, 1], [], []>} : vector<2x32xbf16>, vector<32x128xbf16>, vector<2x128xf32> -> vector<2x128xf32>
    %170 = arith.addf %167, %169 : vector<2x128xf32>
    %171 = vector.extract_strided_slice %170 {offsets = [0, 0], sizes = [2, 96], strides = [1, 1]} : vector<2x128xf32> to vector<2x96xf32>
    %172 = arith.negf %171 : vector<2x96xf32>
    %173 = math.exp %172 : vector<2x96xf32>
    %cst_36 = arith.constant 1.000000e+00 : f32
    %174 = vector.broadcast %cst_36 : f32 to vector<2x96xf32>
    %175 = arith.addf %174, %173 : vector<2x96xf32>
    %176 = arith.divf %174, %175 : vector<2x96xf32>
    %177 = vector.extract_strided_slice %170 {offsets = [0, 96], sizes = [2, 32], strides = [1, 1]} : vector<2x128xf32> to vector<2x32xf32>
    %178 = math.tanh %177 : vector<2x32xf32>
    %179 = vector.extract_strided_slice %176 {offsets = [0, 32], sizes = [2, 32], strides = [1, 1]} : vector<2x96xf32> to vector<2x32xf32>
    %180 = arith.mulf %179, %163 : vector<2x32xf32>
    %181 = vector.extract_strided_slice %176 {offsets = [0, 0], sizes = [2, 32], strides = [1, 1]} : vector<2x96xf32> to vector<2x32xf32>
    %182 = arith.mulf %181, %178 : vector<2x32xf32>
    %183 = arith.addf %180, %182 : vector<2x32xf32>
    %184 = vector.extract_strided_slice %176 {offsets = [0, 64], sizes = [2, 32], strides = [1, 1]} : vector<2x96xf32> to vector<2x32xf32>
    %185 = math.tanh %183 : vector<2x32xf32>
    %186 = arith.mulf %184, %185 : vector<2x32xf32>
    %187 = tpu.concatenate %126, %146, %166, %186 in 0 : vector<2x32xf32>, vector<2x32xf32>, vector<2x32xf32>, vector<2x32xf32> -> vector<8x32xf32>
    %188 = arith.index_cast %104 : i32 to index
    %c0_37 = arith.constant 0 : index
    %189 = vector.load %arg12[%188, %c0_37] : memref<32x32xf32, #tpu.memory_space<vmem>>, vector<8x32xf32>
    tpu.vector_store %arg12[%188, %c0_37], %187 {strides = array<i32>} : memref<32x32xf32, #tpu.memory_space<vmem>>, vector<8x32xf32>,
    %c2_i32 = arith.constant 2 : i32
    %c8_i32_38 = arith.constant 8 : i32
    %190 = arith.muli %c2_i32, %c8_i32_38 : i32
    %191 = tpu.assume_multiple %190, 8 : i32
    %192 = arith.index_cast %191 : i32 to index
    %c0_39 = arith.constant 0 : index
    %193 = vector.load %arg11[%192, %c0_39] : memref<32x128xf32, #tpu.memory_space<vmem>>, vector<8x128xf32>
    %194 = vector.extract_strided_slice %193 {offsets = [0, 0], sizes = [2, 128], strides = [1, 1]} : vector<8x128xf32> to vector<2x128xf32>
    %195 = arith.truncf %186 : vector<2x32xf32> to vector<2x32xbf16>
    %cst_40 = arith.constant dense<0.000000e+00> : vector<2x128xf32>
    %196 = tpu.matmul %195, %11, %cst_40 {dimension_numbers = #tpu.dot_dimension_numbers<[1], [0], [0], [1], [0, 0, 1, 1], [], []>} : vector<2x32xbf16>, vector<32x128xbf16>, vector<2x128xf32> -> vector<2x128xf32>
    %197 = arith.addf %194, %196 : vector<2x128xf32>
    %198 = vector.extract_strided_slice %197 {offsets = [0, 0], sizes = [2, 96], strides = [1, 1]} : vector<2x128xf32> to vector<2x96xf32>
    %199 = arith.negf %198 : vector<2x96xf32>
    %200 = math.exp %199 : vector<2x96xf32>
    %cst_41 = arith.constant 1.000000e+00 : f32
    %201 = vector.broadcast %cst_41 : f32 to vector<2x96xf32>
    %202 = arith.addf %201, %200 : vector<2x96xf32>
    %203 = arith.divf %201, %202 : vector<2x96xf32>
    %204 = vector.extract_strided_slice %197 {offsets = [0, 96], sizes = [2, 32], strides = [1, 1]} : vector<2x128xf32> to vector<2x32xf32>
    %205 = math.tanh %204 : vector<2x32xf32>
    %206 = vector.extract_strided_slice %203 {offsets = [0, 32], sizes = [2, 32], strides = [1, 1]} : vector<2x96xf32> to vector<2x32xf32>
    %207 = arith.mulf %206, %183 : vector<2x32xf32>
    %208 = vector.extract_strided_slice %203 {offsets = [0, 0], sizes = [2, 32], strides = [1, 1]} : vector<2x96xf32> to vector<2x32xf32>
    %209 = arith.mulf %208, %205 : vector<2x32xf32>
    %210 = arith.addf %207, %209 : vector<2x32xf32>
    %211 = vector.extract_strided_slice %203 {offsets = [0, 64], sizes = [2, 32], strides = [1, 1]} : vector<2x96xf32> to vector<2x32xf32>
    %212 = math.tanh %210 : vector<2x32xf32>
    %213 = arith.mulf %211, %212 : vector<2x32xf32>
    %214 = vector.extract_strided_slice %193 {offsets = [2, 0], sizes = [2, 128], strides = [1, 1]} : vector<8x128xf32> to vector<2x128xf32>
    %215 = arith.truncf %213 : vector<2x32xf32> to vector<2x32xbf16>
    %cst_42 = arith.constant dense<0.000000e+00> : vector<2x128xf32>
    %216 = tpu.matmul %215, %11, %cst_42 {dimension_numbers = #tpu.dot_dimension_numbers<[1], [0], [0], [1], [0, 0, 1, 1], [], []>} : vector<2x32xbf16>, vector<32x128xbf16>, vector<2x128xf32> -> vector<2x128xf32>
    %217 = arith.addf %214, %216 : vector<2x128xf32>
    %218 = vector.extract_strided_slice %217 {offsets = [0, 0], sizes = [2, 96], strides = [1, 1]} : vector<2x128xf32> to vector<2x96xf32>
    %219 = arith.negf %218 : vector<2x96xf32>
    %220 = math.exp %219 : vector<2x96xf32>
    %cst_43 = arith.constant 1.000000e+00 : f32
    %221 = vector.broadcast %cst_43 : f32 to vector<2x96xf32>
    %222 = arith.addf %221, %220 : vector<2x96xf32>
    %223 = arith.divf %221, %222 : vector<2x96xf32>
    %224 = vector.extract_strided_slice %217 {offsets = [0, 96], sizes = [2, 32], strides = [1, 1]} : vector<2x128xf32> to vector<2x32xf32>
    %225 = math.tanh %224 : vector<2x32xf32>
    %226 = vector.extract_strided_slice %223 {offsets = [0, 32], sizes = [2, 32], strides = [1, 1]} : vector<2x96xf32> to vector<2x32xf32>
    %227 = arith.mulf %226, %210 : vector<2x32xf32>
    %228 = vector.extract_strided_slice %223 {offsets = [0, 0], sizes = [2, 32], strides = [1, 1]} : vector<2x96xf32> to vector<2x32xf32>
    %229 = arith.mulf %228, %225 : vector<2x32xf32>
    %230 = arith.addf %227, %229 : vector<2x32xf32>
    %231 = vector.extract_strided_slice %223 {offsets = [0, 64], sizes = [2, 32], strides = [1, 1]} : vector<2x96xf32> to vector<2x32xf32>
    %232 = math.tanh %230 : vector<2x32xf32>
    %233 = arith.mulf %231, %232 : vector<2x32xf32>
    %234 = vector.extract_strided_slice %193 {offsets = [4, 0], sizes = [2, 128], strides = [1, 1]} : vector<8x128xf32> to vector<2x128xf32>
    %235 = arith.truncf %233 : vector<2x32xf32> to vector<2x32xbf16>
    %cst_44 = arith.constant dense<0.000000e+00> : vector<2x128xf32>
    %236 = tpu.matmul %235, %11, %cst_44 {dimension_numbers = #tpu.dot_dimension_numbers<[1], [0], [0], [1], [0, 0, 1, 1], [], []>} : vector<2x32xbf16>, vector<32x128xbf16>, vector<2x128xf32> -> vector<2x128xf32>
    %237 = arith.addf %234, %236 : vector<2x128xf32>
    %238 = vector.extract_strided_slice %237 {offsets = [0, 0], sizes = [2, 96], strides = [1, 1]} : vector<2x128xf32> to vector<2x96xf32>
    %239 = arith.negf %238 : vector<2x96xf32>
    %240 = math.exp %239 : vector<2x96xf32>
    %cst_45 = arith.constant 1.000000e+00 : f32
    %241 = vector.broadcast %cst_45 : f32 to vector<2x96xf32>
    %242 = arith.addf %241, %240 : vector<2x96xf32>
    %243 = arith.divf %241, %242 : vector<2x96xf32>
    %244 = vector.extract_strided_slice %237 {offsets = [0, 96], sizes = [2, 32], strides = [1, 1]} : vector<2x128xf32> to vector<2x32xf32>
    %245 = math.tanh %244 : vector<2x32xf32>
    %246 = vector.extract_strided_slice %243 {offsets = [0, 32], sizes = [2, 32], strides = [1, 1]} : vector<2x96xf32> to vector<2x32xf32>
    %247 = arith.mulf %246, %230 : vector<2x32xf32>
    %248 = vector.extract_strided_slice %243 {offsets = [0, 0], sizes = [2, 32], strides = [1, 1]} : vector<2x96xf32> to vector<2x32xf32>
    %249 = arith.mulf %248, %245 : vector<2x32xf32>
    %250 = arith.addf %247, %249 : vector<2x32xf32>
    %251 = vector.extract_strided_slice %243 {offsets = [0, 64], sizes = [2, 32], strides = [1, 1]} : vector<2x96xf32> to vector<2x32xf32>
    %252 = math.tanh %250 : vector<2x32xf32>
    %253 = arith.mulf %251, %252 : vector<2x32xf32>
    %254 = vector.extract_strided_slice %193 {offsets = [6, 0], sizes = [2, 128], strides = [1, 1]} : vector<8x128xf32> to vector<2x128xf32>
    %255 = arith.truncf %253 : vector<2x32xf32> to vector<2x32xbf16>
    %cst_46 = arith.constant dense<0.000000e+00> : vector<2x128xf32>
    %256 = tpu.matmul %255, %11, %cst_46 {dimension_numbers = #tpu.dot_dimension_numbers<[1], [0], [0], [1], [0, 0, 1, 1], [], []>} : vector<2x32xbf16>, vector<32x128xbf16>, vector<2x128xf32> -> vector<2x128xf32>
    %257 = arith.addf %254, %256 : vector<2x128xf32>
    %258 = vector.extract_strided_slice %257 {offsets = [0, 0], sizes = [2, 96], strides = [1, 1]} : vector<2x128xf32> to vector<2x96xf32>
    %259 = arith.negf %258 : vector<2x96xf32>
    %260 = math.exp %259 : vector<2x96xf32>
    %cst_47 = arith.constant 1.000000e+00 : f32
    %261 = vector.broadcast %cst_47 : f32 to vector<2x96xf32>
    %262 = arith.addf %261, %260 : vector<2x96xf32>
    %263 = arith.divf %261, %262 : vector<2x96xf32>
    %264 = vector.extract_strided_slice %257 {offsets = [0, 96], sizes = [2, 32], strides = [1, 1]} : vector<2x128xf32> to vector<2x32xf32>
    %265 = math.tanh %264 : vector<2x32xf32>
    %266 = vector.extract_strided_slice %263 {offsets = [0, 32], sizes = [2, 32], strides = [1, 1]} : vector<2x96xf32> to vector<2x32xf32>
    %267 = arith.mulf %266, %250 : vector<2x32xf32>
    %268 = vector.extract_strided_slice %263 {offsets = [0, 0], sizes = [2, 32], strides = [1, 1]} : vector<2x96xf32> to vector<2x32xf32>
    %269 = arith.mulf %268, %265 : vector<2x32xf32>
    %270 = arith.addf %267, %269 : vector<2x32xf32>
    %271 = vector.extract_strided_slice %263 {offsets = [0, 64], sizes = [2, 32], strides = [1, 1]} : vector<2x96xf32> to vector<2x32xf32>
    %272 = math.tanh %270 : vector<2x32xf32>
    %273 = arith.mulf %271, %272 : vector<2x32xf32>
    %274 = tpu.concatenate %213, %233, %253, %273 in 0 : vector<2x32xf32>, vector<2x32xf32>, vector<2x32xf32>, vector<2x32xf32> -> vector<8x32xf32>
    %275 = arith.index_cast %191 : i32 to index
    %c0_48 = arith.constant 0 : index
    %276 = vector.load %arg12[%275, %c0_48] : memref<32x32xf32, #tpu.memory_space<vmem>>, vector<8x32xf32>
    tpu.vector_store %arg12[%275, %c0_48], %274 {strides = array<i32>} : memref<32x32xf32, #tpu.memory_space<vmem>>, vector<8x32xf32>,
    %c3_i32 = arith.constant 3 : i32
    %c8_i32_49 = arith.constant 8 : i32
    %277 = arith.muli %c3_i32, %c8_i32_49 : i32
    %278 = tpu.assume_multiple %277, 8 : i32
    %279 = arith.index_cast %278 : i32 to index
    %c0_50 = arith.constant 0 : index
    %280 = vector.load %arg11[%279, %c0_50] : memref<32x128xf32, #tpu.memory_space<vmem>>, vector<8x128xf32>
    %281 = vector.extract_strided_slice %280 {offsets = [0, 0], sizes = [2, 128], strides = [1, 1]} : vector<8x128xf32> to vector<2x128xf32>
    %282 = arith.truncf %273 : vector<2x32xf32> to vector<2x32xbf16>
    %cst_51 = arith.constant dense<0.000000e+00> : vector<2x128xf32>
    %283 = tpu.matmul %282, %11, %cst_51 {dimension_numbers = #tpu.dot_dimension_numbers<[1], [0], [0], [1], [0, 0, 1, 1], [], []>} : vector<2x32xbf16>, vector<32x128xbf16>, vector<2x128xf32> -> vector<2x128xf32>
    %284 = arith.addf %281, %283 : vector<2x128xf32>
    %285 = vector.extract_strided_slice %284 {offsets = [0, 0], sizes = [2, 96], strides = [1, 1]} : vector<2x128xf32> to vector<2x96xf32>
    %286 = arith.negf %285 : vector<2x96xf32>
    %287 = math.exp %286 : vector<2x96xf32>
    %cst_52 = arith.constant 1.000000e+00 : f32
    %288 = vector.broadcast %cst_52 : f32 to vector<2x96xf32>
    %289 = arith.addf %288, %287 : vector<2x96xf32>
    %290 = arith.divf %288, %289 : vector<2x96xf32>
    %291 = vector.extract_strided_slice %284 {offsets = [0, 96], sizes = [2, 32], strides = [1, 1]} : vector<2x128xf32> to vector<2x32xf32>
    %292 = math.tanh %291 : vector<2x32xf32>
    %293 = vector.extract_strided_slice %290 {offsets = [0, 32], sizes = [2, 32], strides = [1, 1]} : vector<2x96xf32> to vector<2x32xf32>
    %294 = arith.mulf %293, %270 : vector<2x32xf32>
    %295 = vector.extract_strided_slice %290 {offsets = [0, 0], sizes = [2, 32], strides = [1, 1]} : vector<2x96xf32> to vector<2x32xf32>
    %296 = arith.mulf %295, %292 : vector<2x32xf32>
    %297 = arith.addf %294, %296 : vector<2x32xf32>
    %298 = vector.extract_strided_slice %290 {offsets = [0, 64], sizes = [2, 32], strides = [1, 1]} : vector<2x96xf32> to vector<2x32xf32>
    %299 = math.tanh %297 : vector<2x32xf32>
    %300 = arith.mulf %298, %299 : vector<2x32xf32>
    %301 = vector.extract_strided_slice %280 {offsets = [2, 0], sizes = [2, 128], strides = [1, 1]} : vector<8x128xf32> to vector<2x128xf32>
    %302 = arith.truncf %300 : vector<2x32xf32> to vector<2x32xbf16>
    %cst_53 = arith.constant dense<0.000000e+00> : vector<2x128xf32>
    %303 = tpu.matmul %302, %11, %cst_53 {dimension_numbers = #tpu.dot_dimension_numbers<[1], [0], [0], [1], [0, 0, 1, 1], [], []>} : vector<2x32xbf16>, vector<32x128xbf16>, vector<2x128xf32> -> vector<2x128xf32>
    %304 = arith.addf %301, %303 : vector<2x128xf32>
    %305 = vector.extract_strided_slice %304 {offsets = [0, 0], sizes = [2, 96], strides = [1, 1]} : vector<2x128xf32> to vector<2x96xf32>
    %306 = arith.negf %305 : vector<2x96xf32>
    %307 = math.exp %306 : vector<2x96xf32>
    %cst_54 = arith.constant 1.000000e+00 : f32
    %308 = vector.broadcast %cst_54 : f32 to vector<2x96xf32>
    %309 = arith.addf %308, %307 : vector<2x96xf32>
    %310 = arith.divf %308, %309 : vector<2x96xf32>
    %311 = vector.extract_strided_slice %304 {offsets = [0, 96], sizes = [2, 32], strides = [1, 1]} : vector<2x128xf32> to vector<2x32xf32>
    %312 = math.tanh %311 : vector<2x32xf32>
    %313 = vector.extract_strided_slice %310 {offsets = [0, 32], sizes = [2, 32], strides = [1, 1]} : vector<2x96xf32> to vector<2x32xf32>
    %314 = arith.mulf %313, %297 : vector<2x32xf32>
    %315 = vector.extract_strided_slice %310 {offsets = [0, 0], sizes = [2, 32], strides = [1, 1]} : vector<2x96xf32> to vector<2x32xf32>
    %316 = arith.mulf %315, %312 : vector<2x32xf32>
    %317 = arith.addf %314, %316 : vector<2x32xf32>
    %318 = vector.extract_strided_slice %310 {offsets = [0, 64], sizes = [2, 32], strides = [1, 1]} : vector<2x96xf32> to vector<2x32xf32>
    %319 = math.tanh %317 : vector<2x32xf32>
    %320 = arith.mulf %318, %319 : vector<2x32xf32>
    %321 = vector.extract_strided_slice %280 {offsets = [4, 0], sizes = [2, 128], strides = [1, 1]} : vector<8x128xf32> to vector<2x128xf32>
    %322 = arith.truncf %320 : vector<2x32xf32> to vector<2x32xbf16>
    %cst_55 = arith.constant dense<0.000000e+00> : vector<2x128xf32>
    %323 = tpu.matmul %322, %11, %cst_55 {dimension_numbers = #tpu.dot_dimension_numbers<[1], [0], [0], [1], [0, 0, 1, 1], [], []>} : vector<2x32xbf16>, vector<32x128xbf16>, vector<2x128xf32> -> vector<2x128xf32>
    %324 = arith.addf %321, %323 : vector<2x128xf32>
    %325 = vector.extract_strided_slice %324 {offsets = [0, 0], sizes = [2, 96], strides = [1, 1]} : vector<2x128xf32> to vector<2x96xf32>
    %326 = arith.negf %325 : vector<2x96xf32>
    %327 = math.exp %326 : vector<2x96xf32>
    %cst_56 = arith.constant 1.000000e+00 : f32
    %328 = vector.broadcast %cst_56 : f32 to vector<2x96xf32>
    %329 = arith.addf %328, %327 : vector<2x96xf32>
    %330 = arith.divf %328, %329 : vector<2x96xf32>
    %331 = vector.extract_strided_slice %324 {offsets = [0, 96], sizes = [2, 32], strides = [1, 1]} : vector<2x128xf32> to vector<2x32xf32>
    %332 = math.tanh %331 : vector<2x32xf32>
    %333 = vector.extract_strided_slice %330 {offsets = [0, 32], sizes = [2, 32], strides = [1, 1]} : vector<2x96xf32> to vector<2x32xf32>
    %334 = arith.mulf %333, %317 : vector<2x32xf32>
    %335 = vector.extract_strided_slice %330 {offsets = [0, 0], sizes = [2, 32], strides = [1, 1]} : vector<2x96xf32> to vector<2x32xf32>
    %336 = arith.mulf %335, %332 : vector<2x32xf32>
    %337 = arith.addf %334, %336 : vector<2x32xf32>
    %338 = vector.extract_strided_slice %330 {offsets = [0, 64], sizes = [2, 32], strides = [1, 1]} : vector<2x96xf32> to vector<2x32xf32>
    %339 = math.tanh %337 : vector<2x32xf32>
    %340 = arith.mulf %338, %339 : vector<2x32xf32>
    %341 = vector.extract_strided_slice %280 {offsets = [6, 0], sizes = [2, 128], strides = [1, 1]} : vector<8x128xf32> to vector<2x128xf32>
    %342 = arith.truncf %340 : vector<2x32xf32> to vector<2x32xbf16>
    %cst_57 = arith.constant dense<0.000000e+00> : vector<2x128xf32>
    %343 = tpu.matmul %342, %11, %cst_57 {dimension_numbers = #tpu.dot_dimension_numbers<[1], [0], [0], [1], [0, 0, 1, 1], [], []>} : vector<2x32xbf16>, vector<32x128xbf16>, vector<2x128xf32> -> vector<2x128xf32>
    %344 = arith.addf %341, %343 : vector<2x128xf32>
    %345 = vector.extract_strided_slice %344 {offsets = [0, 0], sizes = [2, 96], strides = [1, 1]} : vector<2x128xf32> to vector<2x96xf32>
    %346 = arith.negf %345 : vector<2x96xf32>
    %347 = math.exp %346 : vector<2x96xf32>
    %cst_58 = arith.constant 1.000000e+00 : f32
    %348 = vector.broadcast %cst_58 : f32 to vector<2x96xf32>
    %349 = arith.addf %348, %347 : vector<2x96xf32>
    %350 = arith.divf %348, %349 : vector<2x96xf32>
    %351 = vector.extract_strided_slice %344 {offsets = [0, 96], sizes = [2, 32], strides = [1, 1]} : vector<2x128xf32> to vector<2x32xf32>
    %352 = math.tanh %351 : vector<2x32xf32>
    %353 = vector.extract_strided_slice %350 {offsets = [0, 32], sizes = [2, 32], strides = [1, 1]} : vector<2x96xf32> to vector<2x32xf32>
    %354 = arith.mulf %353, %337 : vector<2x32xf32>
    %355 = vector.extract_strided_slice %350 {offsets = [0, 0], sizes = [2, 32], strides = [1, 1]} : vector<2x96xf32> to vector<2x32xf32>
    %356 = arith.mulf %355, %352 : vector<2x32xf32>
    %357 = arith.addf %354, %356 : vector<2x32xf32>
    %358 = vector.extract_strided_slice %350 {offsets = [0, 64], sizes = [2, 32], strides = [1, 1]} : vector<2x96xf32> to vector<2x32xf32>
    %359 = math.tanh %357 : vector<2x32xf32>
    %360 = arith.mulf %358, %359 : vector<2x32xf32>
    %361 = tpu.concatenate %300, %320, %340, %360 in 0 : vector<2x32xf32>, vector<2x32xf32>, vector<2x32xf32>, vector<2x32xf32> -> vector<8x32xf32>
    %362 = arith.index_cast %278 : i32 to index
    %c0_59 = arith.constant 0 : index
    %363 = vector.load %arg12[%362, %c0_59] : memref<32x32xf32, #tpu.memory_space<vmem>>, vector<8x32xf32>
    tpu.vector_store %arg12[%362, %c0_59], %361 {strides = array<i32>} : memref<32x32xf32, #tpu.memory_space<vmem>>, vector<8x32xf32>,
    %c4_i32 = arith.constant 4 : i32
    %c0_60 = arith.constant 0 : index
    %c0_61 = arith.constant 0 : index
    %c0_62 = arith.constant 0 : index
    %364 = vector.load %arg9[%c0_60, %c0_61, %c0_62] : memref<2x2x32xf32, #tpu.memory_space<vmem>>, vector<1x2x32xf32>
    %365 = vector.shape_cast %364 : vector<1x2x32xf32> to vector<2x32xf32>
    %366 = vector.shape_cast %360 : vector<2x32xf32> to vector<1x2x32xf32>
    tpu.vector_store %arg9[%c0_60, %c0_61, %c0_62], %366 {strides = array<i32>} : memref<2x2x32xf32, #tpu.memory_space<vmem>>, vector<1x2x32xf32>,
    %c0_63 = arith.constant 0 : index
    %c0_64 = arith.constant 0 : index
    %c0_65 = arith.constant 0 : index
    %367 = vector.load %arg10[%c0_63, %c0_64, %c0_65] : memref<2x2x32xf32, #tpu.memory_space<vmem>>, vector<1x2x32xf32>
    %368 = vector.shape_cast %367 : vector<1x2x32xf32> to vector<2x32xf32>
    %369 = vector.shape_cast %357 : vector<2x32xf32> to vector<1x2x32xf32>
    tpu.vector_store %arg10[%c0_63, %c0_64, %c0_65], %369 {strides = array<i32>} : memref<2x2x32xf32, #tpu.memory_space<vmem>>, vector<1x2x32xf32>,
    %c0_66 = arith.constant 0 : index
    %c0_67 = arith.constant 0 : index
    %370 = vector.load %arg12[%c0_66, %c0_67] : memref<32x32xf32, #tpu.memory_space<vmem>>, vector<32x32xf32>
    %371 = arith.truncf %370 : vector<32x32xf32> to vector<32x32xbf16>
    %c0_68 = arith.constant 0 : index
    %c0_69 = arith.constant 0 : index
    %372 = vector.load %arg3[%c0_68, %c0_69] : memref<32x128xbf16, #tpu.memory_space<vmem>>, vector<32x128xbf16>
    %cst_70 = arith.constant dense<0.000000e+00> : vector<32x128xf32>
    %373 = tpu.matmul %371, %372, %cst_70 {dimension_numbers = #tpu.dot_dimension_numbers<[1], [0], [0], [1], [0, 0, 1, 1], [], []>} : vector<32x32xbf16>, vector<32x128xbf16>, vector<32x128xf32> -> vector<32x128xf32>
    %c0_71 = arith.constant 0 : index
    %c0_72 = arith.constant 0 : index
    %374 = vector.load %arg7[%c0_71, %c0_72] : memref<1x128xf32, #tpu.memory_space<vmem>>, vector<1x128xf32>
    %375 = vector.broadcast %374 : vector<1x128xf32> to vector<32x128xf32>
    %376 = arith.addf %373, %375 : vector<32x128xf32>
    %c0_73 = arith.constant 0 : index
    %c0_74 = arith.constant 0 : index
    %377 = vector.load %arg11[%c0_73, %c0_74] : memref<32x128xf32, #tpu.memory_space<vmem>>, vector<32x128xf32>
    tpu.vector_store %arg11[%c0_73, %c0_74], %376 {strides = array<i32>} : memref<32x128xf32, #tpu.memory_space<vmem>>, vector<32x128xf32>,
    %c0_75 = arith.constant 0 : index
    %c0_76 = arith.constant 0 : index
    %378 = vector.load %arg5[%c0_75, %c0_76] : memref<32x128xbf16, #tpu.memory_space<vmem>>, vector<32x128xbf16>
    %c1 = arith.constant 1 : index
    %c0_77 = arith.constant 0 : index
    %c0_78 = arith.constant 0 : index
    %379 = vector.load %arg9[%c1, %c0_77, %c0_78] : memref<2x2x32xf32, #tpu.memory_space<vmem>>, vector<1x2x32xf32>
    %380 = vector.shape_cast %379 : vector<1x2x32xf32> to vector<2x32xf32>
    %c1_79 = arith.constant 1 : index
    %c0_80 = arith.constant 0 : index
    %c0_81 = arith.constant 0 : index
    %381 = vector.load %arg10[%c1_79, %c0_80, %c0_81] : memref<2x2x32xf32, #tpu.memory_space<vmem>>, vector<1x2x32xf32>
    %382 = vector.shape_cast %381 : vector<1x2x32xf32> to vector<2x32xf32>
    %c0_i32_82 = arith.constant 0 : i32
    %c8_i32_83 = arith.constant 8 : i32
    %383 = arith.muli %c0_i32_82, %c8_i32_83 : i32
    %384 = tpu.assume_multiple %383, 8 : i32
    %385 = arith.index_cast %384 : i32 to index
    %c0_84 = arith.constant 0 : index
    %386 = vector.load %arg11[%385, %c0_84] : memref<32x128xf32, #tpu.memory_space<vmem>>, vector<8x128xf32>
    %387 = vector.extract_strided_slice %386 {offsets = [0, 0], sizes = [2, 128], strides = [1, 1]} : vector<8x128xf32> to vector<2x128xf32>
    %388 = arith.truncf %380 : vector<2x32xf32> to vector<2x32xbf16>
    %cst_85 = arith.constant dense<0.000000e+00> : vector<2x128xf32>
    %389 = tpu.matmul %388, %378, %cst_85 {dimension_numbers = #tpu.dot_dimension_numbers<[1], [0], [0], [1], [0, 0, 1, 1], [], []>} : vector<2x32xbf16>, vector<32x128xbf16>, vector<2x128xf32> -> vector<2x128xf32>
    %390 = arith.addf %387, %389 : vector<2x128xf32>
    %391 = vector.extract_strided_slice %390 {offsets = [0, 0], sizes = [2, 96], strides = [1, 1]} : vector<2x128xf32> to vector<2x96xf32>
    %392 = arith.negf %391 : vector<2x96xf32>
    %393 = math.exp %392 : vector<2x96xf32>
    %cst_86 = arith.constant 1.000000e+00 : f32
    %394 = vector.broadcast %cst_86 : f32 to vector<2x96xf32>
    %395 = arith.addf %394, %393 : vector<2x96xf32>
    %396 = arith.divf %394, %395 : vector<2x96xf32>
    %397 = vector.extract_strided_slice %390 {offsets = [0, 96], sizes = [2, 32], strides = [1, 1]} : vector<2x128xf32> to vector<2x32xf32>
    %398 = math.tanh %397 : vector<2x32xf32>
    %399 = vector.extract_strided_slice %396 {offsets = [0, 32], sizes = [2, 32], strides = [1, 1]} : vector<2x96xf32> to vector<2x32xf32>
    %400 = arith.mulf %399, %382 : vector<2x32xf32>
    %401 = vector.extract_strided_slice %396 {offsets = [0, 0], sizes = [2, 32], strides = [1, 1]} : vector<2x96xf32> to vector<2x32xf32>
    %402 = arith.mulf %401, %398 : vector<2x32xf32>
    %403 = arith.addf %400, %402 : vector<2x32xf32>
    %404 = vector.extract_strided_slice %396 {offsets = [0, 64], sizes = [2, 32], strides = [1, 1]} : vector<2x96xf32> to vector<2x32xf32>
    %405 = math.tanh %403 : vector<2x32xf32>
    %406 = arith.mulf %404, %405 : vector<2x32xf32>
    %407 = vector.extract_strided_slice %386 {offsets = [2, 0], sizes = [2, 128], strides = [1, 1]} : vector<8x128xf32> to vector<2x128xf32>
    %408 = arith.truncf %406 : vector<2x32xf32> to vector<2x32xbf16>
    %cst_87 = arith.constant dense<0.000000e+00> : vector<2x128xf32>
    %409 = tpu.matmul %408, %378, %cst_87 {dimension_numbers = #tpu.dot_dimension_numbers<[1], [0], [0], [1], [0, 0, 1, 1], [], []>} : vector<2x32xbf16>, vector<32x128xbf16>, vector<2x128xf32> -> vector<2x128xf32>
    %410 = arith.addf %407, %409 : vector<2x128xf32>
    %411 = vector.extract_strided_slice %410 {offsets = [0, 0], sizes = [2, 96], strides = [1, 1]} : vector<2x128xf32> to vector<2x96xf32>
    %412 = arith.negf %411 : vector<2x96xf32>
    %413 = math.exp %412 : vector<2x96xf32>
    %cst_88 = arith.constant 1.000000e+00 : f32
    %414 = vector.broadcast %cst_88 : f32 to vector<2x96xf32>
    %415 = arith.addf %414, %413 : vector<2x96xf32>
    %416 = arith.divf %414, %415 : vector<2x96xf32>
    %417 = vector.extract_strided_slice %410 {offsets = [0, 96], sizes = [2, 32], strides = [1, 1]} : vector<2x128xf32> to vector<2x32xf32>
    %418 = math.tanh %417 : vector<2x32xf32>
    %419 = vector.extract_strided_slice %416 {offsets = [0, 32], sizes = [2, 32], strides = [1, 1]} : vector<2x96xf32> to vector<2x32xf32>
    %420 = arith.mulf %419, %403 : vector<2x32xf32>
    %421 = vector.extract_strided_slice %416 {offsets = [0, 0], sizes = [2, 32], strides = [1, 1]} : vector<2x96xf32> to vector<2x32xf32>
    %422 = arith.mulf %421, %418 : vector<2x32xf32>
    %423 = arith.addf %420, %422 : vector<2x32xf32>
    %424 = vector.extract_strided_slice %416 {offsets = [0, 64], sizes = [2, 32], strides = [1, 1]} : vector<2x96xf32> to vector<2x32xf32>
    %425 = math.tanh %423 : vector<2x32xf32>
    %426 = arith.mulf %424, %425 : vector<2x32xf32>
    %427 = vector.extract_strided_slice %386 {offsets = [4, 0], sizes = [2, 128], strides = [1, 1]} : vector<8x128xf32> to vector<2x128xf32>
    %428 = arith.truncf %426 : vector<2x32xf32> to vector<2x32xbf16>
    %cst_89 = arith.constant dense<0.000000e+00> : vector<2x128xf32>
    %429 = tpu.matmul %428, %378, %cst_89 {dimension_numbers = #tpu.dot_dimension_numbers<[1], [0], [0], [1], [0, 0, 1, 1], [], []>} : vector<2x32xbf16>, vector<32x128xbf16>, vector<2x128xf32> -> vector<2x128xf32>
    %430 = arith.addf %427, %429 : vector<2x128xf32>
    %431 = vector.extract_strided_slice %430 {offsets = [0, 0], sizes = [2, 96], strides = [1, 1]} : vector<2x128xf32> to vector<2x96xf32>
    %432 = arith.negf %431 : vector<2x96xf32>
    %433 = math.exp %432 : vector<2x96xf32>
    %cst_90 = arith.constant 1.000000e+00 : f32
    %434 = vector.broadcast %cst_90 : f32 to vector<2x96xf32>
    %435 = arith.addf %434, %433 : vector<2x96xf32>
    %436 = arith.divf %434, %435 : vector<2x96xf32>
    %437 = vector.extract_strided_slice %430 {offsets = [0, 96], sizes = [2, 32], strides = [1, 1]} : vector<2x128xf32> to vector<2x32xf32>
    %438 = math.tanh %437 : vector<2x32xf32>
    %439 = vector.extract_strided_slice %436 {offsets = [0, 32], sizes = [2, 32], strides = [1, 1]} : vector<2x96xf32> to vector<2x32xf32>
    %440 = arith.mulf %439, %423 : vector<2x32xf32>
    %441 = vector.extract_strided_slice %436 {offsets = [0, 0], sizes = [2, 32], strides = [1, 1]} : vector<2x96xf32> to vector<2x32xf32>
    %442 = arith.mulf %441, %438 : vector<2x32xf32>
    %443 = arith.addf %440, %442 : vector<2x32xf32>
    %444 = vector.extract_strided_slice %436 {offsets = [0, 64], sizes = [2, 32], strides = [1, 1]} : vector<2x96xf32> to vector<2x32xf32>
    %445 = math.tanh %443 : vector<2x32xf32>
    %446 = arith.mulf %444, %445 : vector<2x32xf32>
    %447 = vector.extract_strided_slice %386 {offsets = [6, 0], sizes = [2, 128], strides = [1, 1]} : vector<8x128xf32> to vector<2x128xf32>
    %448 = arith.truncf %446 : vector<2x32xf32> to vector<2x32xbf16>
    %cst_91 = arith.constant dense<0.000000e+00> : vector<2x128xf32>
    %449 = tpu.matmul %448, %378, %cst_91 {dimension_numbers = #tpu.dot_dimension_numbers<[1], [0], [0], [1], [0, 0, 1, 1], [], []>} : vector<2x32xbf16>, vector<32x128xbf16>, vector<2x128xf32> -> vector<2x128xf32>
    %450 = arith.addf %447, %449 : vector<2x128xf32>
    %451 = vector.extract_strided_slice %450 {offsets = [0, 0], sizes = [2, 96], strides = [1, 1]} : vector<2x128xf32> to vector<2x96xf32>
    %452 = arith.negf %451 : vector<2x96xf32>
    %453 = math.exp %452 : vector<2x96xf32>
    %cst_92 = arith.constant 1.000000e+00 : f32
    %454 = vector.broadcast %cst_92 : f32 to vector<2x96xf32>
    %455 = arith.addf %454, %453 : vector<2x96xf32>
    %456 = arith.divf %454, %455 : vector<2x96xf32>
    %457 = vector.extract_strided_slice %450 {offsets = [0, 96], sizes = [2, 32], strides = [1, 1]} : vector<2x128xf32> to vector<2x32xf32>
    %458 = math.tanh %457 : vector<2x32xf32>
    %459 = vector.extract_strided_slice %456 {offsets = [0, 32], sizes = [2, 32], strides = [1, 1]} : vector<2x96xf32> to vector<2x32xf32>
    %460 = arith.mulf %459, %443 : vector<2x32xf32>
    %461 = vector.extract_strided_slice %456 {offsets = [0, 0], sizes = [2, 32], strides = [1, 1]} : vector<2x96xf32> to vector<2x32xf32>
    %462 = arith.mulf %461, %458 : vector<2x32xf32>
    %463 = arith.addf %460, %462 : vector<2x32xf32>
    %464 = vector.extract_strided_slice %456 {offsets = [0, 64], sizes = [2, 32], strides = [1, 1]} : vector<2x96xf32> to vector<2x32xf32>
    %465 = math.tanh %463 : vector<2x32xf32>
    %466 = arith.mulf %464, %465 : vector<2x32xf32>
    %467 = tpu.concatenate %406, %426, %446, %466 in 0 : vector<2x32xf32>, vector<2x32xf32>, vector<2x32xf32>, vector<2x32xf32> -> vector<8x32xf32>
    %468 = arith.index_cast %384 : i32 to index
    %c0_93 = arith.constant 0 : index
    %469 = vector.load %arg8[%468, %c0_93] : memref<32x32xf32, #tpu.memory_space<vmem>>, vector<8x32xf32>
    tpu.vector_store %arg8[%468, %c0_93], %467 {strides = array<i32>} : memref<32x32xf32, #tpu.memory_space<vmem>>, vector<8x32xf32>,
    %c1_i32_94 = arith.constant 1 : i32
    %c8_i32_95 = arith.constant 8 : i32
    %470 = arith.muli %c1_i32_94, %c8_i32_95 : i32
    %471 = tpu.assume_multiple %470, 8 : i32
    %472 = arith.index_cast %471 : i32 to index
    %c0_96 = arith.constant 0 : index
    %473 = vector.load %arg11[%472, %c0_96] : memref<32x128xf32, #tpu.memory_space<vmem>>, vector<8x128xf32>
    %474 = vector.extract_strided_slice %473 {offsets = [0, 0], sizes = [2, 128], strides = [1, 1]} : vector<8x128xf32> to vector<2x128xf32>
    %475 = arith.truncf %466 : vector<2x32xf32> to vector<2x32xbf16>
    %cst_97 = arith.constant dense<0.000000e+00> : vector<2x128xf32>
    %476 = tpu.matmul %475, %378, %cst_97 {dimension_numbers = #tpu.dot_dimension_numbers<[1], [0], [0], [1], [0, 0, 1, 1], [], []>} : vector<2x32xbf16>, vector<32x128xbf16>, vector<2x128xf32> -> vector<2x128xf32>
    %477 = arith.addf %474, %476 : vector<2x128xf32>
    %478 = vector.extract_strided_slice %477 {offsets = [0, 0], sizes = [2, 96], strides = [1, 1]} : vector<2x128xf32> to vector<2x96xf32>
    %479 = arith.negf %478 : vector<2x96xf32>
    %480 = math.exp %479 : vector<2x96xf32>
    %cst_98 = arith.constant 1.000000e+00 : f32
    %481 = vector.broadcast %cst_98 : f32 to vector<2x96xf32>
    %482 = arith.addf %481, %480 : vector<2x96xf32>
    %483 = arith.divf %481, %482 : vector<2x96xf32>
    %484 = vector.extract_strided_slice %477 {offsets = [0, 96], sizes = [2, 32], strides = [1, 1]} : vector<2x128xf32> to vector<2x32xf32>
    %485 = math.tanh %484 : vector<2x32xf32>
    %486 = vector.extract_strided_slice %483 {offsets = [0, 32], sizes = [2, 32], strides = [1, 1]} : vector<2x96xf32> to vector<2x32xf32>
    %487 = arith.mulf %486, %463 : vector<2x32xf32>
    %488 = vector.extract_strided_slice %483 {offsets = [0, 0], sizes = [2, 32], strides = [1, 1]} : vector<2x96xf32> to vector<2x32xf32>
    %489 = arith.mulf %488, %485 : vector<2x32xf32>
    %490 = arith.addf %487, %489 : vector<2x32xf32>
    %491 = vector.extract_strided_slice %483 {offsets = [0, 64], sizes = [2, 32], strides = [1, 1]} : vector<2x96xf32> to vector<2x32xf32>
    %492 = math.tanh %490 : vector<2x32xf32>
    %493 = arith.mulf %491, %492 : vector<2x32xf32>
    %494 = vector.extract_strided_slice %473 {offsets = [2, 0], sizes = [2, 128], strides = [1, 1]} : vector<8x128xf32> to vector<2x128xf32>
    %495 = arith.truncf %493 : vector<2x32xf32> to vector<2x32xbf16>
    %cst_99 = arith.constant dense<0.000000e+00> : vector<2x128xf32>
    %496 = tpu.matmul %495, %378, %cst_99 {dimension_numbers = #tpu.dot_dimension_numbers<[1], [0], [0], [1], [0, 0, 1, 1], [], []>} : vector<2x32xbf16>, vector<32x128xbf16>, vector<2x128xf32> -> vector<2x128xf32>
    %497 = arith.addf %494, %496 : vector<2x128xf32>
    %498 = vector.extract_strided_slice %497 {offsets = [0, 0], sizes = [2, 96], strides = [1, 1]} : vector<2x128xf32> to vector<2x96xf32>
    %499 = arith.negf %498 : vector<2x96xf32>
    %500 = math.exp %499 : vector<2x96xf32>
    %cst_100 = arith.constant 1.000000e+00 : f32
    %501 = vector.broadcast %cst_100 : f32 to vector<2x96xf32>
    %502 = arith.addf %501, %500 : vector<2x96xf32>
    %503 = arith.divf %501, %502 : vector<2x96xf32>
    %504 = vector.extract_strided_slice %497 {offsets = [0, 96], sizes = [2, 32], strides = [1, 1]} : vector<2x128xf32> to vector<2x32xf32>
    %505 = math.tanh %504 : vector<2x32xf32>
    %506 = vector.extract_strided_slice %503 {offsets = [0, 32], sizes = [2, 32], strides = [1, 1]} : vector<2x96xf32> to vector<2x32xf32>
    %507 = arith.mulf %506, %490 : vector<2x32xf32>
    %508 = vector.extract_strided_slice %503 {offsets = [0, 0], sizes = [2, 32], strides = [1, 1]} : vector<2x96xf32> to vector<2x32xf32>
    %509 = arith.mulf %508, %505 : vector<2x32xf32>
    %510 = arith.addf %507, %509 : vector<2x32xf32>
    %511 = vector.extract_strided_slice %503 {offsets = [0, 64], sizes = [2, 32], strides = [1, 1]} : vector<2x96xf32> to vector<2x32xf32>
    %512 = math.tanh %510 : vector<2x32xf32>
    %513 = arith.mulf %511, %512 : vector<2x32xf32>
    %514 = vector.extract_strided_slice %473 {offsets = [4, 0], sizes = [2, 128], strides = [1, 1]} : vector<8x128xf32> to vector<2x128xf32>
    %515 = arith.truncf %513 : vector<2x32xf32> to vector<2x32xbf16>
    %cst_101 = arith.constant dense<0.000000e+00> : vector<2x128xf32>
    %516 = tpu.matmul %515, %378, %cst_101 {dimension_numbers = #tpu.dot_dimension_numbers<[1], [0], [0], [1], [0, 0, 1, 1], [], []>} : vector<2x32xbf16>, vector<32x128xbf16>, vector<2x128xf32> -> vector<2x128xf32>
    %517 = arith.addf %514, %516 : vector<2x128xf32>
    %518 = vector.extract_strided_slice %517 {offsets = [0, 0], sizes = [2, 96], strides = [1, 1]} : vector<2x128xf32> to vector<2x96xf32>
    %519 = arith.negf %518 : vector<2x96xf32>
    %520 = math.exp %519 : vector<2x96xf32>
    %cst_102 = arith.constant 1.000000e+00 : f32
    %521 = vector.broadcast %cst_102 : f32 to vector<2x96xf32>
    %522 = arith.addf %521, %520 : vector<2x96xf32>
    %523 = arith.divf %521, %522 : vector<2x96xf32>
    %524 = vector.extract_strided_slice %517 {offsets = [0, 96], sizes = [2, 32], strides = [1, 1]} : vector<2x128xf32> to vector<2x32xf32>
    %525 = math.tanh %524 : vector<2x32xf32>
    %526 = vector.extract_strided_slice %523 {offsets = [0, 32], sizes = [2, 32], strides = [1, 1]} : vector<2x96xf32> to vector<2x32xf32>
    %527 = arith.mulf %526, %510 : vector<2x32xf32>
    %528 = vector.extract_strided_slice %523 {offsets = [0, 0], sizes = [2, 32], strides = [1, 1]} : vector<2x96xf32> to vector<2x32xf32>
    %529 = arith.mulf %528, %525 : vector<2x32xf32>
    %530 = arith.addf %527, %529 : vector<2x32xf32>
    %531 = vector.extract_strided_slice %523 {offsets = [0, 64], sizes = [2, 32], strides = [1, 1]} : vector<2x96xf32> to vector<2x32xf32>
    %532 = math.tanh %530 : vector<2x32xf32>
    %533 = arith.mulf %531, %532 : vector<2x32xf32>
    %534 = vector.extract_strided_slice %473 {offsets = [6, 0], sizes = [2, 128], strides = [1, 1]} : vector<8x128xf32> to vector<2x128xf32>
    %535 = arith.truncf %533 : vector<2x32xf32> to vector<2x32xbf16>
    %cst_103 = arith.constant dense<0.000000e+00> : vector<2x128xf32>
    %536 = tpu.matmul %535, %378, %cst_103 {dimension_numbers = #tpu.dot_dimension_numbers<[1], [0], [0], [1], [0, 0, 1, 1], [], []>} : vector<2x32xbf16>, vector<32x128xbf16>, vector<2x128xf32> -> vector<2x128xf32>
    %537 = arith.addf %534, %536 : vector<2x128xf32>
    %538 = vector.extract_strided_slice %537 {offsets = [0, 0], sizes = [2, 96], strides = [1, 1]} : vector<2x128xf32> to vector<2x96xf32>
    %539 = arith.negf %538 : vector<2x96xf32>
    %540 = math.exp %539 : vector<2x96xf32>
    %cst_104 = arith.constant 1.000000e+00 : f32
    %541 = vector.broadcast %cst_104 : f32 to vector<2x96xf32>
    %542 = arith.addf %541, %540 : vector<2x96xf32>
    %543 = arith.divf %541, %542 : vector<2x96xf32>
    %544 = vector.extract_strided_slice %537 {offsets = [0, 96], sizes = [2, 32], strides = [1, 1]} : vector<2x128xf32> to vector<2x32xf32>
    %545 = math.tanh %544 : vector<2x32xf32>
    %546 = vector.extract_strided_slice %543 {offsets = [0, 32], sizes = [2, 32], strides = [1, 1]} : vector<2x96xf32> to vector<2x32xf32>
    %547 = arith.mulf %546, %530 : vector<2x32xf32>
    %548 = vector.extract_strided_slice %543 {offsets = [0, 0], sizes = [2, 32], strides = [1, 1]} : vector<2x96xf32> to vector<2x32xf32>
    %549 = arith.mulf %548, %545 : vector<2x32xf32>
    %550 = arith.addf %547, %549 : vector<2x32xf32>
    %551 = vector.extract_strided_slice %543 {offsets = [0, 64], sizes = [2, 32], strides = [1, 1]} : vector<2x96xf32> to vector<2x32xf32>
    %552 = math.tanh %550 : vector<2x32xf32>
    %553 = arith.mulf %551, %552 : vector<2x32xf32>
    %554 = tpu.concatenate %493, %513, %533, %553 in 0 : vector<2x32xf32>, vector<2x32xf32>, vector<2x32xf32>, vector<2x32xf32> -> vector<8x32xf32>
    %555 = arith.index_cast %471 : i32 to index
    %c0_105 = arith.constant 0 : index
    %556 = vector.load %arg8[%555, %c0_105] : memref<32x32xf32, #tpu.memory_space<vmem>>, vector<8x32xf32>
    tpu.vector_store %arg8[%555, %c0_105], %554 {strides = array<i32>} : memref<32x32xf32, #tpu.memory_space<vmem>>, vector<8x32xf32>,
    %c2_i32_106 = arith.constant 2 : i32
    %c8_i32_107 = arith.constant 8 : i32
    %557 = arith.muli %c2_i32_106, %c8_i32_107 : i32
    %558 = tpu.assume_multiple %557, 8 : i32
    %559 = arith.index_cast %558 : i32 to index
    %c0_108 = arith.constant 0 : index
    %560 = vector.load %arg11[%559, %c0_108] : memref<32x128xf32, #tpu.memory_space<vmem>>, vector<8x128xf32>
    %561 = vector.extract_strided_slice %560 {offsets = [0, 0], sizes = [2, 128], strides = [1, 1]} : vector<8x128xf32> to vector<2x128xf32>
    %562 = arith.truncf %553 : vector<2x32xf32> to vector<2x32xbf16>
    %cst_109 = arith.constant dense<0.000000e+00> : vector<2x128xf32>
    %563 = tpu.matmul %562, %378, %cst_109 {dimension_numbers = #tpu.dot_dimension_numbers<[1], [0], [0], [1], [0, 0, 1, 1], [], []>} : vector<2x32xbf16>, vector<32x128xbf16>, vector<2x128xf32> -> vector<2x128xf32>
    %564 = arith.addf %561, %563 : vector<2x128xf32>
    %565 = vector.extract_strided_slice %564 {offsets = [0, 0], sizes = [2, 96], strides = [1, 1]} : vector<2x128xf32> to vector<2x96xf32>
    %566 = arith.negf %565 : vector<2x96xf32>
    %567 = math.exp %566 : vector<2x96xf32>
    %cst_110 = arith.constant 1.000000e+00 : f32
    %568 = vector.broadcast %cst_110 : f32 to vector<2x96xf32>
    %569 = arith.addf %568, %567 : vector<2x96xf32>
    %570 = arith.divf %568, %569 : vector<2x96xf32>
    %571 = vector.extract_strided_slice %564 {offsets = [0, 96], sizes = [2, 32], strides = [1, 1]} : vector<2x128xf32> to vector<2x32xf32>
    %572 = math.tanh %571 : vector<2x32xf32>
    %573 = vector.extract_strided_slice %570 {offsets = [0, 32], sizes = [2, 32], strides = [1, 1]} : vector<2x96xf32> to vector<2x32xf32>
    %574 = arith.mulf %573, %550 : vector<2x32xf32>
    %575 = vector.extract_strided_slice %570 {offsets = [0, 0], sizes = [2, 32], strides = [1, 1]} : vector<2x96xf32> to vector<2x32xf32>
    %576 = arith.mulf %575, %572 : vector<2x32xf32>
    %577 = arith.addf %574, %576 : vector<2x32xf32>
    %578 = vector.extract_strided_slice %570 {offsets = [0, 64], sizes = [2, 32], strides = [1, 1]} : vector<2x96xf32> to vector<2x32xf32>
    %579 = math.tanh %577 : vector<2x32xf32>
    %580 = arith.mulf %578, %579 : vector<2x32xf32>
    %581 = vector.extract_strided_slice %560 {offsets = [2, 0], sizes = [2, 128], strides = [1, 1]} : vector<8x128xf32> to vector<2x128xf32>
    %582 = arith.truncf %580 : vector<2x32xf32> to vector<2x32xbf16>
    %cst_111 = arith.constant dense<0.000000e+00> : vector<2x128xf32>
    %583 = tpu.matmul %582, %378, %cst_111 {dimension_numbers = #tpu.dot_dimension_numbers<[1], [0], [0], [1], [0, 0, 1, 1], [], []>} : vector<2x32xbf16>, vector<32x128xbf16>, vector<2x128xf32> -> vector<2x128xf32>
    %584 = arith.addf %581, %583 : vector<2x128xf32>
    %585 = vector.extract_strided_slice %584 {offsets = [0, 0], sizes = [2, 96], strides = [1, 1]} : vector<2x128xf32> to vector<2x96xf32>
    %586 = arith.negf %585 : vector<2x96xf32>
    %587 = math.exp %586 : vector<2x96xf32>
    %cst_112 = arith.constant 1.000000e+00 : f32
    %588 = vector.broadcast %cst_112 : f32 to vector<2x96xf32>
    %589 = arith.addf %588, %587 : vector<2x96xf32>
    %590 = arith.divf %588, %589 : vector<2x96xf32>
    %591 = vector.extract_strided_slice %584 {offsets = [0, 96], sizes = [2, 32], strides = [1, 1]} : vector<2x128xf32> to vector<2x32xf32>
    %592 = math.tanh %591 : vector<2x32xf32>
    %593 = vector.extract_strided_slice %590 {offsets = [0, 32], sizes = [2, 32], strides = [1, 1]} : vector<2x96xf32> to vector<2x32xf32>
    %594 = arith.mulf %593, %577 : vector<2x32xf32>
    %595 = vector.extract_strided_slice %590 {offsets = [0, 0], sizes = [2, 32], strides = [1, 1]} : vector<2x96xf32> to vector<2x32xf32>
    %596 = arith.mulf %595, %592 : vector<2x32xf32>
    %597 = arith.addf %594, %596 : vector<2x32xf32>
    %598 = vector.extract_strided_slice %590 {offsets = [0, 64], sizes = [2, 32], strides = [1, 1]} : vector<2x96xf32> to vector<2x32xf32>
    %599 = math.tanh %597 : vector<2x32xf32>
    %600 = arith.mulf %598, %599 : vector<2x32xf32>
    %601 = vector.extract_strided_slice %560 {offsets = [4, 0], sizes = [2, 128], strides = [1, 1]} : vector<8x128xf32> to vector<2x128xf32>
    %602 = arith.truncf %600 : vector<2x32xf32> to vector<2x32xbf16>
    %cst_113 = arith.constant dense<0.000000e+00> : vector<2x128xf32>
    %603 = tpu.matmul %602, %378, %cst_113 {dimension_numbers = #tpu.dot_dimension_numbers<[1], [0], [0], [1], [0, 0, 1, 1], [], []>} : vector<2x32xbf16>, vector<32x128xbf16>, vector<2x128xf32> -> vector<2x128xf32>
    %604 = arith.addf %601, %603 : vector<2x128xf32>
    %605 = vector.extract_strided_slice %604 {offsets = [0, 0], sizes = [2, 96], strides = [1, 1]} : vector<2x128xf32> to vector<2x96xf32>
    %606 = arith.negf %605 : vector<2x96xf32>
    %607 = math.exp %606 : vector<2x96xf32>
    %cst_114 = arith.constant 1.000000e+00 : f32
    %608 = vector.broadcast %cst_114 : f32 to vector<2x96xf32>
    %609 = arith.addf %608, %607 : vector<2x96xf32>
    %610 = arith.divf %608, %609 : vector<2x96xf32>
    %611 = vector.extract_strided_slice %604 {offsets = [0, 96], sizes = [2, 32], strides = [1, 1]} : vector<2x128xf32> to vector<2x32xf32>
    %612 = math.tanh %611 : vector<2x32xf32>
    %613 = vector.extract_strided_slice %610 {offsets = [0, 32], sizes = [2, 32], strides = [1, 1]} : vector<2x96xf32> to vector<2x32xf32>
    %614 = arith.mulf %613, %597 : vector<2x32xf32>
    %615 = vector.extract_strided_slice %610 {offsets = [0, 0], sizes = [2, 32], strides = [1, 1]} : vector<2x96xf32> to vector<2x32xf32>
    %616 = arith.mulf %615, %612 : vector<2x32xf32>
    %617 = arith.addf %614, %616 : vector<2x32xf32>
    %618 = vector.extract_strided_slice %610 {offsets = [0, 64], sizes = [2, 32], strides = [1, 1]} : vector<2x96xf32> to vector<2x32xf32>
    %619 = math.tanh %617 : vector<2x32xf32>
    %620 = arith.mulf %618, %619 : vector<2x32xf32>
    %621 = vector.extract_strided_slice %560 {offsets = [6, 0], sizes = [2, 128], strides = [1, 1]} : vector<8x128xf32> to vector<2x128xf32>
    %622 = arith.truncf %620 : vector<2x32xf32> to vector<2x32xbf16>
    %cst_115 = arith.constant dense<0.000000e+00> : vector<2x128xf32>
    %623 = tpu.matmul %622, %378, %cst_115 {dimension_numbers = #tpu.dot_dimension_numbers<[1], [0], [0], [1], [0, 0, 1, 1], [], []>} : vector<2x32xbf16>, vector<32x128xbf16>, vector<2x128xf32> -> vector<2x128xf32>
    %624 = arith.addf %621, %623 : vector<2x128xf32>
    %625 = vector.extract_strided_slice %624 {offsets = [0, 0], sizes = [2, 96], strides = [1, 1]} : vector<2x128xf32> to vector<2x96xf32>
    %626 = arith.negf %625 : vector<2x96xf32>
    %627 = math.exp %626 : vector<2x96xf32>
    %cst_116 = arith.constant 1.000000e+00 : f32
    %628 = vector.broadcast %cst_116 : f32 to vector<2x96xf32>
    %629 = arith.addf %628, %627 : vector<2x96xf32>
    %630 = arith.divf %628, %629 : vector<2x96xf32>
    %631 = vector.extract_strided_slice %624 {offsets = [0, 96], sizes = [2, 32], strides = [1, 1]} : vector<2x128xf32> to vector<2x32xf32>
    %632 = math.tanh %631 : vector<2x32xf32>
    %633 = vector.extract_strided_slice %630 {offsets = [0, 32], sizes = [2, 32], strides = [1, 1]} : vector<2x96xf32> to vector<2x32xf32>
    %634 = arith.mulf %633, %617 : vector<2x32xf32>
    %635 = vector.extract_strided_slice %630 {offsets = [0, 0], sizes = [2, 32], strides = [1, 1]} : vector<2x96xf32> to vector<2x32xf32>
    %636 = arith.mulf %635, %632 : vector<2x32xf32>
    %637 = arith.addf %634, %636 : vector<2x32xf32>
    %638 = vector.extract_strided_slice %630 {offsets = [0, 64], sizes = [2, 32], strides = [1, 1]} : vector<2x96xf32> to vector<2x32xf32>
    %639 = math.tanh %637 : vector<2x32xf32>
    %640 = arith.mulf %638, %639 : vector<2x32xf32>
    %641 = tpu.concatenate %580, %600, %620, %640 in 0 : vector<2x32xf32>, vector<2x32xf32>, vector<2x32xf32>, vector<2x32xf32> -> vector<8x32xf32>
    %642 = arith.index_cast %558 : i32 to index
    %c0_117 = arith.constant 0 : index
    %643 = vector.load %arg8[%642, %c0_117] : memref<32x32xf32, #tpu.memory_space<vmem>>, vector<8x32xf32>
    tpu.vector_store %arg8[%642, %c0_117], %641 {strides = array<i32>} : memref<32x32xf32, #tpu.memory_space<vmem>>, vector<8x32xf32>,
    %c3_i32_118 = arith.constant 3 : i32
    %c8_i32_119 = arith.constant 8 : i32
    %644 = arith.muli %c3_i32_118, %c8_i32_119 : i32
    %645 = tpu.assume_multiple %644, 8 : i32
    %646 = arith.index_cast %645 : i32 to index
    %c0_120 = arith.constant 0 : index
    %647 = vector.load %arg11[%646, %c0_120] : memref<32x128xf32, #tpu.memory_space<vmem>>, vector<8x128xf32>
    %648 = vector.extract_strided_slice %647 {offsets = [0, 0], sizes = [2, 128], strides = [1, 1]} : vector<8x128xf32> to vector<2x128xf32>
    %649 = arith.truncf %640 : vector<2x32xf32> to vector<2x32xbf16>
    %cst_121 = arith.constant dense<0.000000e+00> : vector<2x128xf32>
    %650 = tpu.matmul %649, %378, %cst_121 {dimension_numbers = #tpu.dot_dimension_numbers<[1], [0], [0], [1], [0, 0, 1, 1], [], []>} : vector<2x32xbf16>, vector<32x128xbf16>, vector<2x128xf32> -> vector<2x128xf32>
    %651 = arith.addf %648, %650 : vector<2x128xf32>
    %652 = vector.extract_strided_slice %651 {offsets = [0, 0], sizes = [2, 96], strides = [1, 1]} : vector<2x128xf32> to vector<2x96xf32>
    %653 = arith.negf %652 : vector<2x96xf32>
    %654 = math.exp %653 : vector<2x96xf32>
    %cst_122 = arith.constant 1.000000e+00 : f32
    %655 = vector.broadcast %cst_122 : f32 to vector<2x96xf32>
    %656 = arith.addf %655, %654 : vector<2x96xf32>
    %657 = arith.divf %655, %656 : vector<2x96xf32>
    %658 = vector.extract_strided_slice %651 {offsets = [0, 96], sizes = [2, 32], strides = [1, 1]} : vector<2x128xf32> to vector<2x32xf32>
    %659 = math.tanh %658 : vector<2x32xf32>
    %660 = vector.extract_strided_slice %657 {offsets = [0, 32], sizes = [2, 32], strides = [1, 1]} : vector<2x96xf32> to vector<2x32xf32>
    %661 = arith.mulf %660, %637 : vector<2x32xf32>
    %662 = vector.extract_strided_slice %657 {offsets = [0, 0], sizes = [2, 32], strides = [1, 1]} : vector<2x96xf32> to vector<2x32xf32>
    %663 = arith.mulf %662, %659 : vector<2x32xf32>
    %664 = arith.addf %661, %663 : vector<2x32xf32>
    %665 = vector.extract_strided_slice %657 {offsets = [0, 64], sizes = [2, 32], strides = [1, 1]} : vector<2x96xf32> to vector<2x32xf32>
    %666 = math.tanh %664 : vector<2x32xf32>
    %667 = arith.mulf %665, %666 : vector<2x32xf32>
    %668 = vector.extract_strided_slice %647 {offsets = [2, 0], sizes = [2, 128], strides = [1, 1]} : vector<8x128xf32> to vector<2x128xf32>
    %669 = arith.truncf %667 : vector<2x32xf32> to vector<2x32xbf16>
    %cst_123 = arith.constant dense<0.000000e+00> : vector<2x128xf32>
    %670 = tpu.matmul %669, %378, %cst_123 {dimension_numbers = #tpu.dot_dimension_numbers<[1], [0], [0], [1], [0, 0, 1, 1], [], []>} : vector<2x32xbf16>, vector<32x128xbf16>, vector<2x128xf32> -> vector<2x128xf32>
    %671 = arith.addf %668, %670 : vector<2x128xf32>
    %672 = vector.extract_strided_slice %671 {offsets = [0, 0], sizes = [2, 96], strides = [1, 1]} : vector<2x128xf32> to vector<2x96xf32>
    %673 = arith.negf %672 : vector<2x96xf32>
    %674 = math.exp %673 : vector<2x96xf32>
    %cst_124 = arith.constant 1.000000e+00 : f32
    %675 = vector.broadcast %cst_124 : f32 to vector<2x96xf32>
    %676 = arith.addf %675, %674 : vector<2x96xf32>
    %677 = arith.divf %675, %676 : vector<2x96xf32>
    %678 = vector.extract_strided_slice %671 {offsets = [0, 96], sizes = [2, 32], strides = [1, 1]} : vector<2x128xf32> to vector<2x32xf32>
    %679 = math.tanh %678 : vector<2x32xf32>
    %680 = vector.extract_strided_slice %677 {offsets = [0, 32], sizes = [2, 32], strides = [1, 1]} : vector<2x96xf32> to vector<2x32xf32>
    %681 = arith.mulf %680, %664 : vector<2x32xf32>
    %682 = vector.extract_strided_slice %677 {offsets = [0, 0], sizes = [2, 32], strides = [1, 1]} : vector<2x96xf32> to vector<2x32xf32>
    %683 = arith.mulf %682, %679 : vector<2x32xf32>
    %684 = arith.addf %681, %683 : vector<2x32xf32>
    %685 = vector.extract_strided_slice %677 {offsets = [0, 64], sizes = [2, 32], strides = [1, 1]} : vector<2x96xf32> to vector<2x32xf32>
    %686 = math.tanh %684 : vector<2x32xf32>
    %687 = arith.mulf %685, %686 : vector<2x32xf32>
    %688 = vector.extract_strided_slice %647 {offsets = [4, 0], sizes = [2, 128], strides = [1, 1]} : vector<8x128xf32> to vector<2x128xf32>
    %689 = arith.truncf %687 : vector<2x32xf32> to vector<2x32xbf16>
    %cst_125 = arith.constant dense<0.000000e+00> : vector<2x128xf32>
    %690 = tpu.matmul %689, %378, %cst_125 {dimension_numbers = #tpu.dot_dimension_numbers<[1], [0], [0], [1], [0, 0, 1, 1], [], []>} : vector<2x32xbf16>, vector<32x128xbf16>, vector<2x128xf32> -> vector<2x128xf32>
    %691 = arith.addf %688, %690 : vector<2x128xf32>
    %692 = vector.extract_strided_slice %691 {offsets = [0, 0], sizes = [2, 96], strides = [1, 1]} : vector<2x128xf32> to vector<2x96xf32>
    %693 = arith.negf %692 : vector<2x96xf32>
    %694 = math.exp %693 : vector<2x96xf32>
    %cst_126 = arith.constant 1.000000e+00 : f32
    %695 = vector.broadcast %cst_126 : f32 to vector<2x96xf32>
    %696 = arith.addf %695, %694 : vector<2x96xf32>
    %697 = arith.divf %695, %696 : vector<2x96xf32>
    %698 = vector.extract_strided_slice %691 {offsets = [0, 96], sizes = [2, 32], strides = [1, 1]} : vector<2x128xf32> to vector<2x32xf32>
    %699 = math.tanh %698 : vector<2x32xf32>
    %700 = vector.extract_strided_slice %697 {offsets = [0, 32], sizes = [2, 32], strides = [1, 1]} : vector<2x96xf32> to vector<2x32xf32>
    %701 = arith.mulf %700, %684 : vector<2x32xf32>
    %702 = vector.extract_strided_slice %697 {offsets = [0, 0], sizes = [2, 32], strides = [1, 1]} : vector<2x96xf32> to vector<2x32xf32>
    %703 = arith.mulf %702, %699 : vector<2x32xf32>
    %704 = arith.addf %701, %703 : vector<2x32xf32>
    %705 = vector.extract_strided_slice %697 {offsets = [0, 64], sizes = [2, 32], strides = [1, 1]} : vector<2x96xf32> to vector<2x32xf32>
    %706 = math.tanh %704 : vector<2x32xf32>
    %707 = arith.mulf %705, %706 : vector<2x32xf32>
    %708 = vector.extract_strided_slice %647 {offsets = [6, 0], sizes = [2, 128], strides = [1, 1]} : vector<8x128xf32> to vector<2x128xf32>
    %709 = arith.truncf %707 : vector<2x32xf32> to vector<2x32xbf16>
    %cst_127 = arith.constant dense<0.000000e+00> : vector<2x128xf32>
    %710 = tpu.matmul %709, %378, %cst_127 {dimension_numbers = #tpu.dot_dimension_numbers<[1], [0], [0], [1], [0, 0, 1, 1], [], []>} : vector<2x32xbf16>, vector<32x128xbf16>, vector<2x128xf32> -> vector<2x128xf32>
    %711 = arith.addf %708, %710 : vector<2x128xf32>
    %712 = vector.extract_strided_slice %711 {offsets = [0, 0], sizes = [2, 96], strides = [1, 1]} : vector<2x128xf32> to vector<2x96xf32>
    %713 = arith.negf %712 : vector<2x96xf32>
    %714 = math.exp %713 : vector<2x96xf32>
    %cst_128 = arith.constant 1.000000e+00 : f32
    %715 = vector.broadcast %cst_128 : f32 to vector<2x96xf32>
    %716 = arith.addf %715, %714 : vector<2x96xf32>
    %717 = arith.divf %715, %716 : vector<2x96xf32>
    %718 = vector.extract_strided_slice %711 {offsets = [0, 96], sizes = [2, 32], strides = [1, 1]} : vector<2x128xf32> to vector<2x32xf32>
    %719 = math.tanh %718 : vector<2x32xf32>
    %720 = vector.extract_strided_slice %717 {offsets = [0, 32], sizes = [2, 32], strides = [1, 1]} : vector<2x96xf32> to vector<2x32xf32>
    %721 = arith.mulf %720, %704 : vector<2x32xf32>
    %722 = vector.extract_strided_slice %717 {offsets = [0, 0], sizes = [2, 32], strides = [1, 1]} : vector<2x96xf32> to vector<2x32xf32>
    %723 = arith.mulf %722, %719 : vector<2x32xf32>
    %724 = arith.addf %721, %723 : vector<2x32xf32>
    %725 = vector.extract_strided_slice %717 {offsets = [0, 64], sizes = [2, 32], strides = [1, 1]} : vector<2x96xf32> to vector<2x32xf32>
    %726 = math.tanh %724 : vector<2x32xf32>
    %727 = arith.mulf %725, %726 : vector<2x32xf32>
    %728 = tpu.concatenate %667, %687, %707, %727 in 0 : vector<2x32xf32>, vector<2x32xf32>, vector<2x32xf32>, vector<2x32xf32> -> vector<8x32xf32>
    %729 = arith.index_cast %645 : i32 to index
    %c0_129 = arith.constant 0 : index
    %730 = vector.load %arg8[%729, %c0_129] : memref<32x32xf32, #tpu.memory_space<vmem>>, vector<8x32xf32>
    tpu.vector_store %arg8[%729, %c0_129], %728 {strides = array<i32>} : memref<32x32xf32, #tpu.memory_space<vmem>>, vector<8x32xf32>,
    %c4_i32_130 = arith.constant 4 : i32
    %c1_131 = arith.constant 1 : index
    %c0_132 = arith.constant 0 : index
    %c0_133 = arith.constant 0 : index
    %731 = vector.load %arg9[%c1_131, %c0_132, %c0_133] : memref<2x2x32xf32, #tpu.memory_space<vmem>>, vector<1x2x32xf32>
    %732 = vector.shape_cast %731 : vector<1x2x32xf32> to vector<2x32xf32>
    %733 = vector.shape_cast %727 : vector<2x32xf32> to vector<1x2x32xf32>
    tpu.vector_store %arg9[%c1_131, %c0_132, %c0_133], %733 {strides = array<i32>} : memref<2x2x32xf32, #tpu.memory_space<vmem>>, vector<1x2x32xf32>,
    %c1_134 = arith.constant 1 : index
    %c0_135 = arith.constant 0 : index
    %c0_136 = arith.constant 0 : index
    %734 = vector.load %arg10[%c1_134, %c0_135, %c0_136] : memref<2x2x32xf32, #tpu.memory_space<vmem>>, vector<1x2x32xf32>
    %735 = vector.shape_cast %734 : vector<1x2x32xf32> to vector<2x32xf32>
    %736 = vector.shape_cast %724 : vector<2x32xf32> to vector<1x2x32xf32>
    tpu.vector_store %arg10[%c1_134, %c0_135, %c0_136], %736 {strides = array<i32>} : memref<2x2x32xf32, #tpu.memory_space<vmem>>, vector<1x2x32xf32>,
    return
  }
  func.func @transform_0(%arg0: i32) -> (i32, i32) {
    %c0_i32 = arith.constant 0 : i32
    %c0_i32_0 = arith.constant 0 : i32
    return %arg0, %c0_i32 : i32, i32
  }
  func.func @transform_1(%arg0: i32) -> (i32, i32) {
    %c0_i32 = arith.constant 0 : i32
    %c0_i32_0 = arith.constant 0 : i32
    %c0_i32_1 = arith.constant 0 : i32
    return %c0_i32, %c0_i32_0 : i32, i32
  }
  func.func @transform_2(%arg0: i32) -> (i32, i32) {
    %c0_i32 = arith.constant 0 : i32
    %c0_i32_0 = arith.constant 0 : i32
    %c0_i32_1 = arith.constant 0 : i32
    return %c0_i32, %c0_i32_0 : i32, i32
  }
  func.func @transform_3(%arg0: i32) -> (i32, i32) {
    %c0_i32 = arith.constant 0 : i32
    %c0_i32_0 = arith.constant 0 : i32
    %c0_i32_1 = arith.constant 0 : i32
    return %c0_i32, %c0_i32_0 : i32, i32
  }
  func.func @transform_4(%arg0: i32) -> (i32, i32) {
    %c0_i32 = arith.constant 0 : i32
    %c0_i32_0 = arith.constant 0 : i32
    %c0_i32_1 = arith.constant 0 : i32
    return %c0_i32, %c0_i32_0 : i32, i32
  }
  func.func @transform_5(%arg0: i32) -> (i32, i32) {
    %c0_i32 = arith.constant 0 : i32
    %c0_i32_0 = arith.constant 0 : i32
    %c0_i32_1 = arith.constant 0 : i32
    return %c0_i32, %c0_i32_0 : i32, i32
  }
  func.func @transform_6(%arg0: i32) -> (i32, i32) {
    %c0_i32 = arith.constant 0 : i32
    %c0_i32_0 = arith.constant 0 : i32
    %c0_i32_1 = arith.constant 0 : i32
    return %c0_i32, %c0_i32_0 : i32, i32
  }
  func.func @transform_7(%arg0: i32) -> (i32, i32) {
    %c0_i32 = arith.constant 0 : i32
    %c0_i32_0 = arith.constant 0 : i32
    return %arg0, %c0_i32 : i32, i32
  }
  func.func @transform_8(%arg0: i32) -> (i32, i32, i32) {
    %c0_i32 = arith.constant 0 : i32
    %c0_i32_0 = arith.constant 0 : i32
    %c0_i32_1 = arith.constant 0 : i32
    %c0_i32_2 = arith.constant 0 : i32
    return %c0_i32, %c0_i32_0, %c0_i32_1 : i32, i32, i32
  }
  func.func @transform_9(%arg0: i32) -> (i32, i32, i32) {
    %c0_i32 = arith.constant 0 : i32
    %c0_i32_0 = arith.constant 0 : i32
    %c0_i32_1 = arith.constant 0 : i32
    %c0_i32_2 = arith.constant 0 : i32
    return %c0_i32, %c0_i32_0, %c0_i32_1 : i32, i32, i32
  }
}

</mosaic_0001>

<llo_original>
// kernel: encoder_forward.1
$region0: #{encoder_forward.1}
  #allocation0 [shape = 'u32[]', space=smem, size = 0x4, offset = 0x4, fixed_abs, tag = 'smem constant byte address 0x4 - core index']
  #allocation1 [shape = 'u32[144,128]{1,0:T(1,128)}', space=vmem, size = 0x12000, scoped, tag = 'internal scratch']
  #allocation2 [shape = 'f32[32,128]{1,0:T(8,128)}', space=vmem, size = 0x4000, scoped, tag = 'scratch operand']
  #allocation3 [shape = 'f32[32,32]{1,0:T(8,128)}', space=vmem, size = 0x4000, scoped, tag = 'scratch operand']
  %s0 = inlined_call_operand.vmem [shape: f32[32,12], index: 0, kind: input, shape index: {}]
  %s1 = inlined_call_operand.vmem [shape: bf16[12,128], index: 1, kind: input, shape index: {}]
  %s2 = inlined_call_operand.vmem [shape: bf16[32,128], index: 2, kind: input, shape index: {}]
  %s3 = inlined_call_operand.vmem [shape: bf16[32,128], index: 3, kind: input, shape index: {}]
  %s4 = inlined_call_operand.vmem [shape: bf16[32,128], index: 4, kind: input, shape index: {}]
  %s5 = inlined_call_operand.vmem [shape: f32[1,128], index: 5, kind: input, shape index: {}]
  %s6 = inlined_call_operand.vmem [shape: f32[1,128], index: 6, kind: input, shape index: {}]
  %s7 = inlined_call_operand.hbm [shape: f32[32,32], index: 7, kind: output, shape index: {0}]
  %s8 = inlined_call_operand.hbm [shape: f32[2,2,32], index: 8, kind: output, shape index: {1}]
  %s9 = inlined_call_operand.hbm [shape: f32[2,2,32], index: 9, kind: output, shape index: {2}]
  %10 = xla_tuple %s7, %s8, %s9
  %s11 = sld [smem:[#allocation0]]
  $region58: #{encoder_forward.1} parent=0
    _
  %s13 = ssub.s32 1, %s11
  %s14 = scalar_select 0, %s13, %s11
  $region1: #{encoder_forward.1} parent=0
    #allocation4 [shape = 'u8[16384]{0}', space=vmem, size = 0x4000, scoped, tag = 'output window, operand 0, single buffered']
    #allocation5 [shape = 's32[1]{0}', space=sflag, size = 0x4, scoped, tag = 'scoped memory for encoder_forward.1']
    #allocation6 [shape = 'u8[2048]{0}', space=vmem, size = 0x800, scoped, tag = 'output window, operand 1, single buffered']
    #allocation7 [shape = 's32[1]{0}', space=sflag, size = 0x4, scoped, tag = 'scoped memory for encoder_forward.1']
    #allocation8 [shape = 'u8[2048]{0}', space=vmem, size = 0x800, scoped, tag = 'output window, operand 2, single buffered']
    %15 = vsyncpa [#allocation5], 0
    %16 = vsyncpa [#allocation7], 0
    // Predicated region
    $region2: #{encoder_forward.1} parent=1 // pred_check
      _
    $region3: #{encoder_forward.1} parent=1 // pred_check_branch
      %18 = sbr.rel (0) target = $region5
    $region4: #{encoder_forward.1} parent=1 // pred_region
      _
    $region5: #{encoder_forward.1} parent=1 // pred_fallthru
      _
    // Predicated region
    $region6: #{encoder_forward.1} parent=1 // pred_check
      _
    $region7: #{encoder_forward.1} parent=1 // pred_check_branch
      %20 = sbr.rel (0) target = $region9
    $region8: #{encoder_forward.1} parent=1 // pred_region
      _
    $region9: #{encoder_forward.1} parent=1 // pred_fallthru
      _
    // Predicated region
    $region10: #{encoder_forward.1} parent=1 // pred_check
      _
    $region11: #{encoder_forward.1} parent=1 // pred_check_branch
      %22 = sbr.rel (0) target = $region13
    $region12: #{encoder_forward.1} parent=1 // pred_region
      _
    $region13: #{encoder_forward.1} parent=1 // pred_fallthru
      _
    // Predicated region
    $region14: #{encoder_forward.1} parent=1 // pred_check
      _
    $region15: #{encoder_forward.1} parent=1 // pred_check_branch
      %24 = sbr.rel (0) target = $region17
    $region16: #{encoder_forward.1} parent=1 // pred_region
      _
    $region17: #{encoder_forward.1} parent=1 // pred_fallthru
      _
    // Predicated region
    $region18: #{encoder_forward.1} parent=1 // pred_check
      _
    $region19: #{encoder_forward.1} parent=1 // pred_check_branch
      %26 = sbr.rel (0) target = $region21
    $region20: #{encoder_forward.1} parent=1 // pred_region
      _
    $region21: #{encoder_forward.1} parent=1 // pred_fallthru
      _
    // Predicated region
    $region22: #{encoder_forward.1} parent=1 // pred_check
      _
    $region23: #{encoder_forward.1} parent=1 // pred_check_branch
      %28 = sbr.rel (0) target = $region25
    $region24: #{encoder_forward.1} parent=1 // pred_region
      _
    $region25: #{encoder_forward.1} parent=1 // pred_fallthru
      _
    // Predicated region
    $region26: #{encoder_forward.1} parent=1 // pred_check
      _
    $region27: #{encoder_forward.1} parent=1 // pred_check_branch
      %30 = sbr.rel (0) target = $region29
    $region28: #{encoder_forward.1} parent=1 // pred_region
      _
    $region29: #{encoder_forward.1} parent=1 // pred_fallthru
      _
    %p32 = scmp.eq.s32.totalorder 0, 0
    // Predicated region
    $region30: #{encoder_forward.1} parent=1 // pred_check
      %p33 = pneg %p32
    $region31: #{encoder_forward.1} parent=1 // pred_check_branch
      %35 = sbr.rel (%p33) target = $region33
    $region32: #{encoder_forward.1} parent=1 // pred_region
      %vm36 = vcmask 254976
      %37 = vst.msk [vmem:[#allocation6] sm:$0x3] %vm36, 0.0
      %38 = vst.msk [vmem:[#allocation6 + $0x2] sm:$0x3] %vm36, 0.0
      %39 = vst.msk [vmem:[#allocation8] sm:$0x3] %vm36, 0.0
      %40 = vst.msk [vmem:[#allocation8 + $0x2] sm:$0x3] %vm36, 0.0
    $region33: #{encoder_forward.1} parent=1 // pred_fallthru
      _
    %v41 = vld [vmem:[%s0] sm:$0xff]
    %v42 = vld [vmem:[%s0 + $0x8] sm:$0xff]
    %v43 = vld [vmem:[%s0 + $0x10] sm:$0xff]
    %v44 = vld [vmem:[%s0 + $0x18] sm:$0xff]
    %v45 = vpack.c.bf16 %v42, %v41
    %v46 = vpack.c.bf16 %v44, %v43
    %v47 = vld [vmem:[%s1] sm:$0xf]
    %v48 = vld [vmem:[%s1 + $0x4] sm:$0x3]
    %v49 = vld [vmem:[%s5] sm:$0x1]
    %v51 = vlaneseq
    %v52 = vshrl.u32 %v51, 7
    %v53 = vsub.s32 0, %v52
    %v54 = vrot.slane %v49, %v53
    %v58 = vunpack.c.l.b16 %v47
    %v59 = vunpack.c.l.b16 %v48
    %v60 = vpack.c.b16 %v59, %v58
    %vm61 = vcmask 97280
    %v63 = vsel %vm61, %v45, 0
    %v66 = vsel %vm61, %v46, 0
    %vm68 = vcmask 1045504
    %v70 = vsel %vm68, %v60, 0
    %72 = vmatprep.subr.bf16.mxu0 0
    %73 = vmatpush1.bf16.msra.mxu0 %v70
    %74 = vmatprep.subr.bf16.mxu0 0
    %75 = vmatpush1.bf16.msra.mxu0 0
    %76 = vmatprep.subr.bf16.mxu0 0
    %77 = vmatpush1.bf16.msra.mxu0 0
    %78 = vmatprep.subr.bf16.mxu0 0
    %79 = vmatpush1.bf16.msra.mxu0 0
    %80 = vmatprep.subr.bf16.mxu0 0
    %81 = vmatpush1.bf16.msra.mxu0 0
    %82 = vmatprep.subr.bf16.mxu0 0
    %83 = vmatpush1.bf16.msra.mxu0 0
    %84 = vmatprep.subr.bf16.mxu0 0
    %85 = vmatpush1.bf16.msra.mxu0 0
    %86 = vmatprep.subr.bf16.mxu0 0
    %87 = vmatpush1.bf16.msra.mxu0 0
    %88 = vmatprep.subr.bf16.mxu0 0
    %89 = vmatpush1.bf16.msra.mxu0 0
    %90 = vmatprep.subr.bf16.mxu0 0
    %91 = vmatpush1.bf16.msra.mxu0 0
    %92 = vmatprep.subr.bf16.mxu0 0
    %93 = vmatpush1.bf16.msra.mxu0 0
    %94 = vmatprep.subr.bf16.mxu0 0
    %95 = vmatpush1.bf16.msra.mxu0 0
    %96 = vmatprep.subr.bf16.mxu0 0
    %97 = vmatpush1.bf16.msra.mxu0 0
    %98 = vmatprep.subr.bf16.mxu0 0
    %99 = vmatpush1.bf16.msra.mxu0 0
    %100 = vmatprep.subr.bf16.mxu0 0
    %101 = vmatpush1.bf16.msra.mxu0 0
    %102 = vmatprep.subr.bf16.mxu0 0
    %103 = vmatpush1.bf16.msra.mxu0 0
    %104 = vmatprep.mubr.bf16.mxu0 0
    %105 = vmatmul.mubr.bf16.gmra.mrb[0].mxu0 %v63
    %v106 = vpop.f32.mrb[0].mxu0
    %v107 = vadd.f32 %v54, %v106
    %v108 = vpop.f32.mrb[0].mxu0
    %v109 = vpop.f32.mrb[0].mxu0
    %v110 = vadd.f32 %v54, %v109
    %v111 = vpop.f32.mrb[0].mxu0
    %112 = vmatprep.mubr.bf16.mxu0 0
    %113 = vmatmul.mubr.bf16.gmra.mrb[0].mxu0 %v66
    %v114 = vpop.f32.mrb[0].mxu0
    %v115 = vadd.f32 %v54, %v114
    %v116 = vpop.f32.mrb[0].mxu0
    %v117 = vpop.f32.mrb[0].mxu0
    %v118 = vadd.f32 %v54, %v117
    %v119 = vpop.f32.mrb[0].mxu0
    %120 = vdwg.mxu0
    %121 = vst [vmem:[#allocation2] sm:$0xff] %v107
    %122 = vst [vmem:[#allocation2 + $0x8] sm:$0xff] %v110
    %123 = vst [vmem:[#allocation2 + $0x10] sm:$0xff] %v115
    %124 = vst [vmem:[#allocation2 + $0x18] sm:$0xff] %v118
    %v125 = vld [vmem:[%s3] sm:$0xf]
    %v126 = vld [vmem:[%s3 + $0x4] sm:$0xf]
    %v127 = vld [vmem:[%s3 + $0x8] sm:$0xf]
    %v128 = vld [vmem:[%s3 + $0xc] sm:$0xf]
    %v129 = vld [vmem:[#allocation6] sm:$0x3]
    %v130 = vld [vmem:[#allocation8] sm:$0x3]
    %v131 = vld [vmem:[#allocation2] sm:$0xff]
    %v132 = vpack.c.bf16 %v129, %v129
    %v137 = vunpack.c.l.b16 %v125
    %v138 = vunpack.c.l.b16 %v126
    %v139 = vunpack.c.l.b16 %v127
    %v140 = vunpack.c.l.b16 %v128
    %v141 = vpack.c.b16 %v138, %v137
    %v142 = vpack.c.b16 %v140, %v139
    %vm145 = vcmask 261120
    %v147 = vsel %vm145, %v132, 0
    %149 = vmatprep.subr.bf16.mxu0 0
    %150 = vmatpush1.bf16.msra.mxu0 %v141
    %151 = vmatprep.subr.bf16.mxu0 0
    %152 = vmatpush1.bf16.msra.mxu0 %v142
    %153 = vmatprep.subr.bf16.mxu0 0
    %154 = vmatpush1.bf16.msra.mxu0 0
    %155 = vmatprep.subr.bf16.mxu0 0
    %156 = vmatpush1.bf16.msra.mxu0 0
    %157 = vmatprep.subr.bf16.mxu0 0
    %158 = vmatpush1.bf16.msra.mxu0 0
    %159 = vmatprep.subr.bf16.mxu0 0
    %160 = vmatpush1.bf16.msra.mxu0 0
    %161 = vmatprep.subr.bf16.mxu0 0
    %162 = vmatpush1.bf16.msra.mxu0 0
    %163 = vmatprep.subr.bf16.mxu0 0
    %164 = vmatpush1.bf16.msra.mxu0 0
    %165 = vmatprep.subr.bf16.mxu0 0
    %166 = vmatpush1.bf16.msra.mxu0 0
    %167 = vmatprep.subr.bf16.mxu0 0
    %168 = vmatpush1.bf16.msra.mxu0 0
    %169 = vmatprep.subr.bf16.mxu0 0
    %170 = vmatpush1.bf16.msra.mxu0 0
    %171 = vmatprep.subr.bf16.mxu0 0
    %172 = vmatpush1.bf16.msra.mxu0 0
    %173 = vmatprep.subr.bf16.mxu0 0
    %174 = vmatpush1.bf16.msra.mxu0 0
    %175 = vmatprep.subr.bf16.mxu0 0
    %176 = vmatpush1.bf16.msra.mxu0 0
    %177 = vmatprep.subr.bf16.mxu0 0
    %178 = vmatpush1.bf16.msra.mxu0 0
    %179 = vmatprep.subr.bf16.mxu0 0
    %180 = vmatpush1.bf16.msra.mxu0 0
    %181 = vmatprep.mubr.bf16.mxu0 0
    %182 = vmatmul.mubr.bf16.gmra.mrb[0].mxu0 %v147
    %v183 = vpop.f32.mrb[0].mxu0
    %v184 = vadd.f32 0.0, %v183
    %v185 = vpop.f32.mrb[0].mxu0
    %v186 = vpop.f32.mrb[0].mxu0
    %v187 = vpop.f32.mrb[0].mxu0
    %188 = vdwg.mxu0
    %v189 = vadd.f32 %v131, %v184
    %v190 = vxor.u32 %v189, 2147483648
    %v191 = vmul.f32 %v190, 1.442695
    %v192 = vpow.pop %v191
    %v193 = vadd.f32 %v192, 1.0
    %v194 = vrcp.pop %v193
    %v195 = vmul.f32 1.0, %v194
    %v196 = vtanh.pop %v189
    %198 = vrot.lane.b32.xlu0 %v130, 32
    %v199 = vpop.permute.xlu0 %198
    %v201 = vmul.f32 %v195, %v199
    %203 = vrot.lane.b32.xlu0 %v196, 32
    %v204 = vpop.permute.xlu0 %203
    %v206 = vmul.f32 %v195, %v204
    %208 = vrot.lane.b32.xlu0 %v206, 32
    %v209 = vpop.permute.xlu0 %208
    %v211 = vadd.f32 %v201, %v209
    %v212 = vtanh.pop %v211
    %214 = vrot.lane.b32.xlu0 %v212, 32
    %v215 = vpop.permute.xlu0 %214
    %v217 = vmul.f32 %v195, %v215
    %v218 = vpack.c.bf16 %v217, %v217
    %220 = vrot.lane.b32.xlu0 %v218, 64
    %v221 = vpop.permute.xlu0 %220
    %v223 = vsel %vm145, %v221, 0
    %225 = vmatprep.subr.bf16.mxu0 0
    %226 = vmatpush1.bf16.msra.mxu0 %v141
    %227 = vmatprep.subr.bf16.mxu0 0
    %228 = vmatpush1.bf16.msra.mxu0 %v142
    %229 = vmatprep.subr.bf16.mxu0 0
    %230 = vmatpush1.bf16.msra.mxu0 0
    %231 = vmatprep.subr.bf16.mxu0 0
    %232 = vmatpush1.bf16.msra.mxu0 0
    %233 = vmatprep.subr.bf16.mxu0 0
    %234 = vmatpush1.bf16.msra.mxu0 0
    %235 = vmatprep.subr.bf16.mxu0 0
    %236 = vmatpush1.bf16.msra.mxu0 0
    %237 = vmatprep.subr.bf16.mxu0 0
    %238 = vmatpush1.bf16.msra.mxu0 0
    %239 = vmatprep.subr.bf16.mxu0 0
    %240 = vmatpush1.bf16.msra.mxu0 0
    %241 = vmatprep.subr.bf16.mxu0 0
    %242 = vmatpush1.bf16.msra.mxu0 0
    %243 = vmatprep.subr.bf16.mxu0 0
    %244 = vmatpush1.bf16.msra.mxu0 0
    %245 = vmatprep.subr.bf16.mxu0 0
    %246 = vmatpush1.bf16.msra.mxu0 0
    %247 = vmatprep.subr.bf16.mxu0 0
    %248 = vmatpush1.bf16.msra.mxu0 0
    %249 = vmatprep.subr.bf16.mxu0 0
    %250 = vmatpush1.bf16.msra.mxu0 0
    %251 = vmatprep.subr.bf16.mxu0 0
    %252 = vmatpush1.bf16.msra.mxu0 0
    %253 = vmatprep.subr.bf16.mxu0 0
    %254 = vmatpush1.bf16.msra.mxu0 0
    %255 = vmatprep.subr.bf16.mxu0 0
    %256 = vmatpush1.bf16.msra.mxu0 0
    %257 = vmatprep.mubr.bf16.mxu0 0
    %258 = vmatmul.mubr.bf16.gmra.mrb[0].mxu0 %v223
    %v259 = vpop.f32.mrb[0].mxu0
    %v260 = vadd.f32 0.0, %v259
    %v261 = vpop.f32.mrb[0].mxu0
    %v262 = vpop.f32.mrb[0].mxu0
    %v263 = vpop.f32.mrb[0].mxu0
    %264 = vdwg.mxu0
    %v266 = vrot.slane %v260, 6
    %v268 = vadd.f32 %v131, %v266
    %v269 = vxor.u32 %v268, 2147483648
    %v270 = vmul.f32 %v269, 1.442695
    %v271 = vpow.pop %v270
    %v272 = vadd.f32 %v271, 1.0
    %v273 = vrcp.pop %v272
    %v274 = vmul.f32 1.0, %v273
    %v275 = vtanh.pop %v268
    %v277 = vrot.slane %v211, 6
    %v279 = vmul.f32 %v274, %v277
    %281 = vrot.lane.b32.xlu0 %v275, 32
    %v282 = vpop.permute.xlu0 %281
    %v284 = vmul.f32 %v274, %v282
    %286 = vrot.lane.b32.xlu0 %v284, 32
    %v287 = vpop.permute.xlu0 %286
    %v289 = vadd.f32 %v279, %v287
    %v290 = vtanh.pop %v289
    %292 = vrot.lane.b32.xlu0 %v290, 32
    %v293 = vpop.permute.xlu0 %292
    %v295 = vmul.f32 %v274, %v293
    %v296 = vpack.c.bf16 %v295, %v295
    %v298 = vrot.slane %v296, 1
    %299 = vrot.lane.b32.xlu0 %v298, 64
    %v300 = vpop.permute.xlu0 %299
    %v302 = vsel %vm145, %v300, 0
    %304 = vmatprep.subr.bf16.mxu0 0
    %305 = vmatpush1.bf16.msra.mxu0 %v141
    %306 = vmatprep.subr.bf16.mxu0 0
    %307 = vmatpush1.bf16.msra.mxu0 %v142
    %308 = vmatprep.subr.bf16.mxu0 0
    %309 = vmatpush1.bf16.msra.mxu0 0
    %310 = vmatprep.subr.bf16.mxu0 0
    %311 = vmatpush1.bf16.msra.mxu0 0
    %312 = vmatprep.subr.bf16.mxu0 0
    %313 = vmatpush1.bf16.msra.mxu0 0
    %314 = vmatprep.subr.bf16.mxu0 0
    %315 = vmatpush1.bf16.msra.mxu0 0
    %316 = vmatprep.subr.bf16.mxu0 0
    %317 = vmatpush1.bf16.msra.mxu0 0
    %318 = vmatprep.subr.bf16.mxu0 0
    %319 = vmatpush1.bf16.msra.mxu0 0
    %320 = vmatprep.subr.bf16.mxu0 0
    %321 = vmatpush1.bf16.msra.mxu0 0
    %322 = vmatprep.subr.bf16.mxu0 0
    %323 = vmatpush1.bf16.msra.mxu0 0
    %324 = vmatprep.subr.bf16.mxu0 0
    %325 = vmatpush1.bf16.msra.mxu0 0
    %326 = vmatprep.subr.bf16.mxu0 0
    %327 = vmatpush1.bf16.msra.mxu0 0
    %328 = vmatprep.subr.bf16.mxu0 0
    %329 = vmatpush1.bf16.msra.mxu0 0
    %330 = vmatprep.subr.bf16.mxu0 0
    %331 = vmatpush1.bf16.msra.mxu0 0
    %332 = vmatprep.subr.bf16.mxu0 0
    %333 = vmatpush1.bf16.msra.mxu0 0
    %334 = vmatprep.subr.bf16.mxu0 0
    %335 = vmatpush1.bf16.msra.mxu0 0
    %336 = vmatprep.mubr.bf16.mxu0 0
    %337 = vmatmul.mubr.bf16.gmra.mrb[0].mxu0 %v302
    %v338 = vpop.f32.mrb[0].mxu0
    %v339 = vadd.f32 0.0, %v338
    %v340 = vpop.f32.mrb[0].mxu0
    %v341 = vpop.f32.mrb[0].mxu0
    %v342 = vpop.f32.mrb[0].mxu0
    %343 = vdwg.mxu0
    %v345 = vrot.slane %v339, 4
    %v347 = vadd.f32 %v131, %v345
    %v348 = vxor.u32 %v347, 2147483648
    %v349 = vmul.f32 %v348, 1.442695
    %v350 = vpow.pop %v349
    %v351 = vadd.f32 %v350, 1.0
    %v352 = vrcp.pop %v351
    %v353 = vmul.f32 1.0, %v352
    %v354 = vtanh.pop %v347
    %v356 = vrot.slane %v289, 6
    %v358 = vmul.f32 %v353, %v356
    %360 = vrot.lane.b32.xlu0 %v354, 32
    %v361 = vpop.permute.xlu0 %360
    %v363 = vmul.f32 %v353, %v361
    %365 = vrot.lane.b32.xlu0 %v363, 32
    %v366 = vpop.permute.xlu0 %365
    %v368 = vadd.f32 %v358, %v366
    %v369 = vtanh.pop %v368
    %371 = vrot.lane.b32.xlu0 %v369, 32
    %v372 = vpop.permute.xlu0 %371
    %v374 = vmul.f32 %v353, %v372
    %v375 = vpack.c.bf16 %v374, %v374
    %v377 = vrot.slane %v375, 2
    %378 = vrot.lane.b32.xlu0 %v377, 64
    %v379 = vpop.permute.xlu0 %378
    %v381 = vsel %vm145, %v379, 0
    %383 = vmatprep.subr.bf16.mxu0 0
    %384 = vmatpush1.bf16.msra.mxu0 %v141
    %385 = vmatprep.subr.bf16.mxu0 0
    %386 = vmatpush1.bf16.msra.mxu0 %v142
    %387 = vmatprep.subr.bf16.mxu0 0
    %388 = vmatpush1.bf16.msra.mxu0 0
    %389 = vmatprep.subr.bf16.mxu0 0
    %390 = vmatpush1.bf16.msra.mxu0 0
    %391 = vmatprep.subr.bf16.mxu0 0
    %392 = vmatpush1.bf16.msra.mxu0 0
    %393 = vmatprep.subr.bf16.mxu0 0
    %394 = vmatpush1.bf16.msra.mxu0 0
    %395 = vmatprep.subr.bf16.mxu0 0
    %396 = vmatpush1.bf16.msra.mxu0 0
    %397 = vmatprep.subr.bf16.mxu0 0
    %398 = vmatpush1.bf16.msra.mxu0 0
    %399 = vmatprep.subr.bf16.mxu0 0
    %400 = vmatpush1.bf16.msra.mxu0 0
    %401 = vmatprep.subr.bf16.mxu0 0
    %402 = vmatpush1.bf16.msra.mxu0 0
    %403 = vmatprep.subr.bf16.mxu0 0
    %404 = vmatpush1.bf16.msra.mxu0 0
    %405 = vmatprep.subr.bf16.mxu0 0
    %406 = vmatpush1.bf16.msra.mxu0 0
    %407 = vmatprep.subr.bf16.mxu0 0
    %408 = vmatpush1.bf16.msra.mxu0 0
    %409 = vmatprep.subr.bf16.mxu0 0
    %410 = vmatpush1.bf16.msra.mxu0 0
    %411 = vmatprep.subr.bf16.mxu0 0
    %412 = vmatpush1.bf16.msra.mxu0 0
    %413 = vmatprep.subr.bf16.mxu0 0
    %414 = vmatpush1.bf16.msra.mxu0 0
    %415 = vmatprep.mubr.bf16.mxu0 0
    %416 = vmatmul.mubr.bf16.gmra.mrb[0].mxu0 %v381
    %v417 = vpop.f32.mrb[0].mxu0
    %v418 = vadd.f32 0.0, %v417
    %v419 = vpop.f32.mrb[0].mxu0
    %v420 = vpop.f32.mrb[0].mxu0
    %v421 = vpop.f32.mrb[0].mxu0
    %422 = vdwg.mxu0
    %v424 = vrot.slane %v418, 2
    %v426 = vadd.f32 %v131, %v424
    %v427 = vxor.u32 %v426, 2147483648
    %v428 = vmul.f32 %v427, 1.442695
    %v429 = vpow.pop %v428
    %v430 = vadd.f32 %v429, 1.0
    %v431 = vrcp.pop %v430
    %v432 = vmul.f32 1.0, %v431
    %v433 = vtanh.pop %v426
    %v435 = vrot.slane %v368, 6
    %v437 = vmul.f32 %v432, %v435
    %439 = vrot.lane.b32.xlu0 %v433, 32
    %v440 = vpop.permute.xlu0 %439
    %v442 = vmul.f32 %v432, %v440
    %444 = vrot.lane.b32.xlu0 %v442, 32
    %v445 = vpop.permute.xlu0 %444
    %v447 = vadd.f32 %v437, %v445
    %v448 = vtanh.pop %v447
    %450 = vrot.lane.b32.xlu0 %v448, 32
    %v451 = vpop.permute.xlu0 %450
    %v453 = vmul.f32 %v432, %v451
    %vm454 = vcmask 1041408
    %v455 = vsel %vm454, %v217, %v295
    %vm456 = vcmask 1043456
    %v457 = vsel %vm456, %v455, %v374
    %v458 = vsel %vm68, %v457, %v453
    %460 = vrot.lane.b32.xlu0 %v458, 64
    %v461 = vpop.permute.xlu0 %460
    %463 = vst.msk [vmem:[#allocation3] sm:$0xff] %vm145, %v461
    %s464 = scalar_lea.vmem [#allocation2], 8
    %v465 = vld [vmem:[%s464] sm:$0xff]
    %v466 = vpack.c.bf16 %v453, %v453
    %v468 = vrot.slane %v466, 3
    %469 = vrot.lane.b32.xlu0 %v468, 64
    %v470 = vpop.permute.xlu0 %469
    %v472 = vsel %vm145, %v470, 0
    %474 = vmatprep.subr.bf16.mxu0 0
    %475 = vmatpush1.bf16.msra.mxu0 %v141
    %476 = vmatprep.subr.bf16.mxu0 0
    %477 = vmatpush1.bf16.msra.mxu0 %v142
    %478 = vmatprep.subr.bf16.mxu0 0
    %479 = vmatpush1.bf16.msra.mxu0 0
    %480 = vmatprep.subr.bf16.mxu0 0
    %481 = vmatpush1.bf16.msra.mxu0 0
    %482 = vmatprep.subr.bf16.mxu0 0
    %483 = vmatpush1.bf16.msra.mxu0 0
    %484 = vmatprep.subr.bf16.mxu0 0
    %485 = vmatpush1.bf16.msra.mxu0 0
    %486 = vmatprep.subr.bf16.mxu0 0
    %487 = vmatpush1.bf16.msra.mxu0 0
    %488 = vmatprep.subr.bf16.mxu0 0
    %489 = vmatpush1.bf16.msra.mxu0 0
    %490 = vmatprep.subr.bf16.mxu0 0
    %491 = vmatpush1.bf16.msra.mxu0 0
    %492 = vmatprep.subr.bf16.mxu0 0
    %493 = vmatpush1.bf16.msra.mxu0 0
    %494 = vmatprep.subr.bf16.mxu0 0
    %495 = vmatpush1.bf16.msra.mxu0 0
    %496 = vmatprep.subr.bf16.mxu0 0
    %497 = vmatpush1.bf16.msra.mxu0 0
    %498 = vmatprep.subr.bf16.mxu0 0
    %499 = vmatpush1.bf16.msra.mxu0 0
    %500 = vmatprep.subr.bf16.mxu0 0
    %501 = vmatpush1.bf16.msra.mxu0 0
    %502 = vmatprep.subr.bf16.mxu0 0
    %503 = vmatpush1.bf16.msra.mxu0 0
    %504 = vmatprep.subr.bf16.mxu0 0
    %505 = vmatpush1.bf16.msra.mxu0 0
    %506 = vmatprep.mubr.bf16.mxu0 0
    %507 = vmatmul.mubr.bf16.gmra.mrb[0].mxu0 %v472
    %v508 = vpop.f32.mrb[0].mxu0
    %v509 = vadd.f32 0.0, %v508
    %v510 = vpop.f32.mrb[0].mxu0
    %v511 = vpop.f32.mrb[0].mxu0
    %v512 = vpop.f32.mrb[0].mxu0
    %513 = vdwg.mxu0
    %v514 = vadd.f32 %v465, %v509
    %v515 = vxor.u32 %v514, 2147483648
    %v516 = vmul.f32 %v515, 1.442695
    %v517 = vpow.pop %v516
    %v518 = vadd.f32 %v517, 1.0
    %v519 = vrcp.pop %v518
    %v520 = vmul.f32 1.0, %v519
    %v521 = vtanh.pop %v514
    %v523 = vrot.slane %v447, 6
    %v525 = vmul.f32 %v520, %v523
    %527 = vrot.lane.b32.xlu0 %v521, 32
    %v528 = vpop.permute.xlu0 %527
    %v530 = vmul.f32 %v520, %v528
    %532 = vrot.lane.b32.xlu0 %v530, 32
    %v533 = vpop.permute.xlu0 %532
    %v535 = vadd.f32 %v525, %v533
    %v536 = vtanh.pop %v535
    %538 = vrot.lane.b32.xlu0 %v536, 32
    %v539 = vpop.permute.xlu0 %538
    %v541 = vmul.f32 %v520, %v539
    %v542 = vpack.c.bf16 %v541, %v541
    %544 = vrot.lane.b32.xlu0 %v542, 64
    %v545 = vpop.permute.xlu0 %544
    %v547 = vsel %vm145, %v545, 0
    %549 = vmatprep.subr.bf16.mxu0 0
    %550 = vmatpush1.bf16.msra.mxu0 %v141
    %551 = vmatprep.subr.bf16.mxu0 0
    %552 = vmatpush1.bf16.msra.mxu0 %v142
    %553 = vmatprep.subr.bf16.mxu0 0
    %554 = vmatpush1.bf16.msra.mxu0 0
    %555 = vmatprep.subr.bf16.mxu0 0
    %556 = vmatpush1.bf16.msra.mxu0 0
    %557 = vmatprep.subr.bf16.mxu0 0
    %558 = vmatpush1.bf16.msra.mxu0 0
    %559 = vmatprep.subr.bf16.mxu0 0
    %560 = vmatpush1.bf16.msra.mxu0 0
    %561 = vmatprep.subr.bf16.mxu0 0
    %562 = vmatpush1.bf16.msra.mxu0 0
    %563 = vmatprep.subr.bf16.mxu0 0
    %564 = vmatpush1.bf16.msra.mxu0 0
    %565 = vmatprep.subr.bf16.mxu0 0
    %566 = vmatpush1.bf16.msra.mxu0 0
    %567 = vmatprep.subr.bf16.mxu0 0
    %568 = vmatpush1.bf16.msra.mxu0 0
    %569 = vmatprep.subr.bf16.mxu0 0
    %570 = vmatpush1.bf16.msra.mxu0 0
    %571 = vmatprep.subr.bf16.mxu0 0
    %572 = vmatpush1.bf16.msra.mxu0 0
    %573 = vmatprep.subr.bf16.mxu0 0
    %574 = vmatpush1.bf16.msra.mxu0 0
    %575 = vmatprep.subr.bf16.mxu0 0
    %576 = vmatpush1.bf16.msra.mxu0 0
    %577 = vmatprep.subr.bf16.mxu0 0
    %578 = vmatpush1.bf16.msra.mxu0 0
    %579 = vmatprep.subr.bf16.mxu0 0
    %580 = vmatpush1.bf16.msra.mxu0 0
    %581 = vmatprep.mubr.bf16.mxu0 0
    %582 = vmatmul.mubr.bf16.gmra.mrb[0].mxu0 %v547
    %v583 = vpop.f32.mrb[0].mxu0
    %v584 = vadd.f32 0.0, %v583
    %v585 = vpop.f32.mrb[0].mxu0
    %v586 = vpop.f32.mrb[0].mxu0
    %v587 = vpop.f32.mrb[0].mxu0
    %588 = vdwg.mxu0
    %v590 = vrot.slane %v584, 6
    %v592 = vadd.f32 %v465, %v590
    %v593 = vxor.u32 %v592, 2147483648
    %v594 = vmul.f32 %v593, 1.442695
    %v595 = vpow.pop %v594
    %v596 = vadd.f32 %v595, 1.0
    %v597 = vrcp.pop %v596
    %v598 = vmul.f32 1.0, %v597
    %v599 = vtanh.pop %v592
    %v601 = vrot.slane %v535, 6
    %v603 = vmul.f32 %v598, %v601
    %605 = vrot.lane.b32.xlu0 %v599, 32
    %v606 = vpop.permute.xlu0 %605
    %v608 = vmul.f32 %v598, %v606
    %610 = vrot.lane.b32.xlu0 %v608, 32
    %v611 = vpop.permute.xlu0 %610
    %v613 = vadd.f32 %v603, %v611
    %v614 = vtanh.pop %v613
    %616 = vrot.lane.b32.xlu0 %v614, 32
    %v617 = vpop.permute.xlu0 %616
    %v619 = vmul.f32 %v598, %v617
    %v620 = vpack.c.bf16 %v619, %v619
    %v622 = vrot.slane %v620, 1
    %623 = vrot.lane.b32.xlu0 %v622, 64
    %v624 = vpop.permute.xlu0 %623
    %v626 = vsel %vm145, %v624, 0
    %628 = vmatprep.subr.bf16.mxu0 0
    %629 = vmatpush1.bf16.msra.mxu0 %v141
    %630 = vmatprep.subr.bf16.mxu0 0
    %631 = vmatpush1.bf16.msra.mxu0 %v142
    %632 = vmatprep.subr.bf16.mxu0 0
    %633 = vmatpush1.bf16.msra.mxu0 0
    %634 = vmatprep.subr.bf16.mxu0 0
    %635 = vmatpush1.bf16.msra.mxu0 0
    %636 = vmatprep.subr.bf16.mxu0 0
    %637 = vmatpush1.bf16.msra.mxu0 0
    %638 = vmatprep.subr.bf16.mxu0 0
    %639 = vmatpush1.bf16.msra.mxu0 0
    %640 = vmatprep.subr.bf16.mxu0 0
    %641 = vmatpush1.bf16.msra.mxu0 0
    %642 = vmatprep.subr.bf16.mxu0 0
    %643 = vmatpush1.bf16.msra.mxu0 0
    %644 = vmatprep.subr.bf16.mxu0 0
    %645 = vmatpush1.bf16.msra.mxu0 0
    %646 = vmatprep.subr.bf16.mxu0 0
    %647 = vmatpush1.bf16.msra.mxu0 0
    %648 = vmatprep.subr.bf16.mxu0 0
    %649 = vmatpush1.bf16.msra.mxu0 0
    %650 = vmatprep.subr.bf16.mxu0 0
    %651 = vmatpush1.bf16.msra.mxu0 0
    %652 = vmatprep.subr.bf16.mxu0 0
    %653 = vmatpush1.bf16.msra.mxu0 0
    %654 = vmatprep.subr.bf16.mxu0 0
    %655 = vmatpush1.bf16.msra.mxu0 0
    %656 = vmatprep.subr.bf16.mxu0 0
    %657 = vmatpush1.bf16.msra.mxu0 0
    %658 = vmatprep.subr.bf16.mxu0 0
    %659 = vmatpush1.bf16.msra.mxu0 0
    %660 = vmatprep.mubr.bf16.mxu0 0
    %661 = vmatmul.mubr.bf16.gmra.mrb[0].mxu0 %v626
    %v662 = vpop.f32.mrb[0].mxu0
    %v663 = vadd.f32 0.0, %v662
    %v664 = vpop.f32.mrb[0].mxu0
    %v665 = vpop.f32.mrb[0].mxu0
    %v666 = vpop.f32.mrb[0].mxu0
    %667 = vdwg.mxu0
    %v669 = vrot.slane %v663, 4
    %v671 = vadd.f32 %v465, %v669
    %v672 = vxor.u32 %v671, 2147483648
    %v673 = vmul.f32 %v672, 1.442695
    %v674 = vpow.pop %v673
    %v675 = vadd.f32 %v674, 1.0
    %v676 = vrcp.pop %v675
    %v677 = vmul.f32 1.0, %v676
    %v678 = vtanh.pop %v671
    %v680 = vrot.slane %v613, 6
    %v682 = vmul.f32 %v677, %v680
    %684 = vrot.lane.b32.xlu0 %v678, 32
    %v685 = vpop.permute.xlu0 %684
    %v687 = vmul.f32 %v677, %v685
    %689 = vrot.lane.b32.xlu0 %v687, 32
    %v690 = vpop.permute.xlu0 %689
    %v692 = vadd.f32 %v682, %v690
    %v693 = vtanh.pop %v692
    %695 = vrot.lane.b32.xlu0 %v693, 32
    %v696 = vpop.permute.xlu0 %695
    %v698 = vmul.f32 %v677, %v696
    %v699 = vpack.c.bf16 %v698, %v698
    %v701 = vrot.slane %v699, 2
    %702 = vrot.lane.b32.xlu0 %v701, 64
    %v703 = vpop.permute.xlu0 %702
    %v705 = vsel %vm145, %v703, 0
    %707 = vmatprep.subr.bf16.mxu0 0
    %708 = vmatpush1.bf16.msra.mxu0 %v141
    %709 = vmatprep.subr.bf16.mxu0 0
    %710 = vmatpush1.bf16.msra.mxu0 %v142
    %711 = vmatprep.subr.bf16.mxu0 0
    %712 = vmatpush1.bf16.msra.mxu0 0
    %713 = vmatprep.subr.bf16.mxu0 0
    %714 = vmatpush1.bf16.msra.mxu0 0
    %715 = vmatprep.subr.bf16.mxu0 0
    %716 = vmatpush1.bf16.msra.mxu0 0
    %717 = vmatprep.subr.bf16.mxu0 0
    %718 = vmatpush1.bf16.msra.mxu0 0
    %719 = vmatprep.subr.bf16.mxu0 0
    %720 = vmatpush1.bf16.msra.mxu0 0
    %721 = vmatprep.subr.bf16.mxu0 0
    %722 = vmatpush1.bf16.msra.mxu0 0
    %723 = vmatprep.subr.bf16.mxu0 0
    %724 = vmatpush1.bf16.msra.mxu0 0
    %725 = vmatprep.subr.bf16.mxu0 0
    %726 = vmatpush1.bf16.msra.mxu0 0
    %727 = vmatprep.subr.bf16.mxu0 0
    %728 = vmatpush1.bf16.msra.mxu0 0
    %729 = vmatprep.subr.bf16.mxu0 0
    %730 = vmatpush1.bf16.msra.mxu0 0
    %731 = vmatprep.subr.bf16.mxu0 0
    %732 = vmatpush1.bf16.msra.mxu0 0
    %733 = vmatprep.subr.bf16.mxu0 0
    %734 = vmatpush1.bf16.msra.mxu0 0
    %735 = vmatprep.subr.bf16.mxu0 0
    %736 = vmatpush1.bf16.msra.mxu0 0
    %737 = vmatprep.subr.bf16.mxu0 0
    %738 = vmatpush1.bf16.msra.mxu0 0
    %739 = vmatprep.mubr.bf16.mxu0 0
    %740 = vmatmul.mubr.bf16.gmra.mrb[0].mxu0 %v705
    %v741 = vpop.f32.mrb[0].mxu0
    %v742 = vadd.f32 0.0, %v741
    %v743 = vpop.f32.mrb[0].mxu0
    %v744 = vpop.f32.mrb[0].mxu0
    %v745 = vpop.f32.mrb[0].mxu0
    %746 = vdwg.mxu0
    %v748 = vrot.slane %v742, 2
    %v750 = vadd.f32 %v465, %v748
    %v751 = vxor.u32 %v750, 2147483648
    %v752 = vmul.f32 %v751, 1.442695
    %v753 = vpow.pop %v752
    %v754 = vadd.f32 %v753, 1.0
    %v755 = vrcp.pop %v754
    %v756 = vmul.f32 1.0, %v755
    %v757 = vtanh.pop %v750
    %v759 = vrot.slane %v692, 6
    %v761 = vmul.f32 %v756, %v759
    %763 = vrot.lane.b32.xlu0 %v757, 32
    %v764 = vpop.permute.xlu0 %763
    %v766 = vmul.f32 %v756, %v764
    %768 = vrot.lane.b32.xlu0 %v766, 32
    %v769 = vpop.permute.xlu0 %768
    %v771 = vadd.f32 %v761, %v769
    %v772 = vtanh.pop %v771
    %774 = vrot.lane.b32.xlu0 %v772, 32
    %v775 = vpop.permute.xlu0 %774
    %v777 = vmul.f32 %v756, %v775
    %v778 = vsel %vm454, %v541, %v619
    %v779 = vsel %vm456, %v778, %v698
    %v780 = vsel %vm68, %v779, %v777
    %782 = vrot.lane.b32.xlu0 %v780, 64
    %v783 = vpop.permute.xlu0 %782
    %s785 = scalar_lea.vmem [#allocation3], 8
    %786 = vst.msk [vmem:[%s785] sm:$0xff] %vm145, %v783
    %s787 = scalar_lea.vmem [#allocation2], 16
    %v788 = vld [vmem:[%s787] sm:$0xff]
    %v789 = vpack.c.bf16 %v777, %v777
    %v791 = vrot.slane %v789, 3
    %792 = vrot.lane.b32.xlu0 %v791, 64
    %v793 = vpop.permute.xlu0 %792
    %v795 = vsel %vm145, %v793, 0
    %797 = vmatprep.subr.bf16.mxu0 0
    %798 = vmatpush1.bf16.msra.mxu0 %v141
    %799 = vmatprep.subr.bf16.mxu0 0
    %800 = vmatpush1.bf16.msra.mxu0 %v142
    %801 = vmatprep.subr.bf16.mxu0 0
    %802 = vmatpush1.bf16.msra.mxu0 0
    %803 = vmatprep.subr.bf16.mxu0 0
    %804 = vmatpush1.bf16.msra.mxu0 0
    %805 = vmatprep.subr.bf16.mxu0 0
    %806 = vmatpush1.bf16.msra.mxu0 0
    %807 = vmatprep.subr.bf16.mxu0 0
    %808 = vmatpush1.bf16.msra.mxu0 0
    %809 = vmatprep.subr.bf16.mxu0 0
    %810 = vmatpush1.bf16.msra.mxu0 0
    %811 = vmatprep.subr.bf16.mxu0 0
    %812 = vmatpush1.bf16.msra.mxu0 0
    %813 = vmatprep.subr.bf16.mxu0 0
    %814 = vmatpush1.bf16.msra.mxu0 0
    %815 = vmatprep.subr.bf16.mxu0 0
    %816 = vmatpush1.bf16.msra.mxu0 0
    %817 = vmatprep.subr.bf16.mxu0 0
    %818 = vmatpush1.bf16.msra.mxu0 0
    %819 = vmatprep.subr.bf16.mxu0 0
    %820 = vmatpush1.bf16.msra.mxu0 0
    %821 = vmatprep.subr.bf16.mxu0 0
    %822 = vmatpush1.bf16.msra.mxu0 0
    %823 = vmatprep.subr.bf16.mxu0 0
    %824 = vmatpush1.bf16.msra.mxu0 0
    %825 = vmatprep.subr.bf16.mxu0 0
    %826 = vmatpush1.bf16.msra.mxu0 0
    %827 = vmatprep.subr.bf16.mxu0 0
    %828 = vmatpush1.bf16.msra.mxu0 0
    %829 = vmatprep.mubr.bf16.mxu0 0
    %830 = vmatmul.mubr.bf16.gmra.mrb[0].mxu0 %v795
    %v831 = vpop.f32.mrb[0].mxu0
    %v832 = vadd.f32 0.0, %v831
    %v833 = vpop.f32.mrb[0].mxu0
    %v834 = vpop.f32.mrb[0].mxu0
    %v835 = vpop.f32.mrb[0].mxu0
    %836 = vdwg.mxu0
    %v837 = vadd.f32 %v788, %v832
    %v838 = vxor.u32 %v837, 2147483648
    %v839 = vmul.f32 %v838, 1.442695
    %v840 = vpow.pop %v839
    %v841 = vadd.f32 %v840, 1.0
    %v842 = vrcp.pop %v841
    %v843 = vmul.f32 1.0, %v842
    %v844 = vtanh.pop %v837
    %v846 = vrot.slane %v771, 6
    %v848 = vmul.f32 %v843, %v846
    %850 = vrot.lane.b32.xlu0 %v844, 32
    %v851 = vpop.permute.xlu0 %850
    %v853 = vmul.f32 %v843, %v851
    %855 = vrot.lane.b32.xlu0 %v853, 32
    %v856 = vpop.permute.xlu0 %855
    %v858 = vadd.f32 %v848, %v856
    %v859 = vtanh.pop %v858
    %861 = vrot.lane.b32.xlu0 %v859, 32
    %v862 = vpop.permute.xlu0 %861
    %v864 = vmul.f32 %v843, %v862
    %v865 = vpack.c.bf16 %v864, %v864
    %867 = vrot.lane.b32.xlu0 %v865, 64
    %v868 = vpop.permute.xlu0 %867
    %v870 = vsel %vm145, %v868, 0
    %872 = vmatprep.subr.bf16.mxu0 0
    %873 = vmatpush1.bf16.msra.mxu0 %v141
    %874 = vmatprep.subr.bf16.mxu0 0
    %875 = vmatpush1.bf16.msra.mxu0 %v142
    %876 = vmatprep.subr.bf16.mxu0 0
    %877 = vmatpush1.bf16.msra.mxu0 0
    %878 = vmatprep.subr.bf16.mxu0 0
    %879 = vmatpush1.bf16.msra.mxu0 0
    %880 = vmatprep.subr.bf16.mxu0 0
    %881 = vmatpush1.bf16.msra.mxu0 0
    %882 = vmatprep.subr.bf16.mxu0 0
    %883 = vmatpush1.bf16.msra.mxu0 0
    %884 = vmatprep.subr.bf16.mxu0 0
    %885 = vmatpush1.bf16.msra.mxu0 0
    %886 = vmatprep.subr.bf16.mxu0 0
    %887 = vmatpush1.bf16.msra.mxu0 0
    %888 = vmatprep.subr.bf16.mxu0 0
    %889 = vmatpush1.bf16.msra.mxu0 0
    %890 = vmatprep.subr.bf16.mxu0 0
    %891 = vmatpush1.bf16.msra.mxu0 0
    %892 = vmatprep.subr.bf16.mxu0 0
    %893 = vmatpush1.bf16.msra.mxu0 0
    %894 = vmatprep.subr.bf16.mxu0 0
    %895 = vmatpush1.bf16.msra.mxu0 0
    %896 = vmatprep.subr.bf16.mxu0 0
    %897 = vmatpush1.bf16.msra.mxu0 0
    %898 = vmatprep.subr.bf16.mxu0 0
    %899 = vmatpush1.bf16.msra.mxu0 0
    %900 = vmatprep.subr.bf16.mxu0 0
    %901 = vmatpush1.bf16.msra.mxu0 0
    %902 = vmatprep.subr.bf16.mxu0 0
    %903 = vmatpush1.bf16.msra.mxu0 0
    %904 = vmatprep.mubr.bf16.mxu0 0
    %905 = vmatmul.mubr.bf16.gmra.mrb[0].mxu0 %v870
    %v906 = vpop.f32.mrb[0].mxu0
    %v907 = vadd.f32 0.0, %v906
    %v908 = vpop.f32.mrb[0].mxu0
    %v909 = vpop.f32.mrb[0].mxu0
    %v910 = vpop.f32.mrb[0].mxu0
    %911 = vdwg.mxu0
    %v913 = vrot.slane %v907, 6
    %v915 = vadd.f32 %v788, %v913
    %v916 = vxor.u32 %v915, 2147483648
    %v917 = vmul.f32 %v916, 1.442695
    %v918 = vpow.pop %v917
    %v919 = vadd.f32 %v918, 1.0
    %v920 = vrcp.pop %v919
    %v921 = vmul.f32 1.0, %v920
    %v922 = vtanh.pop %v915
    %v924 = vrot.slane %v858, 6
    %v926 = vmul.f32 %v921, %v924
    %928 = vrot.lane.b32.xlu0 %v922, 32
    %v929 = vpop.permute.xlu0 %928
    %v931 = vmul.f32 %v921, %v929
    %933 = vrot.lane.b32.xlu0 %v931, 32
    %v934 = vpop.permute.xlu0 %933
    %v936 = vadd.f32 %v926, %v934
    %v937 = vtanh.pop %v936
    %939 = vrot.lane.b32.xlu0 %v937, 32
    %v940 = vpop.permute.xlu0 %939
    %v942 = vmul.f32 %v921, %v940
    %v943 = vpack.c.bf16 %v942, %v942
    %v945 = vrot.slane %v943, 1
    %946 = vrot.lane.b32.xlu0 %v945, 64
    %v947 = vpop.permute.xlu0 %946
    %v949 = vsel %vm145, %v947, 0
    %951 = vmatprep.subr.bf16.mxu0 0
    %952 = vmatpush1.bf16.msra.mxu0 %v141
    %953 = vmatprep.subr.bf16.mxu0 0
    %954 = vmatpush1.bf16.msra.mxu0 %v142
    %955 = vmatprep.subr.bf16.mxu0 0
    %956 = vmatpush1.bf16.msra.mxu0 0
    %957 = vmatprep.subr.bf16.mxu0 0
    %958 = vmatpush1.bf16.msra.mxu0 0
    %959 = vmatprep.subr.bf16.mxu0 0
    %960 = vmatpush1.bf16.msra.mxu0 0
    %961 = vmatprep.subr.bf16.mxu0 0
    %962 = vmatpush1.bf16.msra.mxu0 0
    %963 = vmatprep.subr.bf16.mxu0 0
    %964 = vmatpush1.bf16.msra.mxu0 0
    %965 = vmatprep.subr.bf16.mxu0 0
    %966 = vmatpush1.bf16.msra.mxu0 0
    %967 = vmatprep.subr.bf16.mxu0 0
    %968 = vmatpush1.bf16.msra.mxu0 0
    %969 = vmatprep.subr.bf16.mxu0 0
    %970 = vmatpush1.bf16.msra.mxu0 0
    %971 = vmatprep.subr.bf16.mxu0 0
    %972 = vmatpush1.bf16.msra.mxu0 0
    %973 = vmatprep.subr.bf16.mxu0 0
    %974 = vmatpush1.bf16.msra.mxu0 0
    %975 = vmatprep.subr.bf16.mxu0 0
    %976 = vmatpush1.bf16.msra.mxu0 0
    %977 = vmatprep.subr.bf16.mxu0 0
    %978 = vmatpush1.bf16.msra.mxu0 0
    %979 = vmatprep.subr.bf16.mxu0 0
    %980 = vmatpush1.bf16.msra.mxu0 0
    %981 = vmatprep.subr.bf16.mxu0 0
    %982 = vmatpush1.bf16.msra.mxu0 0
    %983 = vmatprep.mubr.bf16.mxu0 0
    %984 = vmatmul.mubr.bf16.gmra.mrb[0].mxu0 %v949
    %v985 = vpop.f32.mrb[0].mxu0
    %v986 = vadd.f32 0.0, %v985
    %v987 = vpop.f32.mrb[0].mxu0
    %v988 = vpop.f32.mrb[0].mxu0
    %v989 = vpop.f32.mrb[0].mxu0
    %990 = vdwg.mxu0
    %v992 = vrot.slane %v986, 4
    %v994 = vadd.f32 %v788, %v992
    %v995 = vxor.u32 %v994, 2147483648
    %v996 = vmul.f32 %v995, 1.442695
    %v997 = vpow.pop %v996
    %v998 = vadd.f32 %v997, 1.0
    %v999 = vrcp.pop %v998
    %v1000 = vmul.f32 1.0, %v999
    %v1001 = vtanh.pop %v994
    %v1003 = vrot.slane %v936, 6
    %v1005 = vmul.f32 %v1000, %v1003
    %1007 = vrot.lane.b32.xlu0 %v1001, 32
    %v1008 = vpop.permute.xlu0 %1007
    %v1010 = vmul.f32 %v1000, %v1008
    %1012 = vrot.lane.b32.xlu0 %v1010, 32
    %v1013 = vpop.permute.xlu0 %1012
    %v1015 = vadd.f32 %v1005, %v1013
    %v1016 = vtanh.pop %v1015
    %1018 = vrot.lane.b32.xlu0 %v1016, 32
    %v1019 = vpop.permute.xlu0 %1018
    %v1021 = vmul.f32 %v1000, %v1019
    %v1022 = vpack.c.bf16 %v1021, %v1021
    %v1024 = vrot.slane %v1022, 2
    %1025 = vrot.lane.b32.xlu0 %v1024, 64
    %v1026 = vpop.permute.xlu0 %1025
    %v1028 = vsel %vm145, %v1026, 0
    %1030 = vmatprep.subr.bf16.mxu0 0
    %1031 = vmatpush1.bf16.msra.mxu0 %v141
    %1032 = vmatprep.subr.bf16.mxu0 0
    %1033 = vmatpush1.bf16.msra.mxu0 %v142
    %1034 = vmatprep.subr.bf16.mxu0 0
    %1035 = vmatpush1.bf16.msra.mxu0 0
    %1036 = vmatprep.subr.bf16.mxu0 0
    %1037 = vmatpush1.bf16.msra.mxu0 0
    %1038 = vmatprep.subr.bf16.mxu0 0
    %1039 = vmatpush1.bf16.msra.mxu0 0
    %1040 = vmatprep.subr.bf16.mxu0 0
    %1041 = vmatpush1.bf16.msra.mxu0 0
    %1042 = vmatprep.subr.bf16.mxu0 0
    %1043 = vmatpush1.bf16.msra.mxu0 0
    %1044 = vmatprep.subr.bf16.mxu0 0
    %1045 = vmatpush1.bf16.msra.mxu0 0
    %1046 = vmatprep.subr.bf16.mxu0 0
    %1047 = vmatpush1.bf16.msra.mxu0 0
    %1048 = vmatprep.subr.bf16.mxu0 0
    %1049 = vmatpush1.bf16.msra.mxu0 0
    %1050 = vmatprep.subr.bf16.mxu0 0
    %1051 = vmatpush1.bf16.msra.mxu0 0
    %1052 = vmatprep.subr.bf16.mxu0 0
    %1053 = vmatpush1.bf16.msra.mxu0 0
    %1054 = vmatprep.subr.bf16.mxu0 0
    %1055 = vmatpush1.bf16.msra.mxu0 0
    %1056 = vmatprep.subr.bf16.mxu0 0
    %1057 = vmatpush1.bf16.msra.mxu0 0
    %1058 = vmatprep.subr.bf16.mxu0 0
    %1059 = vmatpush1.bf16.msra.mxu0 0
    %1060 = vmatprep.subr.bf16.mxu0 0
    %1061 = vmatpush1.bf16.msra.mxu0 0
    %1062 = vmatprep.mubr.bf16.mxu0 0
    %1063 = vmatmul.mubr.bf16.gmra.mrb[0].mxu0 %v1028
    %v1064 = vpop.f32.mrb[0].mxu0
    %v1065 = vadd.f32 0.0, %v1064
    %v1066 = vpop.f32.mrb[0].mxu0
    %v1067 = vpop.f32.mrb[0].mxu0
    %v1068 = vpop.f32.mrb[0].mxu0
    %1069 = vdwg.mxu0
    %v1071 = vrot.slane %v1065, 2
    %v1073 = vadd.f32 %v788, %v1071
    %v1074 = vxor.u32 %v1073, 2147483648
    %v1075 = vmul.f32 %v1074, 1.442695
    %v1076 = vpow.pop %v1075
    %v1077 = vadd.f32 %v1076, 1.0
    %v1078 = vrcp.pop %v1077
    %v1079 = vmul.f32 1.0, %v1078
    %v1080 = vtanh.pop %v1073
    %v1082 = vrot.slane %v1015, 6
    %v1084 = vmul.f32 %v1079, %v1082
    %1086 = vrot.lane.b32.xlu0 %v1080, 32
    %v1087 = vpop.permute.xlu0 %1086
    %v1089 = vmul.f32 %v1079, %v1087
    %1091 = vrot.lane.b32.xlu0 %v1089, 32
    %v1092 = vpop.permute.xlu0 %1091
    %v1094 = vadd.f32 %v1084, %v1092
    %v1095 = vtanh.pop %v1094
    %1097 = vrot.lane.b32.xlu0 %v1095, 32
    %v1098 = vpop.permute.xlu0 %1097
    %v1100 = vmul.f32 %v1079, %v1098
    %v1101 = vsel %vm454, %v864, %v942
    %v1102 = vsel %vm456, %v1101, %v1021
    %v1103 = vsel %vm68, %v1102, %v1100
    %1105 = vrot.lane.b32.xlu0 %v1103, 64
    %v1106 = vpop.permute.xlu0 %1105
    %s1108 = scalar_lea.vmem [#allocation3], 16
    %1109 = vst.msk [vmem:[%s1108] sm:$0xff] %vm145, %v1106
    %s1110 = scalar_lea.vmem [#allocation2], 24
    %v1111 = vld [vmem:[%s1110] sm:$0xff]
    %v1112 = vpack.c.bf16 %v1100, %v1100
    %v1114 = vrot.slane %v1112, 3
    %1115 = vrot.lane.b32.xlu0 %v1114, 64
    %v1116 = vpop.permute.xlu0 %1115
    %v1118 = vsel %vm145, %v1116, 0
    %1120 = vmatprep.subr.bf16.mxu0 0
    %1121 = vmatpush1.bf16.msra.mxu0 %v141
    %1122 = vmatprep.subr.bf16.mxu0 0
    %1123 = vmatpush1.bf16.msra.mxu0 %v142
    %1124 = vmatprep.subr.bf16.mxu0 0
    %1125 = vmatpush1.bf16.msra.mxu0 0
    %1126 = vmatprep.subr.bf16.mxu0 0
    %1127 = vmatpush1.bf16.msra.mxu0 0
    %1128 = vmatprep.subr.bf16.mxu0 0
    %1129 = vmatpush1.bf16.msra.mxu0 0
    %1130 = vmatprep.subr.bf16.mxu0 0
    %1131 = vmatpush1.bf16.msra.mxu0 0
    %1132 = vmatprep.subr.bf16.mxu0 0
    %1133 = vmatpush1.bf16.msra.mxu0 0
    %1134 = vmatprep.subr.bf16.mxu0 0
    %1135 = vmatpush1.bf16.msra.mxu0 0
    %1136 = vmatprep.subr.bf16.mxu0 0
    %1137 = vmatpush1.bf16.msra.mxu0 0
    %1138 = vmatprep.subr.bf16.mxu0 0
    %1139 = vmatpush1.bf16.msra.mxu0 0
    %1140 = vmatprep.subr.bf16.mxu0 0
    %1141 = vmatpush1.bf16.msra.mxu0 0
    %1142 = vmatprep.subr.bf16.mxu0 0
    %1143 = vmatpush1.bf16.msra.mxu0 0
    %1144 = vmatprep.subr.bf16.mxu0 0
    %1145 = vmatpush1.bf16.msra.mxu0 0
    %1146 = vmatprep.subr.bf16.mxu0 0
    %1147 = vmatpush1.bf16.msra.mxu0 0
    %1148 = vmatprep.subr.bf16.mxu0 0
    %1149 = vmatpush1.bf16.msra.mxu0 0
    %1150 = vmatprep.subr.bf16.mxu0 0
    %1151 = vmatpush1.bf16.msra.mxu0 0
    %1152 = vmatprep.mubr.bf16.mxu0 0
    %1153 = vmatmul.mubr.bf16.gmra.mrb[0].mxu0 %v1118
    %v1154 = vpop.f32.mrb[0].mxu0
    %v1155 = vadd.f32 0.0, %v1154
    %v1156 = vpop.f32.mrb[0].mxu0
    %v1157 = vpop.f32.mrb[0].mxu0
    %v1158 = vpop.f32.mrb[0].mxu0
    %1159 = vdwg.mxu0
    %v1160 = vadd.f32 %v1111, %v1155
    %v1161 = vxor.u32 %v1160, 2147483648
    %v1162 = vmul.f32 %v1161, 1.442695
    %v1163 = vpow.pop %v1162
    %v1164 = vadd.f32 %v1163, 1.0
    %v1165 = vrcp.pop %v1164
    %v1166 = vmul.f32 1.0, %v1165
    %v1167 = vtanh.pop %v1160
    %v1169 = vrot.slane %v1094, 6
    %v1171 = vmul.f32 %v1166, %v1169
    %1173 = vrot.lane.b32.xlu0 %v1167, 32
    %v1174 = vpop.permute.xlu0 %1173
    %v1176 = vmul.f32 %v1166, %v1174
    %1178 = vrot.lane.b32.xlu0 %v1176, 32
    %v1179 = vpop.permute.xlu0 %1178
    %v1181 = vadd.f32 %v1171, %v1179
    %v1182 = vtanh.pop %v1181
    %1184 = vrot.lane.b32.xlu0 %v1182, 32
    %v1185 = vpop.permute.xlu0 %1184
    %v1187 = vmul.f32 %v1166, %v1185
    %v1188 = vpack.c.bf16 %v1187, %v1187
    %1190 = vrot.lane.b32.xlu0 %v1188, 64
    %v1191 = vpop.permute.xlu0 %1190
    %v1193 = vsel %vm145, %v1191, 0
    %1195 = vmatprep.subr.bf16.mxu0 0
    %1196 = vmatpush1.bf16.msra.mxu0 %v141
    %1197 = vmatprep.subr.bf16.mxu0 0
    %1198 = vmatpush1.bf16.msra.mxu0 %v142
    %1199 = vmatprep.subr.bf16.mxu0 0
    %1200 = vmatpush1.bf16.msra.mxu0 0
    %1201 = vmatprep.subr.bf16.mxu0 0
    %1202 = vmatpush1.bf16.msra.mxu0 0
    %1203 = vmatprep.subr.bf16.mxu0 0
    %1204 = vmatpush1.bf16.msra.mxu0 0
    %1205 = vmatprep.subr.bf16.mxu0 0
    %1206 = vmatpush1.bf16.msra.mxu0 0
    %1207 = vmatprep.subr.bf16.mxu0 0
    %1208 = vmatpush1.bf16.msra.mxu0 0
    %1209 = vmatprep.subr.bf16.mxu0 0
    %1210 = vmatpush1.bf16.msra.mxu0 0
    %1211 = vmatprep.subr.bf16.mxu0 0
    %1212 = vmatpush1.bf16.msra.mxu0 0
    %1213 = vmatprep.subr.bf16.mxu0 0
    %1214 = vmatpush1.bf16.msra.mxu0 0
    %1215 = vmatprep.subr.bf16.mxu0 0
    %1216 = vmatpush1.bf16.msra.mxu0 0
    %1217 = vmatprep.subr.bf16.mxu0 0
    %1218 = vmatpush1.bf16.msra.mxu0 0
    %1219 = vmatprep.subr.bf16.mxu0 0
    %1220 = vmatpush1.bf16.msra.mxu0 0
    %1221 = vmatprep.subr.bf16.mxu0 0
    %1222 = vmatpush1.bf16.msra.mxu0 0
    %1223 = vmatprep.subr.bf16.mxu0 0
    %1224 = vmatpush1.bf16.msra.mxu0 0
    %1225 = vmatprep.subr.bf16.mxu0 0
    %1226 = vmatpush1.bf16.msra.mxu0 0
    %1227 = vmatprep.mubr.bf16.mxu0 0
    %1228 = vmatmul.mubr.bf16.gmra.mrb[0].mxu0 %v1193
    %v1229 = vpop.f32.mrb[0].mxu0
    %v1230 = vadd.f32 0.0, %v1229
    %v1231 = vpop.f32.mrb[0].mxu0
    %v1232 = vpop.f32.mrb[0].mxu0
    %v1233 = vpop.f32.mrb[0].mxu0
    %1234 = vdwg.mxu0
    %v1236 = vrot.slane %v1230, 6
    %v1238 = vadd.f32 %v1111, %v1236
    %v1239 = vxor.u32 %v1238, 2147483648
    %v1240 = vmul.f32 %v1239, 1.442695
    %v1241 = vpow.pop %v1240
    %v1242 = vadd.f32 %v1241, 1.0
    %v1243 = vrcp.pop %v1242
    %v1244 = vmul.f32 1.0, %v1243
    %v1245 = vtanh.pop %v1238
    %v1247 = vrot.slane %v1181, 6
    %v1249 = vmul.f32 %v1244, %v1247
    %1251 = vrot.lane.b32.xlu0 %v1245, 32
    %v1252 = vpop.permute.xlu0 %1251
    %v1254 = vmul.f32 %v1244, %v1252
    %1256 = vrot.lane.b32.xlu0 %v1254, 32
    %v1257 = vpop.permute.xlu0 %1256
    %v1259 = vadd.f32 %v1249, %v1257
    %v1260 = vtanh.pop %v1259
    %1262 = vrot.lane.b32.xlu0 %v1260, 32
    %v1263 = vpop.permute.xlu0 %1262
    %v1265 = vmul.f32 %v1244, %v1263
    %v1266 = vpack.c.bf16 %v1265, %v1265
    %v1268 = vrot.slane %v1266, 1
    %1269 = vrot.lane.b32.xlu0 %v1268, 64
    %v1270 = vpop.permute.xlu0 %1269
    %v1272 = vsel %vm145, %v1270, 0
    %1274 = vmatprep.subr.bf16.mxu0 0
    %1275 = vmatpush1.bf16.msra.mxu0 %v141
    %1276 = vmatprep.subr.bf16.mxu0 0
    %1277 = vmatpush1.bf16.msra.mxu0 %v142
    %1278 = vmatprep.subr.bf16.mxu0 0
    %1279 = vmatpush1.bf16.msra.mxu0 0
    %1280 = vmatprep.subr.bf16.mxu0 0
    %1281 = vmatpush1.bf16.msra.mxu0 0
    %1282 = vmatprep.subr.bf16.mxu0 0
    %1283 = vmatpush1.bf16.msra.mxu0 0
    %1284 = vmatprep.subr.bf16.mxu0 0
    %1285 = vmatpush1.bf16.msra.mxu0 0
    %1286 = vmatprep.subr.bf16.mxu0 0
    %1287 = vmatpush1.bf16.msra.mxu0 0
    %1288 = vmatprep.subr.bf16.mxu0 0
    %1289 = vmatpush1.bf16.msra.mxu0 0
    %1290 = vmatprep.subr.bf16.mxu0 0
    %1291 = vmatpush1.bf16.msra.mxu0 0
    %1292 = vmatprep.subr.bf16.mxu0 0
    %1293 = vmatpush1.bf16.msra.mxu0 0
    %1294 = vmatprep.subr.bf16.mxu0 0
    %1295 = vmatpush1.bf16.msra.mxu0 0
    %1296 = vmatprep.subr.bf16.mxu0 0
    %1297 = vmatpush1.bf16.msra.mxu0 0
    %1298 = vmatprep.subr.bf16.mxu0 0
    %1299 = vmatpush1.bf16.msra.mxu0 0
    %1300 = vmatprep.subr.bf16.mxu0 0
    %1301 = vmatpush1.bf16.msra.mxu0 0
    %1302 = vmatprep.subr.bf16.mxu0 0
    %1303 = vmatpush1.bf16.msra.mxu0 0
    %1304 = vmatprep.subr.bf16.mxu0 0
    %1305 = vmatpush1.bf16.msra.mxu0 0
    %1306 = vmatprep.mubr.bf16.mxu0 0
    %1307 = vmatmul.mubr.bf16.gmra.mrb[0].mxu0 %v1272
    %v1308 = vpop.f32.mrb[0].mxu0
    %v1309 = vadd.f32 0.0, %v1308
    %v1310 = vpop.f32.mrb[0].mxu0
    %v1311 = vpop.f32.mrb[0].mxu0
    %v1312 = vpop.f32.mrb[0].mxu0
    %1313 = vdwg.mxu0
    %v1315 = vrot.slane %v1309, 4
    %v1317 = vadd.f32 %v1111, %v1315
    %v1318 = vxor.u32 %v1317, 2147483648
    %v1319 = vmul.f32 %v1318, 1.442695
    %v1320 = vpow.pop %v1319
    %v1321 = vadd.f32 %v1320, 1.0
    %v1322 = vrcp.pop %v1321
    %v1323 = vmul.f32 1.0, %v1322
    %v1324 = vtanh.pop %v1317
    %v1326 = vrot.slane %v1259, 6
    %v1328 = vmul.f32 %v1323, %v1326
    %1330 = vrot.lane.b32.xlu0 %v1324, 32
    %v1331 = vpop.permute.xlu0 %1330
    %v1333 = vmul.f32 %v1323, %v1331
    %1335 = vrot.lane.b32.xlu0 %v1333, 32
    %v1336 = vpop.permute.xlu0 %1335
    %v1338 = vadd.f32 %v1328, %v1336
    %v1339 = vtanh.pop %v1338
    %1341 = vrot.lane.b32.xlu0 %v1339, 32
    %v1342 = vpop.permute.xlu0 %1341
    %v1344 = vmul.f32 %v1323, %v1342
    %v1345 = vpack.c.bf16 %v1344, %v1344
    %v1347 = vrot.slane %v1345, 2
    %1348 = vrot.lane.b32.xlu0 %v1347, 64
    %v1349 = vpop.permute.xlu0 %1348
    %v1351 = vsel %vm145, %v1349, 0
    %1353 = vmatprep.subr.bf16.mxu0 0
    %1354 = vmatpush1.bf16.msra.mxu0 %v141
    %1355 = vmatprep.subr.bf16.mxu0 0
    %1356 = vmatpush1.bf16.msra.mxu0 %v142
    %1357 = vmatprep.subr.bf16.mxu0 0
    %1358 = vmatpush1.bf16.msra.mxu0 0
    %1359 = vmatprep.subr.bf16.mxu0 0
    %1360 = vmatpush1.bf16.msra.mxu0 0
    %1361 = vmatprep.subr.bf16.mxu0 0
    %1362 = vmatpush1.bf16.msra.mxu0 0
    %1363 = vmatprep.subr.bf16.mxu0 0
    %1364 = vmatpush1.bf16.msra.mxu0 0
    %1365 = vmatprep.subr.bf16.mxu0 0
    %1366 = vmatpush1.bf16.msra.mxu0 0
    %1367 = vmatprep.subr.bf16.mxu0 0
    %1368 = vmatpush1.bf16.msra.mxu0 0
    %1369 = vmatprep.subr.bf16.mxu0 0
    %1370 = vmatpush1.bf16.msra.mxu0 0
    %1371 = vmatprep.subr.bf16.mxu0 0
    %1372 = vmatpush1.bf16.msra.mxu0 0
    %1373 = vmatprep.subr.bf16.mxu0 0
    %1374 = vmatpush1.bf16.msra.mxu0 0
    %1375 = vmatprep.subr.bf16.mxu0 0
    %1376 = vmatpush1.bf16.msra.mxu0 0
    %1377 = vmatprep.subr.bf16.mxu0 0
    %1378 = vmatpush1.bf16.msra.mxu0 0
    %1379 = vmatprep.subr.bf16.mxu0 0
    %1380 = vmatpush1.bf16.msra.mxu0 0
    %1381 = vmatprep.subr.bf16.mxu0 0
    %1382 = vmatpush1.bf16.msra.mxu0 0
    %1383 = vmatprep.subr.bf16.mxu0 0
    %1384 = vmatpush1.bf16.msra.mxu0 0
    %1385 = vmatprep.mubr.bf16.mxu0 0
    %1386 = vmatmul.mubr.bf16.gmra.mrb[0].mxu0 %v1351
    %v1387 = vpop.f32.mrb[0].mxu0
    %v1388 = vadd.f32 0.0, %v1387
    %v1389 = vpop.f32.mrb[0].mxu0
    %v1390 = vpop.f32.mrb[0].mxu0
    %v1391 = vpop.f32.mrb[0].mxu0
    %1392 = vdwg.mxu0
    %v1394 = vrot.slane %v1388, 2
    %v1396 = vadd.f32 %v1111, %v1394
    %v1397 = vxor.u32 %v1396, 2147483648
    %v1398 = vmul.f32 %v1397, 1.442695
    %v1399 = vpow.pop %v1398
    %v1400 = vadd.f32 %v1399, 1.0
    %v1401 = vrcp.pop %v1400
    %v1402 = vmul.f32 1.0, %v1401
    %v1403 = vtanh.pop %v1396
    %v1405 = vrot.slane %v1338, 6
    %v1407 = vmul.f32 %v1402, %v1405
    %1409 = vrot.lane.b32.xlu0 %v1403, 32
    %v1410 = vpop.permute.xlu0 %1409
    %v1412 = vmul.f32 %v1402, %v1410
    %1414 = vrot.lane.b32.xlu0 %v1412, 32
    %v1415 = vpop.permute.xlu0 %1414
    %v1417 = vadd.f32 %v1407, %v1415
    %v1418 = vtanh.pop %v1417
    %1420 = vrot.lane.b32.xlu0 %v1418, 32
    %v1421 = vpop.permute.xlu0 %1420
    %v1423 = vmul.f32 %v1402, %v1421
    %v1424 = vsel %vm454, %v1187, %v1265
    %v1425 = vsel %vm456, %v1424, %v1344
    %v1426 = vsel %vm68, %v1425, %v1423
    %1428 = vrot.lane.b32.xlu0 %v1426, 64
    %v1429 = vpop.permute.xlu0 %1428
    %s1431 = scalar_lea.vmem [#allocation3], 24
    %1432 = vst.msk [vmem:[%s1431] sm:$0xff] %vm145, %v1429
    %1434 = vrot.lane.b32.xlu0 %v1423, 64
    %v1435 = vpop.permute.xlu0 %1434
    %vm1437 = vcmask 261126
    %1438 = vst.msk [vmem:[#allocation6 - $0x6] sm:$0xc0] %vm1437, %v1435
    %1440 = vrot.lane.b32.xlu0 %v1417, 96
    %v1441 = vpop.permute.xlu0 %1440
    %1443 = vst.msk [vmem:[#allocation8 - $0x6] sm:$0xc0] %vm1437, %v1441
    %v1444 = vld [vmem:[#allocation3] sm:$0xff]
    %v1445 = vld [vmem:[#allocation3 + $0x8] sm:$0xff]
    %v1446 = vld [vmem:[#allocation3 + $0x10] sm:$0xff]
    %v1447 = vld [vmem:[#allocation3 + $0x18] sm:$0xff]
    %v1448 = vpack.c.bf16 %v1445, %v1444
    %v1449 = vpack.c.bf16 %v1447, %v1446
    %v1450 = vld [vmem:[%s2] sm:$0xf]
    %v1451 = vld [vmem:[%s2 + $0x4] sm:$0xf]
    %v1452 = vld [vmem:[%s2 + $0x8] sm:$0xf]
    %v1453 = vld [vmem:[%s2 + $0xc] sm:$0xf]
    %v1454 = vld [vmem:[%s6] sm:$0x1]
    %v1456 = vlaneseq
    %v1457 = vshrl.u32 %v1456, 7
    %v1458 = vsub.s32 0, %v1457
    %v1459 = vrot.slane %v1454, %v1458
    %v1465 = vunpack.c.l.b16 %v1450
    %v1466 = vunpack.c.l.b16 %v1451
    %v1467 = vunpack.c.l.b16 %v1452
    %v1468 = vunpack.c.l.b16 %v1453
    %v1469 = vpack.c.b16 %v1466, %v1465
    %v1470 = vpack.c.b16 %v1468, %v1467
    %v1474 = vsel %vm145, %v1448, 0
    %v1477 = vsel %vm145, %v1449, 0
    %1479 = vmatprep.subr.bf16.mxu0 0
    %1480 = vmatpush1.bf16.msra.mxu0 %v1469
    %1481 = vmatprep.subr.bf16.mxu0 0
    %1482 = vmatpush1.bf16.msra.mxu0 %v1470
    %1483 = vmatprep.subr.bf16.mxu0 0
    %1484 = vmatpush1.bf16.msra.mxu0 0
    %1485 = vmatprep.subr.bf16.mxu0 0
    %1486 = vmatpush1.bf16.msra.mxu0 0
    %1487 = vmatprep.subr.bf16.mxu0 0
    %1488 = vmatpush1.bf16.msra.mxu0 0
    %1489 = vmatprep.subr.bf16.mxu0 0
    %1490 = vmatpush1.bf16.msra.mxu0 0
    %1491 = vmatprep.subr.bf16.mxu0 0
    %1492 = vmatpush1.bf16.msra.mxu0 0
    %1493 = vmatprep.subr.bf16.mxu0 0
    %1494 = vmatpush1.bf16.msra.mxu0 0
    %1495 = vmatprep.subr.bf16.mxu0 0
    %1496 = vmatpush1.bf16.msra.mxu0 0
    %1497 = vmatprep.subr.bf16.mxu0 0
    %1498 = vmatpush1.bf16.msra.mxu0 0
    %1499 = vmatprep.subr.bf16.mxu0 0
    %1500 = vmatpush1.bf16.msra.mxu0 0
    %1501 = vmatprep.subr.bf16.mxu0 0
    %1502 = vmatpush1.bf16.msra.mxu0 0
    %1503 = vmatprep.subr.bf16.mxu0 0
    %1504 = vmatpush1.bf16.msra.mxu0 0
    %1505 = vmatprep.subr.bf16.mxu0 0
    %1506 = vmatpush1.bf16.msra.mxu0 0
    %1507 = vmatprep.subr.bf16.mxu0 0
    %1508 = vmatpush1.bf16.msra.mxu0 0
    %1509 = vmatprep.subr.bf16.mxu0 0
    %1510 = vmatpush1.bf16.msra.mxu0 0
    %1511 = vmatprep.mubr.bf16.mxu0 0
    %1512 = vmatmul.mubr.bf16.gmra.mrb[0].mxu0 %v1474
    %v1513 = vpop.f32.mrb[0].mxu0
    %v1514 = vadd.f32 %v1459, %v1513
    %v1515 = vpop.f32.mrb[0].mxu0
    %v1516 = vpop.f32.mrb[0].mxu0
    %v1517 = vadd.f32 %v1459, %v1516
    %v1518 = vpop.f32.mrb[0].mxu0
    %1519 = vmatprep.mubr.bf16.mxu0 0
    %1520 = vmatmul.mubr.bf16.gmra.mrb[0].mxu0 %v1477
    %v1521 = vpop.f32.mrb[0].mxu0
    %v1522 = vadd.f32 %v1459, %v1521
    %v1523 = vpop.f32.mrb[0].mxu0
    %v1524 = vpop.f32.mrb[0].mxu0
    %v1525 = vadd.f32 %v1459, %v1524
    %v1526 = vpop.f32.mrb[0].mxu0
    %1527 = vdwg.mxu0
    %1528 = vst [vmem:[#allocation2] sm:$0xff] %v1514
    %1529 = vst [vmem:[#allocation2 + $0x8] sm:$0xff] %v1517
    %1530 = vst [vmem:[#allocation2 + $0x10] sm:$0xff] %v1522
    %1531 = vst [vmem:[#allocation2 + $0x18] sm:$0xff] %v1525
    %v1532 = vld [vmem:[%s4] sm:$0xf]
    %v1533 = vld [vmem:[%s4 + $0x4] sm:$0xf]
    %v1534 = vld [vmem:[%s4 + $0x8] sm:$0xf]
    %v1535 = vld [vmem:[%s4 + $0xc] sm:$0xf]
    %s1536 = scalar_lea.vmem [#allocation6], 2
    %v1537 = vld [vmem:[%s1536] sm:$0x3]
    %s1538 = scalar_lea.vmem [#allocation8], 2
    %v1539 = vld [vmem:[%s1538] sm:$0x3]
    %v1540 = vld [vmem:[#allocation2] sm:$0xff]
    %v1541 = vpack.c.bf16 %v1537, %v1537
    %v1546 = vunpack.c.l.b16 %v1532
    %v1547 = vunpack.c.l.b16 %v1533
    %v1548 = vunpack.c.l.b16 %v1534
    %v1549 = vunpack.c.l.b16 %v1535
    %v1550 = vpack.c.b16 %v1547, %v1546
    %v1551 = vpack.c.b16 %v1549, %v1548
    %v1555 = vsel %vm145, %v1541, 0
    %1557 = vmatprep.subr.bf16.mxu0 0
    %1558 = vmatpush1.bf16.msra.mxu0 %v1550
    %1559 = vmatprep.subr.bf16.mxu0 0
    %1560 = vmatpush1.bf16.msra.mxu0 %v1551
    %1561 = vmatprep.subr.bf16.mxu0 0
    %1562 = vmatpush1.bf16.msra.mxu0 0
    %1563 = vmatprep.subr.bf16.mxu0 0
    %1564 = vmatpush1.bf16.msra.mxu0 0
    %1565 = vmatprep.subr.bf16.mxu0 0
    %1566 = vmatpush1.bf16.msra.mxu0 0
    %1567 = vmatprep.subr.bf16.mxu0 0
    %1568 = vmatpush1.bf16.msra.mxu0 0
    %1569 = vmatprep.subr.bf16.mxu0 0
    %1570 = vmatpush1.bf16.msra.mxu0 0
    %1571 = vmatprep.subr.bf16.mxu0 0
    %1572 = vmatpush1.bf16.msra.mxu0 0
    %1573 = vmatprep.subr.bf16.mxu0 0
    %1574 = vmatpush1.bf16.msra.mxu0 0
    %1575 = vmatprep.subr.bf16.mxu0 0
    %1576 = vmatpush1.bf16.msra.mxu0 0
    %1577 = vmatprep.subr.bf16.mxu0 0
    %1578 = vmatpush1.bf16.msra.mxu0 0
    %1579 = vmatprep.subr.bf16.mxu0 0
    %1580 = vmatpush1.bf16.msra.mxu0 0
    %1581 = vmatprep.subr.bf16.mxu0 0
    %1582 = vmatpush1.bf16.msra.mxu0 0
    %1583 = vmatprep.subr.bf16.mxu0 0
    %1584 = vmatpush1.bf16.msra.mxu0 0
    %1585 = vmatprep.subr.bf16.mxu0 0
    %1586 = vmatpush1.bf16.msra.mxu0 0
    %1587 = vmatprep.subr.bf16.mxu0 0
    %1588 = vmatpush1.bf16.msra.mxu0 0
    %1589 = vmatprep.mubr.bf16.mxu0 0
    %1590 = vmatmul.mubr.bf16.gmra.mrb[0].mxu0 %v1555
    %v1591 = vpop.f32.mrb[0].mxu0
    %v1592 = vadd.f32 0.0, %v1591
    %v1593 = vpop.f32.mrb[0].mxu0
    %v1594 = vpop.f32.mrb[0].mxu0
    %v1595 = vpop.f32.mrb[0].mxu0
    %1596 = vdwg.mxu0
    %v1597 = vadd.f32 %v1540, %v1592
    %v1598 = vxor.u32 %v1597, 2147483648
    %v1599 = vmul.f32 %v1598, 1.442695
    %v1600 = vpow.pop %v1599
    %v1601 = vadd.f32 %v1600, 1.0
    %v1602 = vrcp.pop %v1601
    %v1603 = vmul.f32 1.0, %v1602
    %v1604 = vtanh.pop %v1597
    %1606 = vrot.lane.b32.xlu0 %v1539, 32
    %v1607 = vpop.permute.xlu0 %1606
    %v1609 = vmul.f32 %v1603, %v1607
    %1611 = vrot.lane.b32.xlu0 %v1604, 32
    %v1612 = vpop.permute.xlu0 %1611
    %v1614 = vmul.f32 %v1603, %v1612
    %1616 = vrot.lane.b32.xlu0 %v1614, 32
    %v1617 = vpop.permute.xlu0 %1616
    %v1619 = vadd.f32 %v1609, %v1617
    %v1620 = vtanh.pop %v1619
    %1622 = vrot.lane.b32.xlu0 %v1620, 32
    %v1623 = vpop.permute.xlu0 %1622
    %v1625 = vmul.f32 %v1603, %v1623
    %v1626 = vpack.c.bf16 %v1625, %v1625
    %1628 = vrot.lane.b32.xlu0 %v1626, 64
    %v1629 = vpop.permute.xlu0 %1628
    %v1631 = vsel %vm145, %v1629, 0
    %1633 = vmatprep.subr.bf16.mxu0 0
    %1634 = vmatpush1.bf16.msra.mxu0 %v1550
    %1635 = vmatprep.subr.bf16.mxu0 0
    %1636 = vmatpush1.bf16.msra.mxu0 %v1551
    %1637 = vmatprep.subr.bf16.mxu0 0
    %1638 = vmatpush1.bf16.msra.mxu0 0
    %1639 = vmatprep.subr.bf16.mxu0 0
    %1640 = vmatpush1.bf16.msra.mxu0 0
    %1641 = vmatprep.subr.bf16.mxu0 0
    %1642 = vmatpush1.bf16.msra.mxu0 0
    %1643 = vmatprep.subr.bf16.mxu0 0
    %1644 = vmatpush1.bf16.msra.mxu0 0
    %1645 = vmatprep.subr.bf16.mxu0 0
    %1646 = vmatpush1.bf16.msra.mxu0 0
    %1647 = vmatprep.subr.bf16.mxu0 0
    %1648 = vmatpush1.bf16.msra.mxu0 0
    %1649 = vmatprep.subr.bf16.mxu0 0
    %1650 = vmatpush1.bf16.msra.mxu0 0
    %1651 = vmatprep.subr.bf16.mxu0 0
    %1652 = vmatpush1.bf16.msra.mxu0 0
    %1653 = vmatprep.subr.bf16.mxu0 0
    %1654 = vmatpush1.bf16.msra.mxu0 0
    %1655 = vmatprep.subr.bf16.mxu0 0
    %1656 = vmatpush1.bf16.msra.mxu0 0
    %1657 = vmatprep.subr.bf16.mxu0 0
    %1658 = vmatpush1.bf16.msra.mxu0 0
    %1659 = vmatprep.subr.bf16.mxu0 0
    %1660 = vmatpush1.bf16.msra.mxu0 0
    %1661 = vmatprep.subr.bf16.mxu0 0
    %1662 = vmatpush1.bf16.msra.mxu0 0
    %1663 = vmatprep.subr.bf16.mxu0 0
    %1664 = vmatpush1.bf16.msra.mxu0 0
    %1665 = vmatprep.mubr.bf16.mxu0 0
    %1666 = vmatmul.mubr.bf16.gmra.mrb[0].mxu0 %v1631
    %v1667 = vpop.f32.mrb[0].mxu0
    %v1668 = vadd.f32 0.0, %v1667
    %v1669 = vpop.f32.mrb[0].mxu0
    %v1670 = vpop.f32.mrb[0].mxu0
    %v1671 = vpop.f32.mrb[0].mxu0
    %1672 = vdwg.mxu0
    %v1674 = vrot.slane %v1668, 6
    %v1676 = vadd.f32 %v1540, %v1674
    %v1677 = vxor.u32 %v1676, 2147483648
    %v1678 = vmul.f32 %v1677, 1.442695
    %v1679 = vpow.pop %v1678
    %v1680 = vadd.f32 %v1679, 1.0
    %v1681 = vrcp.pop %v1680
    %v1682 = vmul.f32 1.0, %v1681
    %v1683 = vtanh.pop %v1676
    %v1685 = vrot.slane %v1619, 6
    %v1687 = vmul.f32 %v1682, %v1685
    %1689 = vrot.lane.b32.xlu0 %v1683, 32
    %v1690 = vpop.permute.xlu0 %1689
    %v1692 = vmul.f32 %v1682, %v1690
    %1694 = vrot.lane.b32.xlu0 %v1692, 32
    %v1695 = vpop.permute.xlu0 %1694
    %v1697 = vadd.f32 %v1687, %v1695
    %v1698 = vtanh.pop %v1697
    %1700 = vrot.lane.b32.xlu0 %v1698, 32
    %v1701 = vpop.permute.xlu0 %1700
    %v1703 = vmul.f32 %v1682, %v1701
    %v1704 = vpack.c.bf16 %v1703, %v1703
    %v1706 = vrot.slane %v1704, 1
    %1707 = vrot.lane.b32.xlu0 %v1706, 64
    %v1708 = vpop.permute.xlu0 %1707
    %v1710 = vsel %vm145, %v1708, 0
    %1712 = vmatprep.subr.bf16.mxu0 0
    %1713 = vmatpush1.bf16.msra.mxu0 %v1550
    %1714 = vmatprep.subr.bf16.mxu0 0
    %1715 = vmatpush1.bf16.msra.mxu0 %v1551
    %1716 = vmatprep.subr.bf16.mxu0 0
    %1717 = vmatpush1.bf16.msra.mxu0 0
    %1718 = vmatprep.subr.bf16.mxu0 0
    %1719 = vmatpush1.bf16.msra.mxu0 0
    %1720 = vmatprep.subr.bf16.mxu0 0
    %1721 = vmatpush1.bf16.msra.mxu0 0
    %1722 = vmatprep.subr.bf16.mxu0 0
    %1723 = vmatpush1.bf16.msra.mxu0 0
    %1724 = vmatprep.subr.bf16.mxu0 0
    %1725 = vmatpush1.bf16.msra.mxu0 0
    %1726 = vmatprep.subr.bf16.mxu0 0
    %1727 = vmatpush1.bf16.msra.mxu0 0
    %1728 = vmatprep.subr.bf16.mxu0 0
    %1729 = vmatpush1.bf16.msra.mxu0 0
    %1730 = vmatprep.subr.bf16.mxu0 0
    %1731 = vmatpush1.bf16.msra.mxu0 0
    %1732 = vmatprep.subr.bf16.mxu0 0
    %1733 = vmatpush1.bf16.msra.mxu0 0
    %1734 = vmatprep.subr.bf16.mxu0 0
    %1735 = vmatpush1.bf16.msra.mxu0 0
    %1736 = vmatprep.subr.bf16.mxu0 0
    %1737 = vmatpush1.bf16.msra.mxu0 0
    %1738 = vmatprep.subr.bf16.mxu0 0
    %1739 = vmatpush1.bf16.msra.mxu0 0
    %1740 = vmatprep.subr.bf16.mxu0 0
    %1741 = vmatpush1.bf16.msra.mxu0 0
    %1742 = vmatprep.subr.bf16.mxu0 0
    %1743 = vmatpush1.bf16.msra.mxu0 0
    %1744 = vmatprep.mubr.bf16.mxu0 0
    %1745 = vmatmul.mubr.bf16.gmra.mrb[0].mxu0 %v1710
    %v1746 = vpop.f32.mrb[0].mxu0
    %v1747 = vadd.f32 0.0, %v1746
    %v1748 = vpop.f32.mrb[0].mxu0
    %v1749 = vpop.f32.mrb[0].mxu0
    %v1750 = vpop.f32.mrb[0].mxu0
    %1751 = vdwg.mxu0
    %v1753 = vrot.slane %v1747, 4
    %v1755 = vadd.f32 %v1540, %v1753
    %v1756 = vxor.u32 %v1755, 2147483648
    %v1757 = vmul.f32 %v1756, 1.442695
    %v1758 = vpow.pop %v1757
    %v1759 = vadd.f32 %v1758, 1.0
    %v1760 = vrcp.pop %v1759
    %v1761 = vmul.f32 1.0, %v1760
    %v1762 = vtanh.pop %v1755
    %v1764 = vrot.slane %v1697, 6
    %v1766 = vmul.f32 %v1761, %v1764
    %1768 = vrot.lane.b32.xlu0 %v1762, 32
    %v1769 = vpop.permute.xlu0 %1768
    %v1771 = vmul.f32 %v1761, %v1769
    %1773 = vrot.lane.b32.xlu0 %v1771, 32
    %v1774 = vpop.permute.xlu0 %1773
    %v1776 = vadd.f32 %v1766, %v1774
    %v1777 = vtanh.pop %v1776
    %1779 = vrot.lane.b32.xlu0 %v1777, 32
    %v1780 = vpop.permute.xlu0 %1779
    %v1782 = vmul.f32 %v1761, %v1780
    %v1783 = vpack.c.bf16 %v1782, %v1782
    %v1785 = vrot.slane %v1783, 2
    %1786 = vrot.lane.b32.xlu0 %v1785, 64
    %v1787 = vpop.permute.xlu0 %1786
    %v1789 = vsel %vm145, %v1787, 0
    %1791 = vmatprep.subr.bf16.mxu0 0
    %1792 = vmatpush1.bf16.msra.mxu0 %v1550
    %1793 = vmatprep.subr.bf16.mxu0 0
    %1794 = vmatpush1.bf16.msra.mxu0 %v1551
    %1795 = vmatprep.subr.bf16.mxu0 0
    %1796 = vmatpush1.bf16.msra.mxu0 0
    %1797 = vmatprep.subr.bf16.mxu0 0
    %1798 = vmatpush1.bf16.msra.mxu0 0
    %1799 = vmatprep.subr.bf16.mxu0 0
    %1800 = vmatpush1.bf16.msra.mxu0 0
    %1801 = vmatprep.subr.bf16.mxu0 0
    %1802 = vmatpush1.bf16.msra.mxu0 0
    %1803 = vmatprep.subr.bf16.mxu0 0
    %1804 = vmatpush1.bf16.msra.mxu0 0
    %1805 = vmatprep.subr.bf16.mxu0 0
    %1806 = vmatpush1.bf16.msra.mxu0 0
    %1807 = vmatprep.subr.bf16.mxu0 0
    %1808 = vmatpush1.bf16.msra.mxu0 0
    %1809 = vmatprep.subr.bf16.mxu0 0
    %1810 = vmatpush1.bf16.msra.mxu0 0
    %1811 = vmatprep.subr.bf16.mxu0 0
    %1812 = vmatpush1.bf16.msra.mxu0 0
    %1813 = vmatprep.subr.bf16.mxu0 0
    %1814 = vmatpush1.bf16.msra.mxu0 0
    %1815 = vmatprep.subr.bf16.mxu0 0
    %1816 = vmatpush1.bf16.msra.mxu0 0
    %1817 = vmatprep.subr.bf16.mxu0 0
    %1818 = vmatpush1.bf16.msra.mxu0 0
    %1819 = vmatprep.subr.bf16.mxu0 0
    %1820 = vmatpush1.bf16.msra.mxu0 0
    %1821 = vmatprep.subr.bf16.mxu0 0
    %1822 = vmatpush1.bf16.msra.mxu0 0
    %1823 = vmatprep.mubr.bf16.mxu0 0
    %1824 = vmatmul.mubr.bf16.gmra.mrb[0].mxu0 %v1789
    %v1825 = vpop.f32.mrb[0].mxu0
    %v1826 = vadd.f32 0.0, %v1825
    %v1827 = vpop.f32.mrb[0].mxu0
    %v1828 = vpop.f32.mrb[0].mxu0
    %v1829 = vpop.f32.mrb[0].mxu0
    %1830 = vdwg.mxu0
    %v1832 = vrot.slane %v1826, 2
    %v1834 = vadd.f32 %v1540, %v1832
    %v1835 = vxor.u32 %v1834, 2147483648
    %v1836 = vmul.f32 %v1835, 1.442695
    %v1837 = vpow.pop %v1836
    %v1838 = vadd.f32 %v1837, 1.0
    %v1839 = vrcp.pop %v1838
    %v1840 = vmul.f32 1.0, %v1839
    %v1841 = vtanh.pop %v1834
    %v1843 = vrot.slane %v1776, 6
    %v1845 = vmul.f32 %v1840, %v1843
    %1847 = vrot.lane.b32.xlu0 %v1841, 32
    %v1848 = vpop.permute.xlu0 %1847
    %v1850 = vmul.f32 %v1840, %v1848
    %1852 = vrot.lane.b32.xlu0 %v1850, 32
    %v1853 = vpop.permute.xlu0 %1852
    %v1855 = vadd.f32 %v1845, %v1853
    %v1856 = vtanh.pop %v1855
    %1858 = vrot.lane.b32.xlu0 %v1856, 32
    %v1859 = vpop.permute.xlu0 %1858
    %v1861 = vmul.f32 %v1840, %v1859
    %v1862 = vsel %vm454, %v1625, %v1703
    %v1863 = vsel %vm456, %v1862, %v1782
    %v1864 = vsel %vm68, %v1863, %v1861
    %1866 = vrot.lane.b32.xlu0 %v1864, 64
    %v1867 = vpop.permute.xlu0 %1866
    %1869 = vst.msk [vmem:[#allocation4] sm:$0xff] %vm145, %v1867
    %v1870 = vld [vmem:[%s464] sm:$0xff]
    %v1871 = vpack.c.bf16 %v1861, %v1861
    %v1873 = vrot.slane %v1871, 3
    %1874 = vrot.lane.b32.xlu0 %v1873, 64
    %v1875 = vpop.permute.xlu0 %1874
    %v1877 = vsel %vm145, %v1875, 0
    %1879 = vmatprep.subr.bf16.mxu0 0
    %1880 = vmatpush1.bf16.msra.mxu0 %v1550
    %1881 = vmatprep.subr.bf16.mxu0 0
    %1882 = vmatpush1.bf16.msra.mxu0 %v1551
    %1883 = vmatprep.subr.bf16.mxu0 0
    %1884 = vmatpush1.bf16.msra.mxu0 0
    %1885 = vmatprep.subr.bf16.mxu0 0
    %1886 = vmatpush1.bf16.msra.mxu0 0
    %1887 = vmatprep.subr.bf16.mxu0 0
    %1888 = vmatpush1.bf16.msra.mxu0 0
    %1889 = vmatprep.subr.bf16.mxu0 0
    %1890 = vmatpush1.bf16.msra.mxu0 0
    %1891 = vmatprep.subr.bf16.mxu0 0
    %1892 = vmatpush1.bf16.msra.mxu0 0
    %1893 = vmatprep.subr.bf16.mxu0 0
    %1894 = vmatpush1.bf16.msra.mxu0 0
    %1895 = vmatprep.subr.bf16.mxu0 0
    %1896 = vmatpush1.bf16.msra.mxu0 0
    %1897 = vmatprep.subr.bf16.mxu0 0
    %1898 = vmatpush1.bf16.msra.mxu0 0
    %1899 = vmatprep.subr.bf16.mxu0 0
    %1900 = vmatpush1.bf16.msra.mxu0 0
    %1901 = vmatprep.subr.bf16.mxu0 0
    %1902 = vmatpush1.bf16.msra.mxu0 0
    %1903 = vmatprep.subr.bf16.mxu0 0
    %1904 = vmatpush1.bf16.msra.mxu0 0
    %1905 = vmatprep.subr.bf16.mxu0 0
    %1906 = vmatpush1.bf16.msra.mxu0 0
    %1907 = vmatprep.subr.bf16.mxu0 0
    %1908 = vmatpush1.bf16.msra.mxu0 0
    %1909 = vmatprep.subr.bf16.mxu0 0
    %1910 = vmatpush1.bf16.msra.mxu0 0
    %1911 = vmatprep.mubr.bf16.mxu0 0
    %1912 = vmatmul.mubr.bf16.gmra.mrb[0].mxu0 %v1877
    %v1913 = vpop.f32.mrb[0].mxu0
    %v1914 = vadd.f32 0.0, %v1913
    %v1915 = vpop.f32.mrb[0].mxu0
    %v1916 = vpop.f32.mrb[0].mxu0
    %v1917 = vpop.f32.mrb[0].mxu0
    %1918 = vdwg.mxu0
    %v1919 = vadd.f32 %v1870, %v1914
    %v1920 = vxor.u32 %v1919, 2147483648
    %v1921 = vmul.f32 %v1920, 1.442695
    %v1922 = vpow.pop %v1921
    %v1923 = vadd.f32 %v1922, 1.0
    %v1924 = vrcp.pop %v1923
    %v1925 = vmul.f32 1.0, %v1924
    %v1926 = vtanh.pop %v1919
    %v1928 = vrot.slane %v1855, 6
    %v1930 = vmul.f32 %v1925, %v1928
    %1932 = vrot.lane.b32.xlu0 %v1926, 32
    %v1933 = vpop.permute.xlu0 %1932
    %v1935 = vmul.f32 %v1925, %v1933
    %1937 = vrot.lane.b32.xlu0 %v1935, 32
    %v1938 = vpop.permute.xlu0 %1937
    %v1940 = vadd.f32 %v1930, %v1938
    %v1941 = vtanh.pop %v1940
    %1943 = vrot.lane.b32.xlu0 %v1941, 32
    %v1944 = vpop.permute.xlu0 %1943
    %v1946 = vmul.f32 %v1925, %v1944
    %v1947 = vpack.c.bf16 %v1946, %v1946
    %1949 = vrot.lane.b32.xlu0 %v1947, 64
    %v1950 = vpop.permute.xlu0 %1949
    %v1952 = vsel %vm145, %v1950, 0
    %1954 = vmatprep.subr.bf16.mxu0 0
    %1955 = vmatpush1.bf16.msra.mxu0 %v1550
    %1956 = vmatprep.subr.bf16.mxu0 0
    %1957 = vmatpush1.bf16.msra.mxu0 %v1551
    %1958 = vmatprep.subr.bf16.mxu0 0
    %1959 = vmatpush1.bf16.msra.mxu0 0
    %1960 = vmatprep.subr.bf16.mxu0 0
    %1961 = vmatpush1.bf16.msra.mxu0 0
    %1962 = vmatprep.subr.bf16.mxu0 0
    %1963 = vmatpush1.bf16.msra.mxu0 0
    %1964 = vmatprep.subr.bf16.mxu0 0
    %1965 = vmatpush1.bf16.msra.mxu0 0
    %1966 = vmatprep.subr.bf16.mxu0 0
    %1967 = vmatpush1.bf16.msra.mxu0 0
    %1968 = vmatprep.subr.bf16.mxu0 0
    %1969 = vmatpush1.bf16.msra.mxu0 0
    %1970 = vmatprep.subr.bf16.mxu0 0
    %1971 = vmatpush1.bf16.msra.mxu0 0
    %1972 = vmatprep.subr.bf16.mxu0 0
    %1973 = vmatpush1.bf16.msra.mxu0 0
    %1974 = vmatprep.subr.bf16.mxu0 0
    %1975 = vmatpush1.bf16.msra.mxu0 0
    %1976 = vmatprep.subr.bf16.mxu0 0
    %1977 = vmatpush1.bf16.msra.mxu0 0
    %1978 = vmatprep.subr.bf16.mxu0 0
    %1979 = vmatpush1.bf16.msra.mxu0 0
    %1980 = vmatprep.subr.bf16.mxu0 0
    %1981 = vmatpush1.bf16.msra.mxu0 0
    %1982 = vmatprep.subr.bf16.mxu0 0
    %1983 = vmatpush1.bf16.msra.mxu0 0
    %1984 = vmatprep.subr.bf16.mxu0 0
    %1985 = vmatpush1.bf16.msra.mxu0 0
    %1986 = vmatprep.mubr.bf16.mxu0 0
    %1987 = vmatmul.mubr.bf16.gmra.mrb[0].mxu0 %v1952
    %v1988 = vpop.f32.mrb[0].mxu0
    %v1989 = vadd.f32 0.0, %v1988
    %v1990 = vpop.f32.mrb[0].mxu0
    %v1991 = vpop.f32.mrb[0].mxu0
    %v1992 = vpop.f32.mrb[0].mxu0
    %1993 = vdwg.mxu0
    %v1995 = vrot.slane %v1989, 6
    %v1997 = vadd.f32 %v1870, %v1995
    %v1998 = vxor.u32 %v1997, 2147483648
    %v1999 = vmul.f32 %v1998, 1.442695
    %v2000 = vpow.pop %v1999
    %v2001 = vadd.f32 %v2000, 1.0
    %v2002 = vrcp.pop %v2001
    %v2003 = vmul.f32 1.0, %v2002
    %v2004 = vtanh.pop %v1997
    %v2006 = vrot.slane %v1940, 6
    %v2008 = vmul.f32 %v2003, %v2006
    %2010 = vrot.lane.b32.xlu0 %v2004, 32
    %v2011 = vpop.permute.xlu0 %2010
    %v2013 = vmul.f32 %v2003, %v2011
    %2015 = vrot.lane.b32.xlu0 %v2013, 32
    %v2016 = vpop.permute.xlu0 %2015
    %v2018 = vadd.f32 %v2008, %v2016
    %v2019 = vtanh.pop %v2018
    %2021 = vrot.lane.b32.xlu0 %v2019, 32
    %v2022 = vpop.permute.xlu0 %2021
    %v2024 = vmul.f32 %v2003, %v2022
    %v2025 = vpack.c.bf16 %v2024, %v2024
    %v2027 = vrot.slane %v2025, 1
    %2028 = vrot.lane.b32.xlu0 %v2027, 64
    %v2029 = vpop.permute.xlu0 %2028
    %v2031 = vsel %vm145, %v2029, 0
    %2033 = vmatprep.subr.bf16.mxu0 0
    %2034 = vmatpush1.bf16.msra.mxu0 %v1550
    %2035 = vmatprep.subr.bf16.mxu0 0
    %2036 = vmatpush1.bf16.msra.mxu0 %v1551
    %2037 = vmatprep.subr.bf16.mxu0 0
    %2038 = vmatpush1.bf16.msra.mxu0 0
    %2039 = vmatprep.subr.bf16.mxu0 0
    %2040 = vmatpush1.bf16.msra.mxu0 0
    %2041 = vmatprep.subr.bf16.mxu0 0
    %2042 = vmatpush1.bf16.msra.mxu0 0
    %2043 = vmatprep.subr.bf16.mxu0 0
    %2044 = vmatpush1.bf16.msra.mxu0 0
    %2045 = vmatprep.subr.bf16.mxu0 0
    %2046 = vmatpush1.bf16.msra.mxu0 0
    %2047 = vmatprep.subr.bf16.mxu0 0
    %2048 = vmatpush1.bf16.msra.mxu0 0
    %2049 = vmatprep.subr.bf16.mxu0 0
    %2050 = vmatpush1.bf16.msra.mxu0 0
    %2051 = vmatprep.subr.bf16.mxu0 0
    %2052 = vmatpush1.bf16.msra.mxu0 0
    %2053 = vmatprep.subr.bf16.mxu0 0
    %2054 = vmatpush1.bf16.msra.mxu0 0
    %2055 = vmatprep.subr.bf16.mxu0 0
    %2056 = vmatpush1.bf16.msra.mxu0 0
    %2057 = vmatprep.subr.bf16.mxu0 0
    %2058 = vmatpush1.bf16.msra.mxu0 0
    %2059 = vmatprep.subr.bf16.mxu0 0
    %2060 = vmatpush1.bf16.msra.mxu0 0
    %2061 = vmatprep.subr.bf16.mxu0 0
    %2062 = vmatpush1.bf16.msra.mxu0 0
    %2063 = vmatprep.subr.bf16.mxu0 0
    %2064 = vmatpush1.bf16.msra.mxu0 0
    %2065 = vmatprep.mubr.bf16.mxu0 0
    %2066 = vmatmul.mubr.bf16.gmra.mrb[0].mxu0 %v2031
    %v2067 = vpop.f32.mrb[0].mxu0
    %v2068 = vadd.f32 0.0, %v2067
    %v2069 = vpop.f32.mrb[0].mxu0
    %v2070 = vpop.f32.mrb[0].mxu0
    %v2071 = vpop.f32.mrb[0].mxu0
    %2072 = vdwg.mxu0
    %v2074 = vrot.slane %v2068, 4
    %v2076 = vadd.f32 %v1870, %v2074
    %v2077 = vxor.u32 %v2076, 2147483648
    %v2078 = vmul.f32 %v2077, 1.442695
    %v2079 = vpow.pop %v2078
    %v2080 = vadd.f32 %v2079, 1.0
    %v2081 = vrcp.pop %v2080
    %v2082 = vmul.f32 1.0, %v2081
    %v2083 = vtanh.pop %v2076
    %v2085 = vrot.slane %v2018, 6
    %v2087 = vmul.f32 %v2082, %v2085
    %2089 = vrot.lane.b32.xlu0 %v2083, 32
    %v2090 = vpop.permute.xlu0 %2089
    %v2092 = vmul.f32 %v2082, %v2090
    %2094 = vrot.lane.b32.xlu0 %v2092, 32
    %v2095 = vpop.permute.xlu0 %2094
    %v2097 = vadd.f32 %v2087, %v2095
    %v2098 = vtanh.pop %v2097
    %2100 = vrot.lane.b32.xlu0 %v2098, 32
    %v2101 = vpop.permute.xlu0 %2100
    %v2103 = vmul.f32 %v2082, %v2101
    %v2104 = vpack.c.bf16 %v2103, %v2103
    %v2106 = vrot.slane %v2104, 2
    %2107 = vrot.lane.b32.xlu0 %v2106, 64
    %v2108 = vpop.permute.xlu0 %2107
    %v2110 = vsel %vm145, %v2108, 0
    %2112 = vmatprep.subr.bf16.mxu0 0
    %2113 = vmatpush1.bf16.msra.mxu0 %v1550
    %2114 = vmatprep.subr.bf16.mxu0 0
    %2115 = vmatpush1.bf16.msra.mxu0 %v1551
    %2116 = vmatprep.subr.bf16.mxu0 0
    %2117 = vmatpush1.bf16.msra.mxu0 0
    %2118 = vmatprep.subr.bf16.mxu0 0
    %2119 = vmatpush1.bf16.msra.mxu0 0
    %2120 = vmatprep.subr.bf16.mxu0 0
    %2121 = vmatpush1.bf16.msra.mxu0 0
    %2122 = vmatprep.subr.bf16.mxu0 0
    %2123 = vmatpush1.bf16.msra.mxu0 0
    %2124 = vmatprep.subr.bf16.mxu0 0
    %2125 = vmatpush1.bf16.msra.mxu0 0
    %2126 = vmatprep.subr.bf16.mxu0 0
    %2127 = vmatpush1.bf16.msra.mxu0 0
    %2128 = vmatprep.subr.bf16.mxu0 0
    %2129 = vmatpush1.bf16.msra.mxu0 0
    %2130 = vmatprep.subr.bf16.mxu0 0
    %2131 = vmatpush1.bf16.msra.mxu0 0
    %2132 = vmatprep.subr.bf16.mxu0 0
    %2133 = vmatpush1.bf16.msra.mxu0 0
    %2134 = vmatprep.subr.bf16.mxu0 0
    %2135 = vmatpush1.bf16.msra.mxu0 0
    %2136 = vmatprep.subr.bf16.mxu0 0
    %2137 = vmatpush1.bf16.msra.mxu0 0
    %2138 = vmatprep.subr.bf16.mxu0 0
    %2139 = vmatpush1.bf16.msra.mxu0 0
    %2140 = vmatprep.subr.bf16.mxu0 0
    %2141 = vmatpush1.bf16.msra.mxu0 0
    %2142 = vmatprep.subr.bf16.mxu0 0
    %2143 = vmatpush1.bf16.msra.mxu0 0
    %2144 = vmatprep.mubr.bf16.mxu0 0
    %2145 = vmatmul.mubr.bf16.gmra.mrb[0].mxu0 %v2110
    %v2146 = vpop.f32.mrb[0].mxu0
    %v2147 = vadd.f32 0.0, %v2146
    %v2148 = vpop.f32.mrb[0].mxu0
    %v2149 = vpop.f32.mrb[0].mxu0
    %v2150 = vpop.f32.mrb[0].mxu0
    %2151 = vdwg.mxu0
    %v2153 = vrot.slane %v2147, 2
    %v2155 = vadd.f32 %v1870, %v2153
    %v2156 = vxor.u32 %v2155, 2147483648
    %v2157 = vmul.f32 %v2156, 1.442695
    %v2158 = vpow.pop %v2157
    %v2159 = vadd.f32 %v2158, 1.0
    %v2160 = vrcp.pop %v2159
    %v2161 = vmul.f32 1.0, %v2160
    %v2162 = vtanh.pop %v2155
    %v2164 = vrot.slane %v2097, 6
    %v2166 = vmul.f32 %v2161, %v2164
    %2168 = vrot.lane.b32.xlu0 %v2162, 32
    %v2169 = vpop.permute.xlu0 %2168
    %v2171 = vmul.f32 %v2161, %v2169
    %2173 = vrot.lane.b32.xlu0 %v2171, 32
    %v2174 = vpop.permute.xlu0 %2173
    %v2176 = vadd.f32 %v2166, %v2174
    %v2177 = vtanh.pop %v2176
    %2179 = vrot.lane.b32.xlu0 %v2177, 32
    %v2180 = vpop.permute.xlu0 %2179
    %v2182 = vmul.f32 %v2161, %v2180
    %v2183 = vsel %vm454, %v1946, %v2024
    %v2184 = vsel %vm456, %v2183, %v2103
    %v2185 = vsel %vm68, %v2184, %v2182
    %2187 = vrot.lane.b32.xlu0 %v2185, 64
    %v2188 = vpop.permute.xlu0 %2187
    %s2190 = scalar_lea.vmem [#allocation4], 8
    %2191 = vst.msk [vmem:[%s2190] sm:$0xff] %vm145, %v2188
    %v2192 = vld [vmem:[%s787] sm:$0xff]
    %v2193 = vpack.c.bf16 %v2182, %v2182
    %v2195 = vrot.slane %v2193, 3
    %2196 = vrot.lane.b32.xlu0 %v2195, 64
    %v2197 = vpop.permute.xlu0 %2196
    %v2199 = vsel %vm145, %v2197, 0
    %2201 = vmatprep.subr.bf16.mxu0 0
    %2202 = vmatpush1.bf16.msra.mxu0 %v1550
    %2203 = vmatprep.subr.bf16.mxu0 0
    %2204 = vmatpush1.bf16.msra.mxu0 %v1551
    %2205 = vmatprep.subr.bf16.mxu0 0
    %2206 = vmatpush1.bf16.msra.mxu0 0
    %2207 = vmatprep.subr.bf16.mxu0 0
    %2208 = vmatpush1.bf16.msra.mxu0 0
    %2209 = vmatprep.subr.bf16.mxu0 0
    %2210 = vmatpush1.bf16.msra.mxu0 0
    %2211 = vmatprep.subr.bf16.mxu0 0
    %2212 = vmatpush1.bf16.msra.mxu0 0
    %2213 = vmatprep.subr.bf16.mxu0 0
    %2214 = vmatpush1.bf16.msra.mxu0 0
    %2215 = vmatprep.subr.bf16.mxu0 0
    %2216 = vmatpush1.bf16.msra.mxu0 0
    %2217 = vmatprep.subr.bf16.mxu0 0
    %2218 = vmatpush1.bf16.msra.mxu0 0
    %2219 = vmatprep.subr.bf16.mxu0 0
    %2220 = vmatpush1.bf16.msra.mxu0 0
    %2221 = vmatprep.subr.bf16.mxu0 0
    %2222 = vmatpush1.bf16.msra.mxu0 0
    %2223 = vmatprep.subr.bf16.mxu0 0
    %2224 = vmatpush1.bf16.msra.mxu0 0
    %2225 = vmatprep.subr.bf16.mxu0 0
    %2226 = vmatpush1.bf16.msra.mxu0 0
    %2227 = vmatprep.subr.bf16.mxu0 0
    %2228 = vmatpush1.bf16.msra.mxu0 0
    %2229 = vmatprep.subr.bf16.mxu0 0
    %2230 = vmatpush1.bf16.msra.mxu0 0
    %2231 = vmatprep.subr.bf16.mxu0 0
    %2232 = vmatpush1.bf16.msra.mxu0 0
    %2233 = vmatprep.mubr.bf16.mxu0 0
    %2234 = vmatmul.mubr.bf16.gmra.mrb[0].mxu0 %v2199
    %v2235 = vpop.f32.mrb[0].mxu0
    %v2236 = vadd.f32 0.0, %v2235
    %v2237 = vpop.f32.mrb[0].mxu0
    %v2238 = vpop.f32.mrb[0].mxu0
    %v2239 = vpop.f32.mrb[0].mxu0
    %2240 = vdwg.mxu0
    %v2241 = vadd.f32 %v2192, %v2236
    %v2242 = vxor.u32 %v2241, 2147483648
    %v2243 = vmul.f32 %v2242, 1.442695
    %v2244 = vpow.pop %v2243
    %v2245 = vadd.f32 %v2244, 1.0
    %v2246 = vrcp.pop %v2245
    %v2247 = vmul.f32 1.0, %v2246
    %v2248 = vtanh.pop %v2241
    %v2250 = vrot.slane %v2176, 6
    %v2252 = vmul.f32 %v2247, %v2250
    %2254 = vrot.lane.b32.xlu0 %v2248, 32
    %v2255 = vpop.permute.xlu0 %2254
    %v2257 = vmul.f32 %v2247, %v2255
    %2259 = vrot.lane.b32.xlu0 %v2257, 32
    %v2260 = vpop.permute.xlu0 %2259
    %v2262 = vadd.f32 %v2252, %v2260
    %v2263 = vtanh.pop %v2262
    %2265 = vrot.lane.b32.xlu0 %v2263, 32
    %v2266 = vpop.permute.xlu0 %2265
    %v2268 = vmul.f32 %v2247, %v2266
    %v2269 = vpack.c.bf16 %v2268, %v2268
    %2271 = vrot.lane.b32.xlu0 %v2269, 64
    %v2272 = vpop.permute.xlu0 %2271
    %v2274 = vsel %vm145, %v2272, 0
    %2276 = vmatprep.subr.bf16.mxu0 0
    %2277 = vmatpush1.bf16.msra.mxu0 %v1550
    %2278 = vmatprep.subr.bf16.mxu0 0
    %2279 = vmatpush1.bf16.msra.mxu0 %v1551
    %2280 = vmatprep.subr.bf16.mxu0 0
    %2281 = vmatpush1.bf16.msra.mxu0 0
    %2282 = vmatprep.subr.bf16.mxu0 0
    %2283 = vmatpush1.bf16.msra.mxu0 0
    %2284 = vmatprep.subr.bf16.mxu0 0
    %2285 = vmatpush1.bf16.msra.mxu0 0
    %2286 = vmatprep.subr.bf16.mxu0 0
    %2287 = vmatpush1.bf16.msra.mxu0 0
    %2288 = vmatprep.subr.bf16.mxu0 0
    %2289 = vmatpush1.bf16.msra.mxu0 0
    %2290 = vmatprep.subr.bf16.mxu0 0
    %2291 = vmatpush1.bf16.msra.mxu0 0
    %2292 = vmatprep.subr.bf16.mxu0 0
    %2293 = vmatpush1.bf16.msra.mxu0 0
    %2294 = vmatprep.subr.bf16.mxu0 0
    %2295 = vmatpush1.bf16.msra.mxu0 0
    %2296 = vmatprep.subr.bf16.mxu0 0
    %2297 = vmatpush1.bf16.msra.mxu0 0
    %2298 = vmatprep.subr.bf16.mxu0 0
    %2299 = vmatpush1.bf16.msra.mxu0 0
    %2300 = vmatprep.subr.bf16.mxu0 0
    %2301 = vmatpush1.bf16.msra.mxu0 0
    %2302 = vmatprep.subr.bf16.mxu0 0
    %2303 = vmatpush1.bf16.msra.mxu0 0
    %2304 = vmatprep.subr.bf16.mxu0 0
    %2305 = vmatpush1.bf16.msra.mxu0 0
    %2306 = vmatprep.subr.bf16.mxu0 0
    %2307 = vmatpush1.bf16.msra.mxu0 0
    %2308 = vmatprep.mubr.bf16.mxu0 0
    %2309 = vmatmul.mubr.bf16.gmra.mrb[0].mxu0 %v2274
    %v2310 = vpop.f32.mrb[0].mxu0
    %v2311 = vadd.f32 0.0, %v2310
    %v2312 = vpop.f32.mrb[0].mxu0
    %v2313 = vpop.f32.mrb[0].mxu0
    %v2314 = vpop.f32.mrb[0].mxu0
    %2315 = vdwg.mxu0
    %v2317 = vrot.slane %v2311, 6
    %v2319 = vadd.f32 %v2192, %v2317
    %v2320 = vxor.u32 %v2319, 2147483648
    %v2321 = vmul.f32 %v2320, 1.442695
    %v2322 = vpow.pop %v2321
    %v2323 = vadd.f32 %v2322, 1.0
    %v2324 = vrcp.pop %v2323
    %v2325 = vmul.f32 1.0, %v2324
    %v2326 = vtanh.pop %v2319
    %v2328 = vrot.slane %v2262, 6
    %v2330 = vmul.f32 %v2325, %v2328
    %2332 = vrot.lane.b32.xlu0 %v2326, 32
    %v2333 = vpop.permute.xlu0 %2332
    %v2335 = vmul.f32 %v2325, %v2333
    %2337 = vrot.lane.b32.xlu0 %v2335, 32
    %v2338 = vpop.permute.xlu0 %2337
    %v2340 = vadd.f32 %v2330, %v2338
    %v2341 = vtanh.pop %v2340
    %2343 = vrot.lane.b32.xlu0 %v2341, 32
    %v2344 = vpop.permute.xlu0 %2343
    %v2346 = vmul.f32 %v2325, %v2344
    %v2347 = vpack.c.bf16 %v2346, %v2346
    %v2349 = vrot.slane %v2347, 1
    %2350 = vrot.lane.b32.xlu0 %v2349, 64
    %v2351 = vpop.permute.xlu0 %2350
    %v2353 = vsel %vm145, %v2351, 0
    %2355 = vmatprep.subr.bf16.mxu0 0
    %2356 = vmatpush1.bf16.msra.mxu0 %v1550
    %2357 = vmatprep.subr.bf16.mxu0 0
    %2358 = vmatpush1.bf16.msra.mxu0 %v1551
    %2359 = vmatprep.subr.bf16.mxu0 0
    %2360 = vmatpush1.bf16.msra.mxu0 0
    %2361 = vmatprep.subr.bf16.mxu0 0
    %2362 = vmatpush1.bf16.msra.mxu0 0
    %2363 = vmatprep.subr.bf16.mxu0 0
    %2364 = vmatpush1.bf16.msra.mxu0 0
    %2365 = vmatprep.subr.bf16.mxu0 0
    %2366 = vmatpush1.bf16.msra.mxu0 0
    %2367 = vmatprep.subr.bf16.mxu0 0
    %2368 = vmatpush1.bf16.msra.mxu0 0
    %2369 = vmatprep.subr.bf16.mxu0 0
    %2370 = vmatpush1.bf16.msra.mxu0 0
    %2371 = vmatprep.subr.bf16.mxu0 0
    %2372 = vmatpush1.bf16.msra.mxu0 0
    %2373 = vmatprep.subr.bf16.mxu0 0
    %2374 = vmatpush1.bf16.msra.mxu0 0
    %2375 = vmatprep.subr.bf16.mxu0 0
    %2376 = vmatpush1.bf16.msra.mxu0 0
    %2377 = vmatprep.subr.bf16.mxu0 0
    %2378 = vmatpush1.bf16.msra.mxu0 0
    %2379 = vmatprep.subr.bf16.mxu0 0
    %2380 = vmatpush1.bf16.msra.mxu0 0
    %2381 = vmatprep.subr.bf16.mxu0 0
    %2382 = vmatpush1.bf16.msra.mxu0 0
    %2383 = vmatprep.subr.bf16.mxu0 0
    %2384 = vmatpush1.bf16.msra.mxu0 0
    %2385 = vmatprep.subr.bf16.mxu0 0
    %2386 = vmatpush1.bf16.msra.mxu0 0
    %2387 = vmatprep.mubr.bf16.mxu0 0
    %2388 = vmatmul.mubr.bf16.gmra.mrb[0].mxu0 %v2353
    %v2389 = vpop.f32.mrb[0].mxu0
    %v2390 = vadd.f32 0.0, %v2389
    %v2391 = vpop.f32.mrb[0].mxu0
    %v2392 = vpop.f32.mrb[0].mxu0
    %v2393 = vpop.f32.mrb[0].mxu0
    %2394 = vdwg.mxu0
    %v2396 = vrot.slane %v2390, 4
    %v2398 = vadd.f32 %v2192, %v2396
    %v2399 = vxor.u32 %v2398, 2147483648
    %v2400 = vmul.f32 %v2399, 1.442695
    %v2401 = vpow.pop %v2400
    %v2402 = vadd.f32 %v2401, 1.0
    %v2403 = vrcp.pop %v2402
    %v2404 = vmul.f32 1.0, %v2403
    %v2405 = vtanh.pop %v2398
    %v2407 = vrot.slane %v2340, 6
    %v2409 = vmul.f32 %v2404, %v2407
    %2411 = vrot.lane.b32.xlu0 %v2405, 32
    %v2412 = vpop.permute.xlu0 %2411
    %v2414 = vmul.f32 %v2404, %v2412
    %2416 = vrot.lane.b32.xlu0 %v2414, 32
    %v2417 = vpop.permute.xlu0 %2416
    %v2419 = vadd.f32 %v2409, %v2417
    %v2420 = vtanh.pop %v2419
    %2422 = vrot.lane.b32.xlu0 %v2420, 32
    %v2423 = vpop.permute.xlu0 %2422
    %v2425 = vmul.f32 %v2404, %v2423
    %v2426 = vpack.c.bf16 %v2425, %v2425
    %v2428 = vrot.slane %v2426, 2
    %2429 = vrot.lane.b32.xlu0 %v2428, 64
    %v2430 = vpop.permute.xlu0 %2429
    %v2432 = vsel %vm145, %v2430, 0
    %2434 = vmatprep.subr.bf16.mxu0 0
    %2435 = vmatpush1.bf16.msra.mxu0 %v1550
    %2436 = vmatprep.subr.bf16.mxu0 0
    %2437 = vmatpush1.bf16.msra.mxu0 %v1551
    %2438 = vmatprep.subr.bf16.mxu0 0
    %2439 = vmatpush1.bf16.msra.mxu0 0
    %2440 = vmatprep.subr.bf16.mxu0 0
    %2441 = vmatpush1.bf16.msra.mxu0 0
    %2442 = vmatprep.subr.bf16.mxu0 0
    %2443 = vmatpush1.bf16.msra.mxu0 0
    %2444 = vmatprep.subr.bf16.mxu0 0
    %2445 = vmatpush1.bf16.msra.mxu0 0
    %2446 = vmatprep.subr.bf16.mxu0 0
    %2447 = vmatpush1.bf16.msra.mxu0 0
    %2448 = vmatprep.subr.bf16.mxu0 0
    %2449 = vmatpush1.bf16.msra.mxu0 0
    %2450 = vmatprep.subr.bf16.mxu0 0
    %2451 = vmatpush1.bf16.msra.mxu0 0
    %2452 = vmatprep.subr.bf16.mxu0 0
    %2453 = vmatpush1.bf16.msra.mxu0 0
    %2454 = vmatprep.subr.bf16.mxu0 0
    %2455 = vmatpush1.bf16.msra.mxu0 0
    %2456 = vmatprep.subr.bf16.mxu0 0
    %2457 = vmatpush1.bf16.msra.mxu0 0
    %2458 = vmatprep.subr.bf16.mxu0 0
    %2459 = vmatpush1.bf16.msra.mxu0 0
    %2460 = vmatprep.subr.bf16.mxu0 0
    %2461 = vmatpush1.bf16.msra.mxu0 0
    %2462 = vmatprep.subr.bf16.mxu0 0
    %2463 = vmatpush1.bf16.msra.mxu0 0
    %2464 = vmatprep.subr.bf16.mxu0 0
    %2465 = vmatpush1.bf16.msra.mxu0 0
    %2466 = vmatprep.mubr.bf16.mxu0 0
    %2467 = vmatmul.mubr.bf16.gmra.mrb[0].mxu0 %v2432
    %v2468 = vpop.f32.mrb[0].mxu0
    %v2469 = vadd.f32 0.0, %v2468
    %v2470 = vpop.f32.mrb[0].mxu0
    %v2471 = vpop.f32.mrb[0].mxu0
    %v2472 = vpop.f32.mrb[0].mxu0
    %2473 = vdwg.mxu0
    %v2475 = vrot.slane %v2469, 2
    %v2477 = vadd.f32 %v2192, %v2475
    %v2478 = vxor.u32 %v2477, 2147483648
    %v2479 = vmul.f32 %v2478, 1.442695
    %v2480 = vpow.pop %v2479
    %v2481 = vadd.f32 %v2480, 1.0
    %v2482 = vrcp.pop %v2481
    %v2483 = vmul.f32 1.0, %v2482
    %v2484 = vtanh.pop %v2477
    %v2486 = vrot.slane %v2419, 6
    %v2488 = vmul.f32 %v2483, %v2486
    %2490 = vrot.lane.b32.xlu0 %v2484, 32
    %v2491 = vpop.permute.xlu0 %2490
    %v2493 = vmul.f32 %v2483, %v2491
    %2495 = vrot.lane.b32.xlu0 %v2493, 32
    %v2496 = vpop.permute.xlu0 %2495
    %v2498 = vadd.f32 %v2488, %v2496
    %v2499 = vtanh.pop %v2498
    %2501 = vrot.lane.b32.xlu0 %v2499, 32
    %v2502 = vpop.permute.xlu0 %2501
    %v2504 = vmul.f32 %v2483, %v2502
    %v2505 = vsel %vm454, %v2268, %v2346
    %v2506 = vsel %vm456, %v2505, %v2425
    %v2507 = vsel %vm68, %v2506, %v2504
    %2509 = vrot.lane.b32.xlu0 %v2507, 64
    %v2510 = vpop.permute.xlu0 %2509
    %s2512 = scalar_lea.vmem [#allocation4], 16
    %2513 = vst.msk [vmem:[%s2512] sm:$0xff] %vm145, %v2510
    %v2514 = vld [vmem:[%s1110] sm:$0xff]
    %v2515 = vpack.c.bf16 %v2504, %v2504
    %v2517 = vrot.slane %v2515, 3
    %2518 = vrot.lane.b32.xlu0 %v2517, 64
    %v2519 = vpop.permute.xlu0 %2518
    %v2521 = vsel %vm145, %v2519, 0
    %2523 = vmatprep.subr.bf16.mxu0 0
    %2524 = vmatpush1.bf16.msra.mxu0 %v1550
    %2525 = vmatprep.subr.bf16.mxu0 0
    %2526 = vmatpush1.bf16.msra.mxu0 %v1551
    %2527 = vmatprep.subr.bf16.mxu0 0
    %2528 = vmatpush1.bf16.msra.mxu0 0
    %2529 = vmatprep.subr.bf16.mxu0 0
    %2530 = vmatpush1.bf16.msra.mxu0 0
    %2531 = vmatprep.subr.bf16.mxu0 0
    %2532 = vmatpush1.bf16.msra.mxu0 0
    %2533 = vmatprep.subr.bf16.mxu0 0
    %2534 = vmatpush1.bf16.msra.mxu0 0
    %2535 = vmatprep.subr.bf16.mxu0 0
    %2536 = vmatpush1.bf16.msra.mxu0 0
    %2537 = vmatprep.subr.bf16.mxu0 0
    %2538 = vmatpush1.bf16.msra.mxu0 0
    %2539 = vmatprep.subr.bf16.mxu0 0
    %2540 = vmatpush1.bf16.msra.mxu0 0
    %2541 = vmatprep.subr.bf16.mxu0 0
    %2542 = vmatpush1.bf16.msra.mxu0 0
    %2543 = vmatprep.subr.bf16.mxu0 0
    %2544 = vmatpush1.bf16.msra.mxu0 0
    %2545 = vmatprep.subr.bf16.mxu0 0
    %2546 = vmatpush1.bf16.msra.mxu0 0
    %2547 = vmatprep.subr.bf16.mxu0 0
    %2548 = vmatpush1.bf16.msra.mxu0 0
    %2549 = vmatprep.subr.bf16.mxu0 0
    %2550 = vmatpush1.bf16.msra.mxu0 0
    %2551 = vmatprep.subr.bf16.mxu0 0
    %2552 = vmatpush1.bf16.msra.mxu0 0
    %2553 = vmatprep.subr.bf16.mxu0 0
    %2554 = vmatpush1.bf16.msra.mxu0 0
    %2555 = vmatprep.mubr.bf16.mxu0 0
    %2556 = vmatmul.mubr.bf16.gmra.mrb[0].mxu0 %v2521
    %v2557 = vpop.f32.mrb[0].mxu0
    %v2558 = vadd.f32 0.0, %v2557
    %v2559 = vpop.f32.mrb[0].mxu0
    %v2560 = vpop.f32.mrb[0].mxu0
    %v2561 = vpop.f32.mrb[0].mxu0
    %2562 = vdwg.mxu0
    %v2563 = vadd.f32 %v2514, %v2558
    %v2564 = vxor.u32 %v2563, 2147483648
    %v2565 = vmul.f32 %v2564, 1.442695
    %v2566 = vpow.pop %v2565
    %v2567 = vadd.f32 %v2566, 1.0
    %v2568 = vrcp.pop %v2567
    %v2569 = vmul.f32 1.0, %v2568
    %v2570 = vtanh.pop %v2563
    %v2572 = vrot.slane %v2498, 6
    %v2574 = vmul.f32 %v2569, %v2572
    %2576 = vrot.lane.b32.xlu0 %v2570, 32
    %v2577 = vpop.permute.xlu0 %2576
    %v2579 = vmul.f32 %v2569, %v2577
    %2581 = vrot.lane.b32.xlu0 %v2579, 32
    %v2582 = vpop.permute.xlu0 %2581
    %v2584 = vadd.f32 %v2574, %v2582
    %v2585 = vtanh.pop %v2584
    %2587 = vrot.lane.b32.xlu0 %v2585, 32
    %v2588 = vpop.permute.xlu0 %2587
    %v2590 = vmul.f32 %v2569, %v2588
    %v2591 = vpack.c.bf16 %v2590, %v2590
    %2593 = vrot.lane.b32.xlu0 %v2591, 64
    %v2594 = vpop.permute.xlu0 %2593
    %v2596 = vsel %vm145, %v2594, 0
    %2598 = vmatprep.subr.bf16.mxu0 0
    %2599 = vmatpush1.bf16.msra.mxu0 %v1550
    %2600 = vmatprep.subr.bf16.mxu0 0
    %2601 = vmatpush1.bf16.msra.mxu0 %v1551
    %2602 = vmatprep.subr.bf16.mxu0 0
    %2603 = vmatpush1.bf16.msra.mxu0 0
    %2604 = vmatprep.subr.bf16.mxu0 0
    %2605 = vmatpush1.bf16.msra.mxu0 0
    %2606 = vmatprep.subr.bf16.mxu0 0
    %2607 = vmatpush1.bf16.msra.mxu0 0
    %2608 = vmatprep.subr.bf16.mxu0 0
    %2609 = vmatpush1.bf16.msra.mxu0 0
    %2610 = vmatprep.subr.bf16.mxu0 0
    %2611 = vmatpush1.bf16.msra.mxu0 0
    %2612 = vmatprep.subr.bf16.mxu0 0
    %2613 = vmatpush1.bf16.msra.mxu0 0
    %2614 = vmatprep.subr.bf16.mxu0 0
    %2615 = vmatpush1.bf16.msra.mxu0 0
    %2616 = vmatprep.subr.bf16.mxu0 0
    %2617 = vmatpush1.bf16.msra.mxu0 0
    %2618 = vmatprep.subr.bf16.mxu0 0
    %2619 = vmatpush1.bf16.msra.mxu0 0
    %2620 = vmatprep.subr.bf16.mxu0 0
    %2621 = vmatpush1.bf16.msra.mxu0 0
    %2622 = vmatprep.subr.bf16.mxu0 0
    %2623 = vmatpush1.bf16.msra.mxu0 0
    %2624 = vmatprep.subr.bf16.mxu0 0
    %2625 = vmatpush1.bf16.msra.mxu0 0
    %2626 = vmatprep.subr.bf16.mxu0 0
    %2627 = vmatpush1.bf16.msra.mxu0 0
    %2628 = vmatprep.subr.bf16.mxu0 0
    %2629 = vmatpush1.bf16.msra.mxu0 0
    %2630 = vmatprep.mubr.bf16.mxu0 0
    %2631 = vmatmul.mubr.bf16.gmra.mrb[0].mxu0 %v2596
    %v2632 = vpop.f32.mrb[0].mxu0
    %v2633 = vadd.f32 0.0, %v2632
    %v2634 = vpop.f32.mrb[0].mxu0
    %v2635 = vpop.f32.mrb[0].mxu0
    %v2636 = vpop.f32.mrb[0].mxu0
    %2637 = vdwg.mxu0
    %v2639 = vrot.slane %v2633, 6
    %v2641 = vadd.f32 %v2514, %v2639
    %v2642 = vxor.u32 %v2641, 2147483648
    %v2643 = vmul.f32 %v2642, 1.442695
    %v2644 = vpow.pop %v2643
    %v2645 = vadd.f32 %v2644, 1.0
    %v2646 = vrcp.pop %v2645
    %v2647 = vmul.f32 1.0, %v2646
    %v2648 = vtanh.pop %v2641
    %v2650 = vrot.slane %v2584, 6
    %v2652 = vmul.f32 %v2647, %v2650
    %2654 = vrot.lane.b32.xlu0 %v2648, 32
    %v2655 = vpop.permute.xlu0 %2654
    %v2657 = vmul.f32 %v2647, %v2655
    %2659 = vrot.lane.b32.xlu0 %v2657, 32
    %v2660 = vpop.permute.xlu0 %2659
    %v2662 = vadd.f32 %v2652, %v2660
    %v2663 = vtanh.pop %v2662
    %2665 = vrot.lane.b32.xlu0 %v2663, 32
    %v2666 = vpop.permute.xlu0 %2665
    %v2668 = vmul.f32 %v2647, %v2666
    %v2669 = vpack.c.bf16 %v2668, %v2668
    %v2671 = vrot.slane %v2669, 1
    %2672 = vrot.lane.b32.xlu0 %v2671, 64
    %v2673 = vpop.permute.xlu0 %2672
    %v2675 = vsel %vm145, %v2673, 0
    %2677 = vmatprep.subr.bf16.mxu0 0
    %2678 = vmatpush1.bf16.msra.mxu0 %v1550
    %2679 = vmatprep.subr.bf16.mxu0 0
    %2680 = vmatpush1.bf16.msra.mxu0 %v1551
    %2681 = vmatprep.subr.bf16.mxu0 0
    %2682 = vmatpush1.bf16.msra.mxu0 0
    %2683 = vmatprep.subr.bf16.mxu0 0
    %2684 = vmatpush1.bf16.msra.mxu0 0
    %2685 = vmatprep.subr.bf16.mxu0 0
    %2686 = vmatpush1.bf16.msra.mxu0 0
    %2687 = vmatprep.subr.bf16.mxu0 0
    %2688 = vmatpush1.bf16.msra.mxu0 0
    %2689 = vmatprep.subr.bf16.mxu0 0
    %2690 = vmatpush1.bf16.msra.mxu0 0
    %2691 = vmatprep.subr.bf16.mxu0 0
    %2692 = vmatpush1.bf16.msra.mxu0 0
    %2693 = vmatprep.subr.bf16.mxu0 0
    %2694 = vmatpush1.bf16.msra.mxu0 0
    %2695 = vmatprep.subr.bf16.mxu0 0
    %2696 = vmatpush1.bf16.msra.mxu0 0
    %2697 = vmatprep.subr.bf16.mxu0 0
    %2698 = vmatpush1.bf16.msra.mxu0 0
    %2699 = vmatprep.subr.bf16.mxu0 0
    %2700 = vmatpush1.bf16.msra.mxu0 0
    %2701 = vmatprep.subr.bf16.mxu0 0
    %2702 = vmatpush1.bf16.msra.mxu0 0
    %2703 = vmatprep.subr.bf16.mxu0 0
    %2704 = vmatpush1.bf16.msra.mxu0 0
    %2705 = vmatprep.subr.bf16.mxu0 0
    %2706 = vmatpush1.bf16.msra.mxu0 0
    %2707 = vmatprep.subr.bf16.mxu0 0
    %2708 = vmatpush1.bf16.msra.mxu0 0
    %2709 = vmatprep.mubr.bf16.mxu0 0
    %2710 = vmatmul.mubr.bf16.gmra.mrb[0].mxu0 %v2675
    %v2711 = vpop.f32.mrb[0].mxu0
    %v2712 = vadd.f32 0.0, %v2711
    %v2713 = vpop.f32.mrb[0].mxu0
    %v2714 = vpop.f32.mrb[0].mxu0
    %v2715 = vpop.f32.mrb[0].mxu0
    %2716 = vdwg.mxu0
    %v2718 = vrot.slane %v2712, 4
    %v2720 = vadd.f32 %v2514, %v2718
    %v2721 = vxor.u32 %v2720, 2147483648
    %v2722 = vmul.f32 %v2721, 1.442695
    %v2723 = vpow.pop %v2722
    %v2724 = vadd.f32 %v2723, 1.0
    %v2725 = vrcp.pop %v2724
    %v2726 = vmul.f32 1.0, %v2725
    %v2727 = vtanh.pop %v2720
    %v2729 = vrot.slane %v2662, 6
    %v2731 = vmul.f32 %v2726, %v2729
    %2733 = vrot.lane.b32.xlu0 %v2727, 32
    %v2734 = vpop.permute.xlu0 %2733
    %v2736 = vmul.f32 %v2726, %v2734
    %2738 = vrot.lane.b32.xlu0 %v2736, 32
    %v2739 = vpop.permute.xlu0 %2738
    %v2741 = vadd.f32 %v2731, %v2739
    %v2742 = vtanh.pop %v2741
    %2744 = vrot.lane.b32.xlu0 %v2742, 32
    %v2745 = vpop.permute.xlu0 %2744
    %v2747 = vmul.f32 %v2726, %v2745
    %v2748 = vpack.c.bf16 %v2747, %v2747
    %v2750 = vrot.slane %v2748, 2
    %2751 = vrot.lane.b32.xlu0 %v2750, 64
    %v2752 = vpop.permute.xlu0 %2751
    %v2754 = vsel %vm145, %v2752, 0
    %2756 = vmatprep.subr.bf16.mxu0 0
    %2757 = vmatpush1.bf16.msra.mxu0 %v1550
    %2758 = vmatprep.subr.bf16.mxu0 0
    %2759 = vmatpush1.bf16.msra.mxu0 %v1551
    %2760 = vmatprep.subr.bf16.mxu0 0
    %2761 = vmatpush1.bf16.msra.mxu0 0
    %2762 = vmatprep.subr.bf16.mxu0 0
    %2763 = vmatpush1.bf16.msra.mxu0 0
    %2764 = vmatprep.subr.bf16.mxu0 0
    %2765 = vmatpush1.bf16.msra.mxu0 0
    %2766 = vmatprep.subr.bf16.mxu0 0
    %2767 = vmatpush1.bf16.msra.mxu0 0
    %2768 = vmatprep.subr.bf16.mxu0 0
    %2769 = vmatpush1.bf16.msra.mxu0 0
    %2770 = vmatprep.subr.bf16.mxu0 0
    %2771 = vmatpush1.bf16.msra.mxu0 0
    %2772 = vmatprep.subr.bf16.mxu0 0
    %2773 = vmatpush1.bf16.msra.mxu0 0
    %2774 = vmatprep.subr.bf16.mxu0 0
    %2775 = vmatpush1.bf16.msra.mxu0 0
    %2776 = vmatprep.subr.bf16.mxu0 0
    %2777 = vmatpush1.bf16.msra.mxu0 0
    %2778 = vmatprep.subr.bf16.mxu0 0
    %2779 = vmatpush1.bf16.msra.mxu0 0
    %2780 = vmatprep.subr.bf16.mxu0 0
    %2781 = vmatpush1.bf16.msra.mxu0 0
    %2782 = vmatprep.subr.bf16.mxu0 0
    %2783 = vmatpush1.bf16.msra.mxu0 0
    %2784 = vmatprep.subr.bf16.mxu0 0
    %2785 = vmatpush1.bf16.msra.mxu0 0
    %2786 = vmatprep.subr.bf16.mxu0 0
    %2787 = vmatpush1.bf16.msra.mxu0 0
    %2788 = vmatprep.mubr.bf16.mxu0 0
    %2789 = vmatmul.mubr.bf16.gmra.mrb[0].mxu0 %v2754
    %v2790 = vpop.f32.mrb[0].mxu0
    %v2791 = vadd.f32 0.0, %v2790
    %v2792 = vpop.f32.mrb[0].mxu0
    %v2793 = vpop.f32.mrb[0].mxu0
    %v2794 = vpop.f32.mrb[0].mxu0
    %2795 = vdwg.mxu0
    %v2797 = vrot.slane %v2791, 2
    %v2799 = vadd.f32 %v2514, %v2797
    %v2800 = vxor.u32 %v2799, 2147483648
    %v2801 = vmul.f32 %v2800, 1.442695
    %v2802 = vpow.pop %v2801
    %v2803 = vadd.f32 %v2802, 1.0
    %v2804 = vrcp.pop %v2803
    %v2805 = vmul.f32 1.0, %v2804
    %v2806 = vtanh.pop %v2799
    %v2808 = vrot.slane %v2741, 6
    %v2810 = vmul.f32 %v2805, %v2808
    %2812 = vrot.lane.b32.xlu0 %v2806, 32
    %v2813 = vpop.permute.xlu0 %2812
    %v2815 = vmul.f32 %v2805, %v2813
    %2817 = vrot.lane.b32.xlu0 %v2815, 32
    %v2818 = vpop.permute.xlu0 %2817
    %v2820 = vadd.f32 %v2810, %v2818
    %v2821 = vtanh.pop %v2820
    %2823 = vrot.lane.b32.xlu0 %v2821, 32
    %v2824 = vpop.permute.xlu0 %2823
    %v2826 = vmul.f32 %v2805, %v2824
    %v2827 = vsel %vm454, %v2590, %v2668
    %v2828 = vsel %vm456, %v2827, %v2747
    %v2829 = vsel %vm68, %v2828, %v2826
    %2831 = vrot.lane.b32.xlu0 %v2829, 64
    %v2832 = vpop.permute.xlu0 %2831
    %s2834 = scalar_lea.vmem [#allocation4], 24
    %2835 = vst.msk [vmem:[%s2834] sm:$0xff] %vm145, %v2832
    %2837 = vrot.lane.b32.xlu0 %v2826, 64
    %v2838 = vpop.permute.xlu0 %2837
    %2840 = vst.msk [vmem:[%s1536 - $0x6] sm:$0xc0] %vm1437, %v2838
    %2842 = vrot.lane.b32.xlu0 %v2820, 96
    %v2843 = vpop.permute.xlu0 %2842
    %2845 = vst.msk [vmem:[%s1538 - $0x6] sm:$0xc0] %vm1437, %v2843
    // Predicated region
    $region34: #{encoder_forward.1} parent=1 // pred_check
      _
    $region35: #{encoder_forward.1} parent=1 // pred_check_branch
      %2847 = sbr.rel (0) target = $region37
    $region36: #{encoder_forward.1} parent=1 // pred_region
      %s2849 = ssub.s32 512, 512
      %2850 = vsyncadd [#allocation5], %s2849
      %s2851 = sshll.u32 [#allocation4], 4
      %s2852 = int_to_ptr.vmem [resolvable:$true] %s2851
      %2857 = dma.vmem_to_hbm [thread:$0]  %s2852, 512, %s7, [#allocation5], 128, 128, 8
    $region37: #{encoder_forward.1} parent=1 // pred_fallthru
      _
    // Predicated region
    $region38: #{encoder_forward.1} parent=1 // pred_check
      _
    $region39: #{encoder_forward.1} parent=1 // pred_check_branch
      %2859 = sbr.rel (0) target = $region41
    $region40: #{encoder_forward.1} parent=1 // pred_region
      %s2861 = ssub.s32 64, 64
      %2862 = vsyncadd [#allocation7], %s2861
      %s2863 = sshll.u32 [#allocation6], 4
      %s2864 = int_to_ptr.vmem [resolvable:$true] %s2863
      %2869 = dma.vmem_to_hbm [thread:$0]  %s2864, 64, %s8, [#allocation7], 32, 32, 2
    $region41: #{encoder_forward.1} parent=1 // pred_fallthru
      _
    // Predicated region
    $region42: #{encoder_forward.1} parent=1 // pred_check
      _
    $region43: #{encoder_forward.1} parent=1 // pred_check_branch
      %2871 = sbr.rel (0) target = $region45
    $region44: #{encoder_forward.1} parent=1 // pred_region
      %s2873 = ssub.s32 64, 64
      %2874 = vsyncadd [#allocation7], %s2873
      %s2875 = sshll.u32 [#allocation8], 4
      %s2876 = int_to_ptr.vmem [resolvable:$true] %s2875
      %2881 = dma.vmem_to_hbm [thread:$0]  %s2876, 64, %s9, [#allocation7], 32, 32, 2
    $region45: #{encoder_forward.1} parent=1 // pred_fallthru
      _
    // Predicated region
    $region46: #{encoder_forward.1} parent=1 // pred_check
      _
    $region47: #{encoder_forward.1} parent=1 // pred_check_branch
      %2883 = sbr.rel (0) target = $region49
    $region48: #{encoder_forward.1} parent=1 // pred_region
      %2884 = dma.done [#allocation5], 512
    $region49: #{encoder_forward.1} parent=1 // pred_fallthru
      _
    // Predicated region
    $region50: #{encoder_forward.1} parent=1 // pred_check
      _
    $region51: #{encoder_forward.1} parent=1 // pred_check_branch
      %2886 = sbr.rel (0) target = $region53
    $region52: #{encoder_forward.1} parent=1 // pred_region
      %2887 = dma.done [#allocation7], 64
    $region53: #{encoder_forward.1} parent=1 // pred_fallthru
      _
    // Predicated region
    $region54: #{encoder_forward.1} parent=1 // pred_check
      _
    $region55: #{encoder_forward.1} parent=1 // pred_check_branch
      %2889 = sbr.rel (0) target = $region57
    $region56: #{encoder_forward.1} parent=1 // pred_region
      %2890 = dma.done [#allocation7], 64
    $region57: #{encoder_forward.1} parent=1 // pred_fallthru
      _
    %2891 = vsyncpa [#allocation5], 1
    %2892 = vsyncpa [#allocation7], 1

</llo_original>
